<compile_context>
chip_gen: v7x
topology: tpu7x:2x2x1
jax: 0.10.0
libtpu: 0.0.40
codegen_flags: <defaults>
</compile_context>

<pallas_src>
import numpy as np
import jax
import jax.numpy as jnp
from jax import lax
from jax.experimental import pallas as pl
from jax.experimental.pallas import tpu as pltpu

# ----------------------------- configuration -------------------------------
TYPE_NUM_CLASSES = 5
SPATIAL_SIZE = 768.0
MAX_VERTEX_DISTANCE = 50.0
TYPE_LOSS_WEIGHT = 1.0
N_PAD = 16          # padded node count per event (multiple of 8 sublanes)
SLAB_W = 32         # per-node slab width (21 data lanes + 11 zero pad)
LANE = 128          # lane-dense output width
TB_MAX = 256        # events per grid step cap: 256*16*32*4 B = 512 KiB/block,
                    # ~1.25 MiB double-buffered incl. output -> fits the
                    # default scoped VMEM limit on v5e/v6e/v7x with headroom.

# slab lane layout (per node row):
#   0:5   type logits            5     type target (f32 of int)
#   6     type valid mask        7     p pred
#   8     p target               9     p valid mask
#   10:13 vtx position pred      13:15 vtx score logits
#   15    vtx positive target    16    vtx valid mask
#   17    vtx positive mask      18:21 normalized vtx label
#   21:32 zero padding
#
# output lanes (per event, first 12 of a (TB,128) block):
#   0 type CE sum          1 type acc count      2 n valid type rows
#   3 p MSE sum            4 p acc sum           5 vtx score CE sum
#   6 vtx score acc count  7 vtx pos loss sum    8 vtx pos acc sum
#   9 n valid p rows      10 n valid vtx rows   11 n positive vtx rows
NUM_OUT = 12


def _bucket_batch(b):
    """Pad batch size to a power of two >= 8 (avoids per-B recompiles)."""
    return max(8, 1 << (int(b) - 1).bit_length())


def _choose_tb(b_pad):
    """Events per grid step. b_pad is a power of two >= 8."""
    if b_pad >= 16:
        # grid length >= 2 so the 'parallel' axis can split across the two
        # v7x TensorCores; harmless on v5e/v6e.
        return min(TB_MAX, b_pad // 2)
    return b_pad


# ------------------------------ Pallas kernel ------------------------------
def _node_kin_loss_kernel(slab_ref, out_ref):
    x = slab_ref[...]                                  # (TB, N_PAD, SLAB_W)
    tb = x.shape[0]

    logits     = x[:, :, 0:5]
    type_tgt   = x[:, :, 5:6]
    type_valid = x[:, :, 6:7]
    p_pred     = x[:, :, 7:8]
    p_tgt      = x[:, :, 8:9]
    p_valid    = x[:, :, 9:10]
    vtx_pos_pr = x[:, :, 10:13]
    vtx_score  = x[:, :, 13:15]
    vtx_tgt    = x[:, :, 15:16]
    vtx_valid  = x[:, :, 16:17]
    vtx_pos_m  = x[:, :, 17:18]
    vtx_label  = x[:, :, 18:21]

    # ------------------ particle-type cross entropy (sum) ------------------
    col5 = lax.broadcasted_iota(jnp.int32, logits.shape, 2)
    onehot5 = (col5.astype(jnp.float32) == type_tgt).astype(jnp.float32)
    rmax5 = jnp.max(logits, axis=2, keepdims=True)
    lse5 = rmax5 + jnp.log(jnp.sum(jnp.exp(logits - rmax5), axis=2, keepdims=True))
    picked5 = jnp.sum(onehot5 * logits, axis=2, keepdims=True)
    c_type_ce = type_valid * (lse5 - picked5)
    argmax5 = jnp.min(jnp.where(logits == rmax5, col5, 5), axis=2, keepdims=True)
    c_type_acc = type_valid * (argmax5.astype(jnp.float32) == type_tgt).astype(jnp.float32)

    # --------------------- momentum regression (MSE sum) -------------------
    diff = p_pred - p_tgt
    c_p_mse = p_valid * diff * diff
    # Guard p_tgt == 0 (would give inf in the reference's relative accuracy).
    p_tgt_safe = jnp.where((p_valid > 0) & (p_tgt != 0), p_tgt, 1.0)
    c_p_acc = p_valid * (1.0 - jnp.abs(diff) * pl.reciprocal(p_tgt_safe, approx=True))

    # -------------------------- vertex score CE ----------------------------
    col2 = lax.broadcasted_iota(jnp.int32, vtx_score.shape, 2)
    onehot2 = (col2.astype(jnp.float32) == vtx_tgt).astype(jnp.float32)
    rmax2 = jnp.max(vtx_score, axis=2, keepdims=True)
    lse2 = rmax2 + jnp.log(jnp.sum(jnp.exp(vtx_score - rmax2), axis=2, keepdims=True))
    picked2 = jnp.sum(onehot2 * vtx_score, axis=2, keepdims=True)
    c_vtx_ce = vtx_valid * (lse2 - picked2)
    argmax2 = jnp.min(jnp.where(vtx_score == rmax2, col2, 2), axis=2, keepdims=True)
    c_vtx_acc = vtx_valid * (argmax2.astype(jnp.float32) == vtx_tgt).astype(jnp.float32)

    # ----------------------- vertex position (L1, clamp) -------------------
    l1 = jnp.abs(vtx_pos_pr - vtx_label)
    row_l1 = jnp.sum(l1, axis=2, keepdims=True)
    # As in the PyTorch reference (normalize_vtx_label=True), the clamp is
    # applied to the L1 of (raw pred, normalized label); it rarely binds.
    c_vtx_pos_loss = vtx_pos_m * jnp.minimum(row_l1, MAX_VERTEX_DISTANCE ** 2)
    denom = jnp.abs(vtx_pos_pr) + jnp.abs(vtx_label)
    # Guard denom == 0 (0/0 NaN in the reference when pred == label == 0).
    denom_safe = jnp.where(denom > 0, denom, 1.0)
    c_vtx_pos_acc = vtx_pos_m * jnp.sum(
        1.0 - l1 * pl.reciprocal(denom_safe, approx=True),
        axis=2, keepdims=True) * (1.0 / 3.0)

    # ---- reduce over the node axis FIRST, then one lane-placement concat ---
    cols = (c_type_ce, c_type_acc, type_valid,
            c_p_mse, c_p_acc,
            c_vtx_ce, c_vtx_acc,
            c_vtx_pos_loss, c_vtx_pos_acc,
            p_valid, vtx_valid, vtx_pos_m)
    ev_sums = [jnp.sum(c, axis=1) for c in cols]       # each (TB, 1)
    pad = jnp.zeros((tb, LANE - NUM_OUT), jnp.float32)
    out_ref[...] = jnp.concatenate(ev_sums + [pad], axis=-1)   # (TB,128) unmasked vst


def node_kinematics_loss_sums(slab):
    """slab: (B_pad, N_PAD, SLAB_W) f32 -> (B_pad, 128) f32 per-event partial sums."""
    b = slab.shape[0]
    tb = _choose_tb(b)
    return pl.pallas_call(
        _node_kin_loss_kernel,
        out_shape=jax.ShapeDtypeStruct((b, LANE), jnp.float32),
        grid=(b // tb,),
        in_specs=[pl.BlockSpec((tb, N_PAD, SLAB_W), lambda i: (i, 0, 0))],
        out_specs=pl.BlockSpec((tb, LANE), lambda i: (i, 0)),
        compiler_params=pltpu.CompilerParams(
            dimension_semantics=("parallel",)),
    )(slab)


# --------------------- jitted mask construction + packing -------------------
@jax.jit
def _pack_and_reduce(node_pred_type, node_pred_p, node_pred_vtx,
                     node_assn_type, node_assn_p, node_assn_vtx,
                     node_assn_vtx_pos, group_ids, row_valid):
    f32 = jnp.float32
    B = node_pred_type.shape[0]
    rv = row_valid

    # type labels >= num_classes -> -1 (ignore); -inf picked-logit filter
    t = jnp.where(node_assn_type >= TYPE_NUM_CLASSES, -1, node_assn_type)
    t_idx = jnp.clip(t, 0, TYPE_NUM_CLASSES - 1)
    picked_logit = jnp.take_along_axis(node_pred_type, t_idx[..., None], axis=2)[..., 0]
    valid_type = (t > -1) & (picked_logit != -jnp.inf) & rv

    # high-purity filter: group ids appearing exactly once in the event
    same_group = (group_ids[:, :, None] == group_ids[:, None, :]) & rv[:, None, :]
    counts = jnp.sum(same_group.astype(jnp.int32), axis=2)
    high_purity = (counts == 1) & rv

    valid_type = valid_type & high_purity
    valid_p = (node_assn_p > -1) & high_purity
    valid_vtx = (jnp.all(node_assn_vtx >= 0.0, axis=2)
                 & jnp.all(node_assn_vtx <= SPATIAL_SIZE, axis=2)
                 & (node_assn_vtx_pos > -1)
                 & high_purity)
    pos_vtx = valid_vtx & (node_assn_vtx_pos > 0)

    vtx_label = (node_assn_vtx / SPATIAL_SIZE).astype(f32)   # normalize_vtx_label=True

    slab = jnp.concatenate([
        node_pred_type.astype(f32),                                 # 0:5
        t_idx[..., None].astype(f32),                               # 5
        valid_type[..., None].astype(f32),                          # 6
        node_pred_p.astype(f32),                                    # 7
        node_assn_p[..., None].astype(f32),                         # 8
        valid_p[..., None].astype(f32),                             # 9
        node_pred_vtx.astype(f32),                                  # 10:15
        jnp.clip(node_assn_vtx_pos, 0, 1)[..., None].astype(f32),   # 15
        valid_vtx[..., None].astype(f32),                           # 16
        pos_vtx[..., None].astype(f32),                             # 17
        vtx_label,                                                  # 18:21
        jnp.zeros((B, N_PAD, SLAB_W - 21), f32),                    # pad to 32
    ], axis=2)

    sums = node_kinematics_loss_sums(slab)[:, :NUM_OUT]
    return sums, pos_vtx, vtx_label


# ---------------------------- host-side wrapper -----------------------------
def node_kinematics_loss_forward(events):
    """Batched NodeKinematicsLoss.forward over a list of per-(image,batch) events.

    Each event dict holds node-level predictions/labels.
    # TODO(synk): get_cluster_label/get_momenta_label (voxel->cluster label
    # extraction) and the per-event iteration over `types` are host-side,
    # data-dependent glue; node-level labels are passed in directly.
    """
    B = len(events)
    B_pad = _bucket_batch(B)
    n_nodes = np.array([int(np.asarray(e['node_pred_type']).shape[0]) for e in events])
    assert int(n_nodes.max()) <= N_PAD, "increase N_PAD"

    npt  = np.zeros((B_pad, N_PAD, TYPE_NUM_CLASSES), np.float32)
    npp  = np.zeros((B_pad, N_PAD, 1), np.float32)
    npv  = np.zeros((B_pad, N_PAD, 5), np.float32)
    nat  = np.full((B_pad, N_PAD), -1, np.int32)
    nap  = np.full((B_pad, N_PAD), -1.0, np.float32)
    nav  = np.full((B_pad, N_PAD, 3), -1.0, np.float32)
    navp = np.full((B_pad, N_PAD), -1, np.int32)
    gid  = np.full((B_pad, N_PAD), -1, np.int32)
    rv   = np.zeros((B_pad, N_PAD), bool)
    for b, e in enumerate(events):
        n = int(n_nodes[b])
        npt[b, :n]  = np.asarray(e['node_pred_type'], np.float32)
        npp[b, :n]  = np.asarray(e['node_pred_p'], np.float32).reshape(n, 1)
        npv[b, :n]  = np.asarray(e['node_pred_vtx'], np.float32)
        nat[b, :n]  = np.asarray(e['node_assn_type'], np.int32)
        nap[b, :n]  = np.asarray(e['node_assn_p'], np.float32)
        nav[b, :n]  = np.asarray(e['node_assn_vtx'], np.float32)
        navp[b, :n] = np.asarray(e['node_assn_vtx_pos'], np.int32)
        gid[b, :n]  = np.asarray(e['group_ids'], np.int32)
        rv[b, :n]   = True

    sums_d, pos_vtx_d, vtx_label_d = _pack_and_reduce(
        jnp.asarray(npt), jnp.asarray(npp), jnp.asarray(npv),
        jnp.asarray(nat), jnp.asarray(nap), jnp.asarray(nav),
        jnp.asarray(navp), jnp.asarray(gid), jnp.asarray(rv))
    s = np.asarray(jax.block_until_ready(sums_d))[:B]         # (B, 12)
    pos_vtx = np.asarray(pos_vtx_d)[:B]
    vtx_label = np.asarray(vtx_label_d)[:B]

    # ---- vectorized result assembly (matches the module's accumulation) ----
    n_type    = np.rint(s[:, 2]).astype(np.int64)
    n_valid_p = np.rint(s[:, 9]).astype(np.int64)
    n_vtx     = np.rint(s[:, 10]).astype(np.int64)
    n_vtx_pos = np.rint(s[:, 11]).astype(np.int64)
    has_type, has_p, has_vp = n_type > 0, n_valid_p > 0, n_vtx_pos > 0

    type_loss = TYPE_LOSS_WEIGHT * float(np.sum(s[has_type, 0]))
    type_acc  = float(np.sum(s[has_type, 1]))
    n_clusts_type = int(np.sum(n_type[has_type]))

    p_loss = float(np.sum(s[has_p, 3]))
    p_acc  = float(np.sum(s[has_p, 4]))
    n_clusts_momentum = int(np.sum(n_nodes[has_p]))           # += len(clusts)

    vtx_score_loss = float(np.sum(s[has_vp, 5]))
    vtx_score_acc  = float(np.sum(s[has_vp, 6]))
    vtx_position_loss = float(np.sum(s[has_vp, 7] / np.maximum(n_vtx_pos[has_vp], 1)))
    vtx_position_acc  = float(np.sum(s[has_vp, 8]))
    n_clusts_vtx = int(np.sum(n_vtx[has_vp]))
    n_clusts_vtx_pos = int(np.sum(n_vtx_pos[has_vp]))

    total_loss = type_loss + p_loss + vtx_score_loss + vtx_position_loss

    # ragged per-event vtx_labels (host loop unavoidable)
    vtx_labels = [vtx_label[b][pos_vtx[b]] if has_vp[b]
                  else np.empty((0, 3), dtype=np.float32)
                  for b in range(B)]

    n_clusts = n_clusts_type + n_clusts_momentum + n_clusts_vtx + n_clusts_vtx_pos
    result = {
        'accuracy': (type_acc + p_acc + vtx_position_acc + vtx_score_acc) / n_clusts if n_clusts else 1.0,
        'loss': total_loss / n_clusts if n_clusts else 0.0,
        'n_clusts_momentum': n_clusts_momentum,
        'n_clusts_type': n_clusts_type,
        'n_clusts_vtx': n_clusts_vtx,
        'n_clusts_vtx_positives': n_clusts_vtx_pos,
        'type_accuracy': type_acc / n_clusts_type if n_clusts_type else 1.0,
        'type_loss': type_loss / n_clusts_type if n_clusts_type else 0.0,
        'p_accuracy': p_acc / n_clusts_momentum if n_clusts_momentum else 1.0,
        'p_loss': p_loss / n_clusts_momentum if p_loss else 0.0,   # mirrors reference guard
        'vtx_score_loss': vtx_score_loss / n_clusts_vtx if n_clusts_vtx else 0.0,
        'vtx_score_accuracy': vtx_score_acc / n_clusts_vtx if n_clusts_vtx else 1.0,
        'vtx_position_loss': vtx_position_loss / n_clusts_vtx_pos if n_clusts_vtx_pos else 0.0,
        'vtx_position_accuracy': vtx_position_acc / n_clusts_vtx_pos if n_clusts_vtx_pos else 1.0,
        'vtx_labels': (vtx_labels,),
    }
    return result


# ---------------------------------- main ------------------------------------
if __name__ == "__main__":
    key = jax.random.PRNGKey(0)
    k1, k2, k3, k4, k5, k6, k7, k8 = jax.random.split(key, 8)

    # event 0 : 10 nodes (mixed valid/invalid labels, duplicate groups)
    N0 = 10
    ev0 = dict(
        node_pred_type=np.asarray(jax.random.normal(k1, (N0, TYPE_NUM_CLASSES)), np.float32),
        node_pred_p=np.asarray(jax.random.normal(k2, (N0, 1)), np.float32),
        node_pred_vtx=np.asarray(jax.random.normal(k3, (N0, 5)), np.float32),
        node_assn_type=np.array([2, -1, 0, 6, 1, 3, 4, 2, 0, 1], np.int32),
        node_assn_p=np.abs(np.asarray(jax.random.normal(k4, (N0,)), np.float32)) + 0.5,
        node_assn_vtx=np.array(
            [[100., 200., 300.], [50., 60., 70.], [10., 20., 30.], [400., 500., 600.],
             [900., 100., 100.], [120., 130., 140.], [300., 310., 320.], [700., 10., 20.],
             [5., 6., 7.], [250., 260., 270.]], np.float32),   # one row out of [0, 768]
        node_assn_vtx_pos=np.array([1, 0, -1, 1, 0, 1, 1, 0, 1, -1], np.int32),
        group_ids=np.array([0, 0, 1, 2, 3, 3, 4, 5, 6, 7], np.int32),
    )

    # event 1 : 7 nodes (all vtx labels in-bounds, one duplicate group)
    N1 = 7
    ev1 = dict(
        node_pred_type=np.asarray(jax.random.normal(k5, (N1, TYPE_NUM_CLASSES)), np.float32),
        node_pred_p=np.asarray(jax.random.normal(k6, (N1, 1)), np.float32),
        node_pred_vtx=np.asarray(jax.random.normal(k7, (N1, 5)), np.float32),
        node_assn_type=np.array([0, 1, 2, 3, -1, 4, 1], np.int32),
        node_assn_p=np.abs(np.asarray(jax.random.normal(k8, (N1,)), np.float32)) + 0.5,
        node_assn_vtx=np.array(
            [[10., 20., 30.], [40., 50., 60.], [70., 80., 90.], [100., 110., 120.],
             [130., 140., 150.], [160., 170., 180.], [190., 200., 210.]], np.float32),
        node_assn_vtx_pos=np.array([0, 1, 1, -1, 0, 1, 0], np.int32),
        group_ids=np.array([0, 1, 2, 3, 4, 5, 5], np.int32),
    )

    result = node_kinematics_loss_forward([ev0, ev1])

    # sanity: finite scalars
    for key_name in ('loss', 'accuracy', 'type_loss', 'p_loss',
                     'vtx_score_loss', 'vtx_position_loss',
                     'vtx_position_accuracy', 'p_accuracy'):
        assert np.isfinite(result[key_name]), key_name
    assert result['n_clusts_type'] > 0 and result['n_clusts_vtx_positives'] > 0

    print("KERNEL_OK")
</pallas_src>

<mosaic_0001>
module attributes {stable_mosaic.version = 11 : i64} {
  func.func @_node_kin_loss_kernel(%arg0: i32, %arg1: memref<8x16x32xf32, #tpu.memory_space<vmem>>, %arg2: memref<8x128xf32, #tpu.memory_space<vmem>>) attributes {dimension_semantics = [#tpu.dimension_semantics<parallel>], iteration_bounds = array<i64: 1>, scalar_prefetch = 0 : i64, scratch_operands = 0 : i64, tpu.core_type = #tpu.core_type<tc>, window_params = [{transform_indices = @transform_0, window_bounds = array<i64: 8, 16, 32>}, {transform_indices = @transform_1, window_bounds = array<i64: 8, 128>}]} {
    %c0 = arith.constant 0 : index
    %c0_0 = arith.constant 0 : index
    %c0_1 = arith.constant 0 : index
    %0 = vector.load %arg1[%c0, %c0_0, %c0_1] : memref<8x16x32xf32, #tpu.memory_space<vmem>>, vector<8x16x32xf32>
    %1 = vector.extract_strided_slice %0 {offsets = [0, 0, 0], sizes = [8, 16, 5], strides = [1, 1, 1]} : vector<8x16x32xf32> to vector<8x16x5xf32>
    %2 = vector.extract_strided_slice %0 {offsets = [0, 0, 5], sizes = [8, 16, 1], strides = [1, 1, 1]} : vector<8x16x32xf32> to vector<8x16x1xf32>
    %3 = vector.extract_strided_slice %0 {offsets = [0, 0, 6], sizes = [8, 16, 1], strides = [1, 1, 1]} : vector<8x16x32xf32> to vector<8x16x1xf32>
    %4 = vector.extract_strided_slice %0 {offsets = [0, 0, 7], sizes = [8, 16, 1], strides = [1, 1, 1]} : vector<8x16x32xf32> to vector<8x16x1xf32>
    %5 = vector.extract_strided_slice %0 {offsets = [0, 0, 8], sizes = [8, 16, 1], strides = [1, 1, 1]} : vector<8x16x32xf32> to vector<8x16x1xf32>
    %6 = vector.extract_strided_slice %0 {offsets = [0, 0, 9], sizes = [8, 16, 1], strides = [1, 1, 1]} : vector<8x16x32xf32> to vector<8x16x1xf32>
    %7 = vector.extract_strided_slice %0 {offsets = [0, 0, 10], sizes = [8, 16, 3], strides = [1, 1, 1]} : vector<8x16x32xf32> to vector<8x16x3xf32>
    %8 = vector.extract_strided_slice %0 {offsets = [0, 0, 13], sizes = [8, 16, 2], strides = [1, 1, 1]} : vector<8x16x32xf32> to vector<8x16x2xf32>
    %9 = vector.extract_strided_slice %0 {offsets = [0, 0, 15], sizes = [8, 16, 1], strides = [1, 1, 1]} : vector<8x16x32xf32> to vector<8x16x1xf32>
    %10 = vector.extract_strided_slice %0 {offsets = [0, 0, 16], sizes = [8, 16, 1], strides = [1, 1, 1]} : vector<8x16x32xf32> to vector<8x16x1xf32>
    %11 = vector.extract_strided_slice %0 {offsets = [0, 0, 17], sizes = [8, 16, 1], strides = [1, 1, 1]} : vector<8x16x32xf32> to vector<8x16x1xf32>
    %12 = vector.extract_strided_slice %0 {offsets = [0, 0, 18], sizes = [8, 16, 3], strides = [1, 1, 1]} : vector<8x16x32xf32> to vector<8x16x3xf32>
    %13 = tpu.iota {dimensions = array<i32: 2>} : vector<8x16x5xi32>
    %14 = arith.sitofp %13 : vector<8x16x5xi32> to vector<8x16x5xf32>
    %15 = vector.broadcast %2 : vector<8x16x1xf32> to vector<8x16x5xf32>
    %16 = arith.cmpf oeq, %14, %15 : vector<8x16x5xf32>
    %17 = arith.extui %16 : vector<8x16x5xi1> to vector<8x16x5xi32>
    %18 = arith.sitofp %17 : vector<8x16x5xi32> to vector<8x16x5xf32>
    %cst = arith.constant dense<0xFF800000> : vector<8x16xf32>
    %19 = vector.multi_reduction <maximumf>, %1, %cst [2] : vector<8x16x5xf32> to vector<8x16xf32>
    %20 = vector.shape_cast %19 : vector<8x16xf32> to vector<8x16x1xf32>
    %21 = vector.broadcast %20 : vector<8x16x1xf32> to vector<8x16x5xf32>
    %22 = arith.subf %1, %21 : vector<8x16x5xf32>
    %23 = math.exp %22 : vector<8x16x5xf32>
    %cst_2 = arith.constant dense<0.000000e+00> : vector<8x16xf32>
    %24 = vector.multi_reduction <add>, %23, %cst_2 [2] : vector<8x16x5xf32> to vector<8x16xf32>
    %25 = vector.shape_cast %24 : vector<8x16xf32> to vector<8x16x1xf32>
    %26 = math.log %25 : vector<8x16x1xf32>
    %27 = arith.addf %20, %26 : vector<8x16x1xf32>
    %28 = arith.mulf %18, %1 : vector<8x16x5xf32>
    %cst_3 = arith.constant dense<0.000000e+00> : vector<8x16xf32>
    %29 = vector.multi_reduction <add>, %28, %cst_3 [2] : vector<8x16x5xf32> to vector<8x16xf32>
    %30 = vector.shape_cast %29 : vector<8x16xf32> to vector<8x16x1xf32>
    %31 = arith.subf %27, %30 : vector<8x16x1xf32>
    %32 = arith.mulf %3, %31 : vector<8x16x1xf32>
    %33 = vector.broadcast %20 : vector<8x16x1xf32> to vector<8x16x5xf32>
    %34 = arith.cmpf oeq, %1, %33 : vector<8x16x5xf32>
    %c5_i32 = arith.constant 5 : i32
    %35 = vector.broadcast %c5_i32 : i32 to vector<8x16x5xi32>
    %36 = arith.select %34, %13, %35 : vector<8x16x5xi1>, vector<8x16x5xi32>
    %cst_4 = arith.constant dense<2147483647> : vector<8x16xi32>
    %37 = vector.multi_reduction <minsi>, %36, %cst_4 [2] : vector<8x16x5xi32> to vector<8x16xi32>
    %38 = vector.shape_cast %37 : vector<8x16xi32> to vector<8x16x1xi32>
    %39 = arith.sitofp %38 : vector<8x16x1xi32> to vector<8x16x1xf32>
    %40 = arith.cmpf oeq, %39, %2 : vector<8x16x1xf32>
    %41 = arith.extui %40 : vector<8x16x1xi1> to vector<8x16x1xi32>
    %42 = arith.sitofp %41 : vector<8x16x1xi32> to vector<8x16x1xf32>
    %43 = arith.mulf %3, %42 : vector<8x16x1xf32>
    %44 = arith.subf %4, %5 : vector<8x16x1xf32>
    %45 = arith.mulf %6, %44 : vector<8x16x1xf32>
    %46 = arith.mulf %45, %44 : vector<8x16x1xf32>
    %cst_5 = arith.constant 0.000000e+00 : f32
    %47 = vector.broadcast %cst_5 : f32 to vector<8x16x1xf32>
    %48 = arith.cmpf ogt, %6, %47 : vector<8x16x1xf32>
    %cst_6 = arith.constant 0.000000e+00 : f32
    %49 = vector.broadcast %cst_6 : f32 to vector<8x16x1xf32>
    %50 = arith.cmpf one, %5, %49 : vector<8x16x1xf32>
    %51 = arith.andi %48, %50 : vector<8x16x1xi1>
    %cst_7 = arith.constant 1.000000e+00 : f32
    %52 = vector.broadcast %cst_7 : f32 to vector<8x16x1xf32>
    %53 = arith.select %51, %5, %52 : vector<8x16x1xi1>, vector<8x16x1xf32>
    %54 = math.absf %44 : vector<8x16x1xf32>
    %55 = tpu.reciprocal %53 {approx = true} : vector<8x16x1xf32> -> vector<8x16x1xf32>
    %56 = arith.mulf %54, %55 : vector<8x16x1xf32>
    %cst_8 = arith.constant 1.000000e+00 : f32
    %57 = vector.broadcast %cst_8 : f32 to vector<8x16x1xf32>
    %58 = arith.subf %57, %56 : vector<8x16x1xf32>
    %59 = arith.mulf %6, %58 : vector<8x16x1xf32>
    %60 = tpu.iota {dimensions = array<i32: 2>} : vector<8x16x2xi32>
    %61 = arith.sitofp %60 : vector<8x16x2xi32> to vector<8x16x2xf32>
    %62 = vector.broadcast %9 : vector<8x16x1xf32> to vector<8x16x2xf32>
    %63 = arith.cmpf oeq, %61, %62 : vector<8x16x2xf32>
    %64 = arith.extui %63 : vector<8x16x2xi1> to vector<8x16x2xi32>
    %65 = arith.sitofp %64 : vector<8x16x2xi32> to vector<8x16x2xf32>
    %cst_9 = arith.constant dense<0xFF800000> : vector<8x16xf32>
    %66 = vector.multi_reduction <maximumf>, %8, %cst_9 [2] : vector<8x16x2xf32> to vector<8x16xf32>
    %67 = vector.shape_cast %66 : vector<8x16xf32> to vector<8x16x1xf32>
    %68 = vector.broadcast %67 : vector<8x16x1xf32> to vector<8x16x2xf32>
    %69 = arith.subf %8, %68 : vector<8x16x2xf32>
    %70 = math.exp %69 : vector<8x16x2xf32>
    %cst_10 = arith.constant dense<0.000000e+00> : vector<8x16xf32>
    %71 = vector.multi_reduction <add>, %70, %cst_10 [2] : vector<8x16x2xf32> to vector<8x16xf32>
    %72 = vector.shape_cast %71 : vector<8x16xf32> to vector<8x16x1xf32>
    %73 = math.log %72 : vector<8x16x1xf32>
    %74 = arith.addf %67, %73 : vector<8x16x1xf32>
    %75 = arith.mulf %65, %8 : vector<8x16x2xf32>
    %cst_11 = arith.constant dense<0.000000e+00> : vector<8x16xf32>
    %76 = vector.multi_reduction <add>, %75, %cst_11 [2] : vector<8x16x2xf32> to vector<8x16xf32>
    %77 = vector.shape_cast %76 : vector<8x16xf32> to vector<8x16x1xf32>
    %78 = arith.subf %74, %77 : vector<8x16x1xf32>
    %79 = arith.mulf %10, %78 : vector<8x16x1xf32>
    %80 = vector.broadcast %67 : vector<8x16x1xf32> to vector<8x16x2xf32>
    %81 = arith.cmpf oeq, %8, %80 : vector<8x16x2xf32>
    %c2_i32 = arith.constant 2 : i32
    %82 = vector.broadcast %c2_i32 : i32 to vector<8x16x2xi32>
    %83 = arith.select %81, %60, %82 : vector<8x16x2xi1>, vector<8x16x2xi32>
    %cst_12 = arith.constant dense<2147483647> : vector<8x16xi32>
    %84 = vector.multi_reduction <minsi>, %83, %cst_12 [2] : vector<8x16x2xi32> to vector<8x16xi32>
    %85 = vector.shape_cast %84 : vector<8x16xi32> to vector<8x16x1xi32>
    %86 = arith.sitofp %85 : vector<8x16x1xi32> to vector<8x16x1xf32>
    %87 = arith.cmpf oeq, %86, %9 : vector<8x16x1xf32>
    %88 = arith.extui %87 : vector<8x16x1xi1> to vector<8x16x1xi32>
    %89 = arith.sitofp %88 : vector<8x16x1xi32> to vector<8x16x1xf32>
    %90 = arith.mulf %10, %89 : vector<8x16x1xf32>
    %91 = arith.subf %7, %12 : vector<8x16x3xf32>
    %92 = math.absf %91 : vector<8x16x3xf32>
    %cst_13 = arith.constant dense<0.000000e+00> : vector<8x16xf32>
    %93 = vector.multi_reduction <add>, %92, %cst_13 [2] : vector<8x16x3xf32> to vector<8x16xf32>
    %94 = vector.shape_cast %93 : vector<8x16xf32> to vector<8x16x1xf32>
    %cst_14 = arith.constant 2.500000e+03 : f32
    %95 = vector.broadcast %cst_14 : f32 to vector<8x16x1xf32>
    %96 = arith.minimumf %94, %95 : vector<8x16x1xf32>
    %97 = arith.mulf %11, %96 : vector<8x16x1xf32>
    %98 = math.absf %7 : vector<8x16x3xf32>
    %99 = math.absf %12 : vector<8x16x3xf32>
    %100 = arith.addf %98, %99 : vector<8x16x3xf32>
    %cst_15 = arith.constant 0.000000e+00 : f32
    %101 = vector.broadcast %cst_15 : f32 to vector<8x16x3xf32>
    %102 = arith.cmpf ogt, %100, %101 : vector<8x16x3xf32>
    %cst_16 = arith.constant 1.000000e+00 : f32
    %103 = vector.broadcast %cst_16 : f32 to vector<8x16x3xf32>
    %104 = arith.select %102, %100, %103 : vector<8x16x3xi1>, vector<8x16x3xf32>
    %105 = tpu.reciprocal %104 {approx = true} : vector<8x16x3xf32> -> vector<8x16x3xf32>
    %106 = arith.mulf %92, %105 : vector<8x16x3xf32>
    %cst_17 = arith.constant 1.000000e+00 : f32
    %107 = vector.broadcast %cst_17 : f32 to vector<8x16x3xf32>
    %108 = arith.subf %107, %106 : vector<8x16x3xf32>
    %cst_18 = arith.constant dense<0.000000e+00> : vector<8x16xf32>
    %109 = vector.multi_reduction <add>, %108, %cst_18 [2] : vector<8x16x3xf32> to vector<8x16xf32>
    %110 = vector.shape_cast %109 : vector<8x16xf32> to vector<8x16x1xf32>
    %111 = arith.mulf %11, %110 : vector<8x16x1xf32>
    %cst_19 = arith.constant 0.333333343 : f32
    %112 = vector.broadcast %cst_19 : f32 to vector<8x16x1xf32>
    %113 = arith.mulf %111, %112 : vector<8x16x1xf32>
    %cst_20 = arith.constant dense<0.000000e+00> : vector<8x1xf32>
    %114 = vector.multi_reduction <add>, %32, %cst_20 [1] : vector<8x16x1xf32> to vector<8x1xf32>
    %cst_21 = arith.constant dense<0.000000e+00> : vector<8x1xf32>
    %115 = vector.multi_reduction <add>, %43, %cst_21 [1] : vector<8x16x1xf32> to vector<8x1xf32>
    %cst_22 = arith.constant dense<0.000000e+00> : vector<8x1xf32>
    %116 = vector.multi_reduction <add>, %3, %cst_22 [1] : vector<8x16x1xf32> to vector<8x1xf32>
    %cst_23 = arith.constant dense<0.000000e+00> : vector<8x1xf32>
    %117 = vector.multi_reduction <add>, %46, %cst_23 [1] : vector<8x16x1xf32> to vector<8x1xf32>
    %cst_24 = arith.constant dense<0.000000e+00> : vector<8x1xf32>
    %118 = vector.multi_reduction <add>, %59, %cst_24 [1] : vector<8x16x1xf32> to vector<8x1xf32>
    %cst_25 = arith.constant dense<0.000000e+00> : vector<8x1xf32>
    %119 = vector.multi_reduction <add>, %79, %cst_25 [1] : vector<8x16x1xf32> to vector<8x1xf32>
    %cst_26 = arith.constant dense<0.000000e+00> : vector<8x1xf32>
    %120 = vector.multi_reduction <add>, %90, %cst_26 [1] : vector<8x16x1xf32> to vector<8x1xf32>
    %cst_27 = arith.constant dense<0.000000e+00> : vector<8x1xf32>
    %121 = vector.multi_reduction <add>, %97, %cst_27 [1] : vector<8x16x1xf32> to vector<8x1xf32>
    %cst_28 = arith.constant dense<0.000000e+00> : vector<8x1xf32>
    %122 = vector.multi_reduction <add>, %113, %cst_28 [1] : vector<8x16x1xf32> to vector<8x1xf32>
    %cst_29 = arith.constant dense<0.000000e+00> : vector<8x1xf32>
    %123 = vector.multi_reduction <add>, %6, %cst_29 [1] : vector<8x16x1xf32> to vector<8x1xf32>
    %cst_30 = arith.constant dense<0.000000e+00> : vector<8x1xf32>
    %124 = vector.multi_reduction <add>, %10, %cst_30 [1] : vector<8x16x1xf32> to vector<8x1xf32>
    %cst_31 = arith.constant dense<0.000000e+00> : vector<8x1xf32>
    %125 = vector.multi_reduction <add>, %11, %cst_31 [1] : vector<8x16x1xf32> to vector<8x1xf32>
    %cst_32 = arith.constant 0.000000e+00 : f32
    %126 = vector.broadcast %cst_32 : f32 to vector<8x116xf32>
    %127 = tpu.concatenate %114, %115, %116, %117, %118, %119, %120, %121, %122, %123, %124, %125, %126 in 1 : vector<8x1xf32>, vector<8x1xf32>, vector<8x1xf32>, vector<8x1xf32>, vector<8x1xf32>, vector<8x1xf32>, vector<8x1xf32>, vector<8x1xf32>, vector<8x1xf32>, vector<8x1xf32>, vector<8x1xf32>, vector<8x1xf32>, vector<8x116xf32> -> vector<8x128xf32>
    %c0_33 = arith.constant 0 : index
    %c0_34 = arith.constant 0 : index
    %128 = vector.load %arg2[%c0_33, %c0_34] : memref<8x128xf32, #tpu.memory_space<vmem>>, vector<8x128xf32>
    tpu.vector_store %arg2[%c0_33, %c0_34], %127 {strides = array<i32>} : memref<8x128xf32, #tpu.memory_space<vmem>>, vector<8x128xf32>,
    return
  }
  func.func @transform_0(%arg0: i32) -> (i32, i32, i32) {
    %c0_i32 = arith.constant 0 : i32
    %c0_i32_0 = arith.constant 0 : i32
    %c0_i32_1 = arith.constant 0 : i32
    return %arg0, %c0_i32, %c0_i32_0 : i32, i32, i32
  }
  func.func @transform_1(%arg0: i32) -> (i32, i32) {
    %c0_i32 = arith.constant 0 : i32
    %c0_i32_0 = arith.constant 0 : i32
    return %arg0, %c0_i32 : i32, i32
  }
}

</mosaic_0001>

<llo_original>
// kernel: _pack_and_reduce.1
$region0: #{_pack_and_reduce.1}
  #allocation0 [shape = 'u32[]', space=smem, size = 0x4, offset = 0x4, fixed_abs, tag = 'smem constant byte address 0x4 - core index']
  #allocation1 [shape = 'u32[144,128]{1,0:T(1,128)}', space=vmem, size = 0x12000, scoped, tag = 'internal scratch']
  %s0 = inlined_call_operand.vmem [shape: f32[8,16,32], index: 0, kind: input, shape index: {}]
  %s1 = inlined_call_operand.hbm [shape: f32[8,128], index: 1, kind: output, shape index: {}]
  %s2 = sld [smem:[#allocation0]]
  $region14: #{_pack_and_reduce.1} parent=0
    _
  %s4 = ssub.s32 1, %s2
  %s5 = scalar_select 0, %s4, %s2
  $region1: #{_pack_and_reduce.1} parent=0
    #allocation2 [shape = 'u8[4096]{0}', space=vmem, size = 0x1000, scoped, tag = 'output window, operand 0, single buffered']
    #allocation3 [shape = 's32[1]{0}', space=sflag, size = 0x4, scoped, tag = 'scoped memory for _pack_and_reduce.1']
    %6 = vsyncpa [#allocation3], 0
    // Predicated region
    $region2: #{_pack_and_reduce.1} parent=1 // pred_check
      _
    $region3: #{_pack_and_reduce.1} parent=1 // pred_check_branch
      %8 = sbr.rel (0) target = $region5
    $region4: #{_pack_and_reduce.1} parent=1 // pred_region
      _
    $region5: #{_pack_and_reduce.1} parent=1 // pred_fallthru
      _
    %v9 = vld [vmem:[%s0] sm:$0xff]
    %v10 = vld [vmem:[%s0 + $0x8] sm:$0xff]
    %v11 = vld [vmem:[%s0 + $0x10] sm:$0xff]
    %v12 = vld [vmem:[%s0 + $0x18] sm:$0xff]
    %v13 = vld [vmem:[%s0 + $0x20] sm:$0xff]
    %v14 = vld [vmem:[%s0 + $0x28] sm:$0xff]
    %v15 = vld [vmem:[%s0 + $0x30] sm:$0xff]
    %v16 = vld [vmem:[%s0 + $0x38] sm:$0xff]
    %v17 = vld [vmem:[%s0 + $0x40] sm:$0xff]
    %v18 = vld [vmem:[%s0 + $0x48] sm:$0xff]
    %v19 = vld [vmem:[%s0 + $0x50] sm:$0xff]
    %v20 = vld [vmem:[%s0 + $0x58] sm:$0xff]
    %v21 = vld [vmem:[%s0 + $0x60] sm:$0xff]
    %v22 = vld [vmem:[%s0 + $0x68] sm:$0xff]
    %v23 = vld [vmem:[%s0 + $0x70] sm:$0xff]
    %v24 = vld [vmem:[%s0 + $0x78] sm:$0xff]
    %v25 = vlaneseq
    %v26 = vand.u32 %v25, 127
    %v27 = vcvt.s32.f32 %v26
    %29 = vset.pattern.permute.xlu0 5
    %30 = vperm.xlu0 %29, %v9
    %v31 = vpop.permute.xlu0 %30
    %34 = vset.pattern.permute.xlu0 5
    %35 = vperm.xlu0 %34, %v10
    %v36 = vpop.permute.xlu0 %35
    %39 = vset.pattern.permute.xlu0 5
    %40 = vperm.xlu0 %39, %v11
    %v41 = vpop.permute.xlu0 %40
    %44 = vset.pattern.permute.xlu0 5
    %45 = vperm.xlu0 %44, %v12
    %v46 = vpop.permute.xlu0 %45
    %49 = vset.pattern.permute.xlu0 5
    %50 = vperm.xlu0 %49, %v13
    %v51 = vpop.permute.xlu0 %50
    %54 = vset.pattern.permute.xlu0 5
    %55 = vperm.xlu0 %54, %v14
    %v56 = vpop.permute.xlu0 %55
    %59 = vset.pattern.permute.xlu0 5
    %60 = vperm.xlu0 %59, %v15
    %v61 = vpop.permute.xlu0 %60
    %64 = vset.pattern.permute.xlu0 5
    %65 = vperm.xlu0 %64, %v16
    %v66 = vpop.permute.xlu0 %65
    %69 = vset.pattern.permute.xlu0 5
    %70 = vperm.xlu0 %69, %v17
    %v71 = vpop.permute.xlu0 %70
    %74 = vset.pattern.permute.xlu0 5
    %75 = vperm.xlu0 %74, %v18
    %v76 = vpop.permute.xlu0 %75
    %79 = vset.pattern.permute.xlu0 5
    %80 = vperm.xlu0 %79, %v19
    %v81 = vpop.permute.xlu0 %80
    %84 = vset.pattern.permute.xlu0 5
    %85 = vperm.xlu0 %84, %v20
    %v86 = vpop.permute.xlu0 %85
    %89 = vset.pattern.permute.xlu0 5
    %90 = vperm.xlu0 %89, %v21
    %v91 = vpop.permute.xlu0 %90
    %94 = vset.pattern.permute.xlu0 5
    %95 = vperm.xlu0 %94, %v22
    %v96 = vpop.permute.xlu0 %95
    %99 = vset.pattern.permute.xlu0 5
    %100 = vperm.xlu0 %99, %v23
    %v101 = vpop.permute.xlu0 %100
    %104 = vset.pattern.permute.xlu0 5
    %105 = vperm.xlu0 %104, %v24
    %v106 = vpop.permute.xlu0 %105
    %vm108 = vcmp.eq.f32.partialorder %v27, %v31
    %vm109 = vcmp.eq.f32.partialorder %v27, %v36
    %vm110 = vcmp.eq.f32.partialorder %v27, %v41
    %vm111 = vcmp.eq.f32.partialorder %v27, %v46
    %vm112 = vcmp.eq.f32.partialorder %v27, %v51
    %vm113 = vcmp.eq.f32.partialorder %v27, %v56
    %vm114 = vcmp.eq.f32.partialorder %v27, %v61
    %vm115 = vcmp.eq.f32.partialorder %v27, %v66
    %vm116 = vcmp.eq.f32.partialorder %v27, %v71
    %vm117 = vcmp.eq.f32.partialorder %v27, %v76
    %vm118 = vcmp.eq.f32.partialorder %v27, %v81
    %vm119 = vcmp.eq.f32.partialorder %v27, %v86
    %vm120 = vcmp.eq.f32.partialorder %v27, %v91
    %vm121 = vcmp.eq.f32.partialorder %v27, %v96
    %vm122 = vcmp.eq.f32.partialorder %v27, %v101
    %vm123 = vcmp.eq.f32.partialorder %v27, %v106
    %v124 = vsel %vm108, 1, 0
    %v125 = vsel %vm109, 1, 0
    %v126 = vsel %vm110, 1, 0
    %v127 = vsel %vm111, 1, 0
    %v128 = vsel %vm112, 1, 0
    %v129 = vsel %vm113, 1, 0
    %v130 = vsel %vm114, 1, 0
    %v131 = vsel %vm115, 1, 0
    %v132 = vsel %vm116, 1, 0
    %v133 = vsel %vm117, 1, 0
    %v134 = vsel %vm118, 1, 0
    %v135 = vsel %vm119, 1, 0
    %v136 = vsel %vm120, 1, 0
    %v137 = vsel %vm121, 1, 0
    %v138 = vsel %vm122, 1, 0
    %v139 = vsel %vm123, 1, 0
    %v140 = vcvt.s32.f32 %v124
    %v141 = vcvt.s32.f32 %v125
    %v142 = vcvt.s32.f32 %v126
    %v143 = vcvt.s32.f32 %v127
    %v144 = vcvt.s32.f32 %v128
    %v145 = vcvt.s32.f32 %v129
    %v146 = vcvt.s32.f32 %v130
    %v147 = vcvt.s32.f32 %v131
    %v148 = vcvt.s32.f32 %v132
    %v149 = vcvt.s32.f32 %v133
    %v150 = vcvt.s32.f32 %v134
    %v151 = vcvt.s32.f32 %v135
    %v152 = vcvt.s32.f32 %v136
    %v153 = vcvt.s32.f32 %v137
    %v154 = vcvt.s32.f32 %v138
    %v155 = vcvt.s32.f32 %v139
    %vm156 = vcmask 39936
    %v157 = vsel %vm156, %v9, -inf
    %158 = vmax.xlane.f32.xlu0 %v157
    %v159 = vpop.xlane.xlu0 %158
    %v160 = vsel %vm156, %v10, -inf
    %161 = vmax.xlane.f32.xlu0 %v160
    %v162 = vpop.xlane.xlu0 %161
    %v163 = vsel %vm156, %v11, -inf
    %164 = vmax.xlane.f32.xlu0 %v163
    %v165 = vpop.xlane.xlu0 %164
    %v166 = vsel %vm156, %v12, -inf
    %167 = vmax.xlane.f32.xlu0 %v166
    %v168 = vpop.xlane.xlu0 %167
    %v169 = vsel %vm156, %v13, -inf
    %170 = vmax.xlane.f32.xlu0 %v169
    %v171 = vpop.xlane.xlu0 %170
    %v172 = vsel %vm156, %v14, -inf
    %173 = vmax.xlane.f32.xlu0 %v172
    %v174 = vpop.xlane.xlu0 %173
    %v175 = vsel %vm156, %v15, -inf
    %176 = vmax.xlane.f32.xlu0 %v175
    %v177 = vpop.xlane.xlu0 %176
    %v178 = vsel %vm156, %v16, -inf
    %179 = vmax.xlane.f32.xlu0 %v178
    %v180 = vpop.xlane.xlu0 %179
    %v181 = vsel %vm156, %v17, -inf
    %182 = vmax.xlane.f32.xlu0 %v181
    %v183 = vpop.xlane.xlu0 %182
    %v184 = vsel %vm156, %v18, -inf
    %185 = vmax.xlane.f32.xlu0 %v184
    %v186 = vpop.xlane.xlu0 %185
    %v187 = vsel %vm156, %v19, -inf
    %188 = vmax.xlane.f32.xlu0 %v187
    %v189 = vpop.xlane.xlu0 %188
    %v190 = vsel %vm156, %v20, -inf
    %191 = vmax.xlane.f32.xlu0 %v190
    %v192 = vpop.xlane.xlu0 %191
    %v193 = vsel %vm156, %v21, -inf
    %194 = vmax.xlane.f32.xlu0 %v193
    %v195 = vpop.xlane.xlu0 %194
    %v196 = vsel %vm156, %v22, -inf
    %197 = vmax.xlane.f32.xlu0 %v196
    %v198 = vpop.xlane.xlu0 %197
    %v199 = vsel %vm156, %v23, -inf
    %200 = vmax.xlane.f32.xlu0 %v199
    %v201 = vpop.xlane.xlu0 %200
    %v202 = vsel %vm156, %v24, -inf
    %203 = vmax.xlane.f32.xlu0 %v202
    %v204 = vpop.xlane.xlu0 %203
    %v205 = vsub.f32 %v9, %v159
    %v206 = vsub.f32 %v10, %v162
    %v207 = vsub.f32 %v11, %v165
    %v208 = vsub.f32 %v12, %v168
    %v209 = vsub.f32 %v13, %v171
    %v210 = vsub.f32 %v14, %v174
    %v211 = vsub.f32 %v15, %v177
    %v212 = vsub.f32 %v16, %v180
    %v213 = vsub.f32 %v17, %v183
    %v214 = vsub.f32 %v18, %v186
    %v215 = vsub.f32 %v19, %v189
    %v216 = vsub.f32 %v20, %v192
    %v217 = vsub.f32 %v21, %v195
    %v218 = vsub.f32 %v22, %v198
    %v219 = vsub.f32 %v23, %v201
    %v220 = vsub.f32 %v24, %v204
    %v221 = vmul.f32 %v205, 1.442695
    %v222 = vpow.pop %v221
    %v223 = vmul.f32 %v206, 1.442695
    %v224 = vpow.pop %v223
    %v225 = vmul.f32 %v207, 1.442695
    %v226 = vpow.pop %v225
    %v227 = vmul.f32 %v208, 1.442695
    %v228 = vpow.pop %v227
    %v229 = vmul.f32 %v209, 1.442695
    %v230 = vpow.pop %v229
    %v231 = vmul.f32 %v210, 1.442695
    %v232 = vpow.pop %v231
    %v233 = vmul.f32 %v211, 1.442695
    %v234 = vpow.pop %v233
    %v235 = vmul.f32 %v212, 1.442695
    %v236 = vpow.pop %v235
    %v237 = vmul.f32 %v213, 1.442695
    %v238 = vpow.pop %v237
    %v239 = vmul.f32 %v214, 1.442695
    %v240 = vpow.pop %v239
    %v241 = vmul.f32 %v215, 1.442695
    %v242 = vpow.pop %v241
    %v243 = vmul.f32 %v216, 1.442695
    %v244 = vpow.pop %v243
    %v245 = vmul.f32 %v217, 1.442695
    %v246 = vpow.pop %v245
    %v247 = vmul.f32 %v218, 1.442695
    %v248 = vpow.pop %v247
    %v249 = vmul.f32 %v219, 1.442695
    %v250 = vpow.pop %v249
    %v251 = vmul.f32 %v220, 1.442695
    %v252 = vpow.pop %v251
    %v253 = vsel %vm156, %v222, 0.0
    %254 = vadd.xlane.f32.xlu0 %v253
    %v255 = vpop.xlane.xlu0 %254
    %v256 = vsel %vm156, %v224, 0.0
    %257 = vadd.xlane.f32.xlu0 %v256
    %v258 = vpop.xlane.xlu0 %257
    %v259 = vsel %vm156, %v226, 0.0
    %260 = vadd.xlane.f32.xlu0 %v259
    %v261 = vpop.xlane.xlu0 %260
    %v262 = vsel %vm156, %v228, 0.0
    %263 = vadd.xlane.f32.xlu0 %v262
    %v264 = vpop.xlane.xlu0 %263
    %v265 = vsel %vm156, %v230, 0.0
    %266 = vadd.xlane.f32.xlu0 %v265
    %v267 = vpop.xlane.xlu0 %266
    %v268 = vsel %vm156, %v232, 0.0
    %269 = vadd.xlane.f32.xlu0 %v268
    %v270 = vpop.xlane.xlu0 %269
    %v271 = vsel %vm156, %v234, 0.0
    %272 = vadd.xlane.f32.xlu0 %v271
    %v273 = vpop.xlane.xlu0 %272
    %v274 = vsel %vm156, %v236, 0.0
    %275 = vadd.xlane.f32.xlu0 %v274
    %v276 = vpop.xlane.xlu0 %275
    %v277 = vsel %vm156, %v238, 0.0
    %278 = vadd.xlane.f32.xlu0 %v277
    %v279 = vpop.xlane.xlu0 %278
    %v280 = vsel %vm156, %v240, 0.0
    %281 = vadd.xlane.f32.xlu0 %v280
    %v282 = vpop.xlane.xlu0 %281
    %v283 = vsel %vm156, %v242, 0.0
    %284 = vadd.xlane.f32.xlu0 %v283
    %v285 = vpop.xlane.xlu0 %284
    %v286 = vsel %vm156, %v244, 0.0
    %287 = vadd.xlane.f32.xlu0 %v286
    %v288 = vpop.xlane.xlu0 %287
    %v289 = vsel %vm156, %v246, 0.0
    %290 = vadd.xlane.f32.xlu0 %v289
    %v291 = vpop.xlane.xlu0 %290
    %v292 = vsel %vm156, %v248, 0.0
    %293 = vadd.xlane.f32.xlu0 %v292
    %v294 = vpop.xlane.xlu0 %293
    %v295 = vsel %vm156, %v250, 0.0
    %296 = vadd.xlane.f32.xlu0 %v295
    %v297 = vpop.xlane.xlu0 %296
    %v298 = vsel %vm156, %v252, 0.0
    %299 = vadd.xlane.f32.xlu0 %v298
    %v300 = vpop.xlane.xlu0 %299
    %v301 = vlog2.pop %v255
    %v302 = vmul.f32 %v301, 0.6931472
    %v303 = vlog2.pop %v258
    %v304 = vmul.f32 %v303, 0.6931472
    %v305 = vlog2.pop %v261
    %v306 = vmul.f32 %v305, 0.6931472
    %v307 = vlog2.pop %v264
    %v308 = vmul.f32 %v307, 0.6931472
    %v309 = vlog2.pop %v267
    %v310 = vmul.f32 %v309, 0.6931472
    %v311 = vlog2.pop %v270
    %v312 = vmul.f32 %v311, 0.6931472
    %v313 = vlog2.pop %v273
    %v314 = vmul.f32 %v313, 0.6931472
    %v315 = vlog2.pop %v276
    %v316 = vmul.f32 %v315, 0.6931472
    %v317 = vlog2.pop %v279
    %v318 = vmul.f32 %v317, 0.6931472
    %v319 = vlog2.pop %v282
    %v320 = vmul.f32 %v319, 0.6931472
    %v321 = vlog2.pop %v285
    %v322 = vmul.f32 %v321, 0.6931472
    %v323 = vlog2.pop %v288
    %v324 = vmul.f32 %v323, 0.6931472
    %v325 = vlog2.pop %v291
    %v326 = vmul.f32 %v325, 0.6931472
    %v327 = vlog2.pop %v294
    %v328 = vmul.f32 %v327, 0.6931472
    %v329 = vlog2.pop %v297
    %v330 = vmul.f32 %v329, 0.6931472
    %v331 = vlog2.pop %v300
    %v332 = vmul.f32 %v331, 0.6931472
    %v333 = vadd.f32 %v159, %v302
    %v334 = vadd.f32 %v162, %v304
    %v335 = vadd.f32 %v165, %v306
    %v336 = vadd.f32 %v168, %v308
    %v337 = vadd.f32 %v171, %v310
    %v338 = vadd.f32 %v174, %v312
    %v339 = vadd.f32 %v177, %v314
    %v340 = vadd.f32 %v180, %v316
    %v341 = vadd.f32 %v183, %v318
    %v342 = vadd.f32 %v186, %v320
    %v343 = vadd.f32 %v189, %v322
    %v344 = vadd.f32 %v192, %v324
    %v345 = vadd.f32 %v195, %v326
    %v346 = vadd.f32 %v198, %v328
    %v347 = vadd.f32 %v201, %v330
    %v348 = vadd.f32 %v204, %v332
    %v349 = vmul.f32 %v140, %v9
    %v350 = vmul.f32 %v141, %v10
    %v351 = vmul.f32 %v142, %v11
    %v352 = vmul.f32 %v143, %v12
    %v353 = vmul.f32 %v144, %v13
    %v354 = vmul.f32 %v145, %v14
    %v355 = vmul.f32 %v146, %v15
    %v356 = vmul.f32 %v147, %v16
    %v357 = vmul.f32 %v148, %v17
    %v358 = vmul.f32 %v149, %v18
    %v359 = vmul.f32 %v150, %v19
    %v360 = vmul.f32 %v151, %v20
    %v361 = vmul.f32 %v152, %v21
    %v362 = vmul.f32 %v153, %v22
    %v363 = vmul.f32 %v154, %v23
    %v364 = vmul.f32 %v155, %v24
    %v365 = vsel %vm156, %v349, 0.0
    %366 = vadd.xlane.f32.xlu0 %v365
    %v367 = vpop.xlane.xlu0 %366
    %v368 = vsel %vm156, %v350, 0.0
    %369 = vadd.xlane.f32.xlu0 %v368
    %v370 = vpop.xlane.xlu0 %369
    %v371 = vsel %vm156, %v351, 0.0
    %372 = vadd.xlane.f32.xlu0 %v371
    %v373 = vpop.xlane.xlu0 %372
    %v374 = vsel %vm156, %v352, 0.0
    %375 = vadd.xlane.f32.xlu0 %v374
    %v376 = vpop.xlane.xlu0 %375
    %v377 = vsel %vm156, %v353, 0.0
    %378 = vadd.xlane.f32.xlu0 %v377
    %v379 = vpop.xlane.xlu0 %378
    %v380 = vsel %vm156, %v354, 0.0
    %381 = vadd.xlane.f32.xlu0 %v380
    %v382 = vpop.xlane.xlu0 %381
    %v383 = vsel %vm156, %v355, 0.0
    %384 = vadd.xlane.f32.xlu0 %v383
    %v385 = vpop.xlane.xlu0 %384
    %v386 = vsel %vm156, %v356, 0.0
    %387 = vadd.xlane.f32.xlu0 %v386
    %v388 = vpop.xlane.xlu0 %387
    %v389 = vsel %vm156, %v357, 0.0
    %390 = vadd.xlane.f32.xlu0 %v389
    %v391 = vpop.xlane.xlu0 %390
    %v392 = vsel %vm156, %v358, 0.0
    %393 = vadd.xlane.f32.xlu0 %v392
    %v394 = vpop.xlane.xlu0 %393
    %v395 = vsel %vm156, %v359, 0.0
    %396 = vadd.xlane.f32.xlu0 %v395
    %v397 = vpop.xlane.xlu0 %396
    %v398 = vsel %vm156, %v360, 0.0
    %399 = vadd.xlane.f32.xlu0 %v398
    %v400 = vpop.xlane.xlu0 %399
    %v401 = vsel %vm156, %v361, 0.0
    %402 = vadd.xlane.f32.xlu0 %v401
    %v403 = vpop.xlane.xlu0 %402
    %v404 = vsel %vm156, %v362, 0.0
    %405 = vadd.xlane.f32.xlu0 %v404
    %v406 = vpop.xlane.xlu0 %405
    %v407 = vsel %vm156, %v363, 0.0
    %408 = vadd.xlane.f32.xlu0 %v407
    %v409 = vpop.xlane.xlu0 %408
    %v410 = vsel %vm156, %v364, 0.0
    %411 = vadd.xlane.f32.xlu0 %v410
    %v412 = vpop.xlane.xlu0 %411
    %v413 = vsub.f32 %v333, %v367
    %v414 = vsub.f32 %v334, %v370
    %v415 = vsub.f32 %v335, %v373
    %v416 = vsub.f32 %v336, %v376
    %v417 = vsub.f32 %v337, %v379
    %v418 = vsub.f32 %v338, %v382
    %v419 = vsub.f32 %v339, %v385
    %v420 = vsub.f32 %v340, %v388
    %v421 = vsub.f32 %v341, %v391
    %v422 = vsub.f32 %v342, %v394
    %v423 = vsub.f32 %v343, %v397
    %v424 = vsub.f32 %v344, %v400
    %v425 = vsub.f32 %v345, %v403
    %v426 = vsub.f32 %v346, %v406
    %v427 = vsub.f32 %v347, %v409
    %v428 = vsub.f32 %v348, %v412
    %v429 = vmul.f32 %v9, %v413
    %v430 = vmul.f32 %v10, %v414
    %v431 = vmul.f32 %v11, %v415
    %v432 = vmul.f32 %v12, %v416
    %v433 = vmul.f32 %v13, %v417
    %v434 = vmul.f32 %v14, %v418
    %v435 = vmul.f32 %v15, %v419
    %v436 = vmul.f32 %v16, %v420
    %v437 = vmul.f32 %v17, %v421
    %v438 = vmul.f32 %v18, %v422
    %v439 = vmul.f32 %v19, %v423
    %v440 = vmul.f32 %v20, %v424
    %v441 = vmul.f32 %v21, %v425
    %v442 = vmul.f32 %v22, %v426
    %v443 = vmul.f32 %v23, %v427
    %v444 = vmul.f32 %v24, %v428
    %vm445 = vcmp.eq.f32.partialorder %v9, %v159
    %vm446 = vcmp.eq.f32.partialorder %v10, %v162
    %vm447 = vcmp.eq.f32.partialorder %v11, %v165
    %vm448 = vcmp.eq.f32.partialorder %v12, %v168
    %vm449 = vcmp.eq.f32.partialorder %v13, %v171
    %vm450 = vcmp.eq.f32.partialorder %v14, %v174
    %vm451 = vcmp.eq.f32.partialorder %v15, %v177
    %vm452 = vcmp.eq.f32.partialorder %v16, %v180
    %vm453 = vcmp.eq.f32.partialorder %v17, %v183
    %vm454 = vcmp.eq.f32.partialorder %v18, %v186
    %vm455 = vcmp.eq.f32.partialorder %v19, %v189
    %vm456 = vcmp.eq.f32.partialorder %v20, %v192
    %vm457 = vcmp.eq.f32.partialorder %v21, %v195
    %vm458 = vcmp.eq.f32.partialorder %v22, %v198
    %vm459 = vcmp.eq.f32.partialorder %v23, %v201
    %vm460 = vcmp.eq.f32.partialorder %v24, %v204
    %v461 = vsel %vm445, %v26, 5
    %v462 = vsel %vm446, %v26, 5
    %v463 = vsel %vm447, %v26, 5
    %v464 = vsel %vm448, %v26, 5
    %v465 = vsel %vm449, %v26, 5
    %v466 = vsel %vm450, %v26, 5
    %v467 = vsel %vm451, %v26, 5
    %v468 = vsel %vm452, %v26, 5
    %v469 = vsel %vm453, %v26, 5
    %v470 = vsel %vm454, %v26, 5
    %v471 = vsel %vm455, %v26, 5
    %v472 = vsel %vm456, %v26, 5
    %v473 = vsel %vm457, %v26, 5
    %v474 = vsel %vm458, %v26, 5
    %v475 = vsel %vm459, %v26, 5
    %v476 = vsel %vm460, %v26, 5
    %v477 = vsel %vm156, %v461, 2147483647
    %v478 = vand.u32 %v477, 65535
    %v479 = vshra.s32 %v477, 16
    %v480 = vcvt.s32.f32 %v478
    %v481 = vcvt.s32.f32 %v479
    %482 = vmin.xlane.f32.xlu0 %v481
    %v483 = vpop.xlane.xlu0 %482
    %vm484 = vcmp.eq.f32.partialorder %v481, %v483
    %v485 = vsel %vm484, %v480, inf
    %486 = vmin.xlane.f32.xlu0 %v485
    %v487 = vpop.xlane.xlu0 %486
    %v488 = vcvt.f32.s32 %v487
    %v489 = vcvt.f32.s32 %v483
    %v490 = vshll.u32 %v489, 16
    %v491 = vadd.s32 %v490, %v488
    %v492 = vsel %vm156, %v462, 2147483647
    %v493 = vand.u32 %v492, 65535
    %v494 = vshra.s32 %v492, 16
    %v495 = vcvt.s32.f32 %v493
    %v496 = vcvt.s32.f32 %v494
    %497 = vmin.xlane.f32.xlu0 %v496
    %v498 = vpop.xlane.xlu0 %497
    %vm499 = vcmp.eq.f32.partialorder %v496, %v498
    %v500 = vsel %vm499, %v495, inf
    %501 = vmin.xlane.f32.xlu0 %v500
    %v502 = vpop.xlane.xlu0 %501
    %v503 = vcvt.f32.s32 %v502
    %v504 = vcvt.f32.s32 %v498
    %v505 = vshll.u32 %v504, 16
    %v506 = vadd.s32 %v505, %v503
    %v507 = vsel %vm156, %v463, 2147483647
    %v508 = vand.u32 %v507, 65535
    %v509 = vshra.s32 %v507, 16
    %v510 = vcvt.s32.f32 %v508
    %v511 = vcvt.s32.f32 %v509
    %512 = vmin.xlane.f32.xlu0 %v511
    %v513 = vpop.xlane.xlu0 %512
    %vm514 = vcmp.eq.f32.partialorder %v511, %v513
    %v515 = vsel %vm514, %v510, inf
    %516 = vmin.xlane.f32.xlu0 %v515
    %v517 = vpop.xlane.xlu0 %516
    %v518 = vcvt.f32.s32 %v517
    %v519 = vcvt.f32.s32 %v513
    %v520 = vshll.u32 %v519, 16
    %v521 = vadd.s32 %v520, %v518
    %v522 = vsel %vm156, %v464, 2147483647
    %v523 = vand.u32 %v522, 65535
    %v524 = vshra.s32 %v522, 16
    %v525 = vcvt.s32.f32 %v523
    %v526 = vcvt.s32.f32 %v524
    %527 = vmin.xlane.f32.xlu0 %v526
    %v528 = vpop.xlane.xlu0 %527
    %vm529 = vcmp.eq.f32.partialorder %v526, %v528
    %v530 = vsel %vm529, %v525, inf
    %531 = vmin.xlane.f32.xlu0 %v530
    %v532 = vpop.xlane.xlu0 %531
    %v533 = vcvt.f32.s32 %v532
    %v534 = vcvt.f32.s32 %v528
    %v535 = vshll.u32 %v534, 16
    %v536 = vadd.s32 %v535, %v533
    %v537 = vsel %vm156, %v465, 2147483647
    %v538 = vand.u32 %v537, 65535
    %v539 = vshra.s32 %v537, 16
    %v540 = vcvt.s32.f32 %v538
    %v541 = vcvt.s32.f32 %v539
    %542 = vmin.xlane.f32.xlu0 %v541
    %v543 = vpop.xlane.xlu0 %542
    %vm544 = vcmp.eq.f32.partialorder %v541, %v543
    %v545 = vsel %vm544, %v540, inf
    %546 = vmin.xlane.f32.xlu0 %v545
    %v547 = vpop.xlane.xlu0 %546
    %v548 = vcvt.f32.s32 %v547
    %v549 = vcvt.f32.s32 %v543
    %v550 = vshll.u32 %v549, 16
    %v551 = vadd.s32 %v550, %v548
    %v552 = vsel %vm156, %v466, 2147483647
    %v553 = vand.u32 %v552, 65535
    %v554 = vshra.s32 %v552, 16
    %v555 = vcvt.s32.f32 %v553
    %v556 = vcvt.s32.f32 %v554
    %557 = vmin.xlane.f32.xlu0 %v556
    %v558 = vpop.xlane.xlu0 %557
    %vm559 = vcmp.eq.f32.partialorder %v556, %v558
    %v560 = vsel %vm559, %v555, inf
    %561 = vmin.xlane.f32.xlu0 %v560
    %v562 = vpop.xlane.xlu0 %561
    %v563 = vcvt.f32.s32 %v562
    %v564 = vcvt.f32.s32 %v558
    %v565 = vshll.u32 %v564, 16
    %v566 = vadd.s32 %v565, %v563
    %v567 = vsel %vm156, %v467, 2147483647
    %v568 = vand.u32 %v567, 65535
    %v569 = vshra.s32 %v567, 16
    %v570 = vcvt.s32.f32 %v568
    %v571 = vcvt.s32.f32 %v569
    %572 = vmin.xlane.f32.xlu0 %v571
    %v573 = vpop.xlane.xlu0 %572
    %vm574 = vcmp.eq.f32.partialorder %v571, %v573
    %v575 = vsel %vm574, %v570, inf
    %576 = vmin.xlane.f32.xlu0 %v575
    %v577 = vpop.xlane.xlu0 %576
    %v578 = vcvt.f32.s32 %v577
    %v579 = vcvt.f32.s32 %v573
    %v580 = vshll.u32 %v579, 16
    %v581 = vadd.s32 %v580, %v578
    %v582 = vsel %vm156, %v468, 2147483647
    %v583 = vand.u32 %v582, 65535
    %v584 = vshra.s32 %v582, 16
    %v585 = vcvt.s32.f32 %v583
    %v586 = vcvt.s32.f32 %v584
    %587 = vmin.xlane.f32.xlu0 %v586
    %v588 = vpop.xlane.xlu0 %587
    %vm589 = vcmp.eq.f32.partialorder %v586, %v588
    %v590 = vsel %vm589, %v585, inf
    %591 = vmin.xlane.f32.xlu0 %v590
    %v592 = vpop.xlane.xlu0 %591
    %v593 = vcvt.f32.s32 %v592
    %v594 = vcvt.f32.s32 %v588
    %v595 = vshll.u32 %v594, 16
    %v596 = vadd.s32 %v595, %v593
    %v597 = vsel %vm156, %v469, 2147483647
    %v598 = vand.u32 %v597, 65535
    %v599 = vshra.s32 %v597, 16
    %v600 = vcvt.s32.f32 %v598
    %v601 = vcvt.s32.f32 %v599
    %602 = vmin.xlane.f32.xlu0 %v601
    %v603 = vpop.xlane.xlu0 %602
    %vm604 = vcmp.eq.f32.partialorder %v601, %v603
    %v605 = vsel %vm604, %v600, inf
    %606 = vmin.xlane.f32.xlu0 %v605
    %v607 = vpop.xlane.xlu0 %606
    %v608 = vcvt.f32.s32 %v607
    %v609 = vcvt.f32.s32 %v603
    %v610 = vshll.u32 %v609, 16
    %v611 = vadd.s32 %v610, %v608
    %v612 = vsel %vm156, %v470, 2147483647
    %v613 = vand.u32 %v612, 65535
    %v614 = vshra.s32 %v612, 16
    %v615 = vcvt.s32.f32 %v613
    %v616 = vcvt.s32.f32 %v614
    %617 = vmin.xlane.f32.xlu0 %v616
    %v618 = vpop.xlane.xlu0 %617
    %vm619 = vcmp.eq.f32.partialorder %v616, %v618
    %v620 = vsel %vm619, %v615, inf
    %621 = vmin.xlane.f32.xlu0 %v620
    %v622 = vpop.xlane.xlu0 %621
    %v623 = vcvt.f32.s32 %v622
    %v624 = vcvt.f32.s32 %v618
    %v625 = vshll.u32 %v624, 16
    %v626 = vadd.s32 %v625, %v623
    %v627 = vsel %vm156, %v471, 2147483647
    %v628 = vand.u32 %v627, 65535
    %v629 = vshra.s32 %v627, 16
    %v630 = vcvt.s32.f32 %v628
    %v631 = vcvt.s32.f32 %v629
    %632 = vmin.xlane.f32.xlu0 %v631
    %v633 = vpop.xlane.xlu0 %632
    %vm634 = vcmp.eq.f32.partialorder %v631, %v633
    %v635 = vsel %vm634, %v630, inf
    %636 = vmin.xlane.f32.xlu0 %v635
    %v637 = vpop.xlane.xlu0 %636
    %v638 = vcvt.f32.s32 %v637
    %v639 = vcvt.f32.s32 %v633
    %v640 = vshll.u32 %v639, 16
    %v641 = vadd.s32 %v640, %v638
    %v642 = vsel %vm156, %v472, 2147483647
    %v643 = vand.u32 %v642, 65535
    %v644 = vshra.s32 %v642, 16
    %v645 = vcvt.s32.f32 %v643
    %v646 = vcvt.s32.f32 %v644
    %647 = vmin.xlane.f32.xlu0 %v646
    %v648 = vpop.xlane.xlu0 %647
    %vm649 = vcmp.eq.f32.partialorder %v646, %v648
    %v650 = vsel %vm649, %v645, inf
    %651 = vmin.xlane.f32.xlu0 %v650
    %v652 = vpop.xlane.xlu0 %651
    %v653 = vcvt.f32.s32 %v652
    %v654 = vcvt.f32.s32 %v648
    %v655 = vshll.u32 %v654, 16
    %v656 = vadd.s32 %v655, %v653
    %v657 = vsel %vm156, %v473, 2147483647
    %v658 = vand.u32 %v657, 65535
    %v659 = vshra.s32 %v657, 16
    %v660 = vcvt.s32.f32 %v658
    %v661 = vcvt.s32.f32 %v659
    %662 = vmin.xlane.f32.xlu0 %v661
    %v663 = vpop.xlane.xlu0 %662
    %vm664 = vcmp.eq.f32.partialorder %v661, %v663
    %v665 = vsel %vm664, %v660, inf
    %666 = vmin.xlane.f32.xlu0 %v665
    %v667 = vpop.xlane.xlu0 %666
    %v668 = vcvt.f32.s32 %v667
    %v669 = vcvt.f32.s32 %v663
    %v670 = vshll.u32 %v669, 16
    %v671 = vadd.s32 %v670, %v668
    %v672 = vsel %vm156, %v474, 2147483647
    %v673 = vand.u32 %v672, 65535
    %v674 = vshra.s32 %v672, 16
    %v675 = vcvt.s32.f32 %v673
    %v676 = vcvt.s32.f32 %v674
    %677 = vmin.xlane.f32.xlu0 %v676
    %v678 = vpop.xlane.xlu0 %677
    %vm679 = vcmp.eq.f32.partialorder %v676, %v678
    %v680 = vsel %vm679, %v675, inf
    %681 = vmin.xlane.f32.xlu0 %v680
    %v682 = vpop.xlane.xlu0 %681
    %v683 = vcvt.f32.s32 %v682
    %v684 = vcvt.f32.s32 %v678
    %v685 = vshll.u32 %v684, 16
    %v686 = vadd.s32 %v685, %v683
    %v687 = vsel %vm156, %v475, 2147483647
    %v688 = vand.u32 %v687, 65535
    %v689 = vshra.s32 %v687, 16
    %v690 = vcvt.s32.f32 %v688
    %v691 = vcvt.s32.f32 %v689
    %692 = vmin.xlane.f32.xlu0 %v691
    %v693 = vpop.xlane.xlu0 %692
    %vm694 = vcmp.eq.f32.partialorder %v691, %v693
    %v695 = vsel %vm694, %v690, inf
    %696 = vmin.xlane.f32.xlu0 %v695
    %v697 = vpop.xlane.xlu0 %696
    %v698 = vcvt.f32.s32 %v697
    %v699 = vcvt.f32.s32 %v693
    %v700 = vshll.u32 %v699, 16
    %v701 = vadd.s32 %v700, %v698
    %v702 = vsel %vm156, %v476, 2147483647
    %v703 = vand.u32 %v702, 65535
    %v704 = vshra.s32 %v702, 16
    %v705 = vcvt.s32.f32 %v703
    %v706 = vcvt.s32.f32 %v704
    %707 = vmin.xlane.f32.xlu0 %v706
    %v708 = vpop.xlane.xlu0 %707
    %vm709 = vcmp.eq.f32.partialorder %v706, %v708
    %v710 = vsel %vm709, %v705, inf
    %711 = vmin.xlane.f32.xlu0 %v710
    %v712 = vpop.xlane.xlu0 %711
    %v713 = vcvt.f32.s32 %v712
    %v714 = vcvt.f32.s32 %v708
    %v715 = vshll.u32 %v714, 16
    %v716 = vadd.s32 %v715, %v713
    %v717 = vcvt.s32.f32 %v491
    %v718 = vcvt.s32.f32 %v506
    %v719 = vcvt.s32.f32 %v521
    %v720 = vcvt.s32.f32 %v536
    %v721 = vcvt.s32.f32 %v551
    %v722 = vcvt.s32.f32 %v566
    %v723 = vcvt.s32.f32 %v581
    %v724 = vcvt.s32.f32 %v596
    %v725 = vcvt.s32.f32 %v611
    %v726 = vcvt.s32.f32 %v626
    %v727 = vcvt.s32.f32 %v641
    %v728 = vcvt.s32.f32 %v656
    %v729 = vcvt.s32.f32 %v671
    %v730 = vcvt.s32.f32 %v686
    %v731 = vcvt.s32.f32 %v701
    %v732 = vcvt.s32.f32 %v716
    %vm733 = vcmp.eq.f32.partialorder %v717, %v9
    %vm734 = vcmp.eq.f32.partialorder %v718, %v10
    %vm735 = vcmp.eq.f32.partialorder %v719, %v11
    %vm736 = vcmp.eq.f32.partialorder %v720, %v12
    %vm737 = vcmp.eq.f32.partialorder %v721, %v13
    %vm738 = vcmp.eq.f32.partialorder %v722, %v14
    %vm739 = vcmp.eq.f32.partialorder %v723, %v15
    %vm740 = vcmp.eq.f32.partialorder %v724, %v16
    %vm741 = vcmp.eq.f32.partialorder %v725, %v17
    %vm742 = vcmp.eq.f32.partialorder %v726, %v18
    %vm743 = vcmp.eq.f32.partialorder %v727, %v19
    %vm744 = vcmp.eq.f32.partialorder %v728, %v20
    %vm745 = vcmp.eq.f32.partialorder %v729, %v21
    %vm746 = vcmp.eq.f32.partialorder %v730, %v22
    %vm747 = vcmp.eq.f32.partialorder %v731, %v23
    %vm748 = vcmp.eq.f32.partialorder %v732, %v24
    %v749 = vsel %vm733, 1, 0
    %v750 = vsel %vm734, 1, 0
    %v751 = vsel %vm735, 1, 0
    %v752 = vsel %vm736, 1, 0
    %v753 = vsel %vm737, 1, 0
    %v754 = vsel %vm738, 1, 0
    %v755 = vsel %vm739, 1, 0
    %v756 = vsel %vm740, 1, 0
    %v757 = vsel %vm741, 1, 0
    %v758 = vsel %vm742, 1, 0
    %v759 = vsel %vm743, 1, 0
    %v760 = vsel %vm744, 1, 0
    %v761 = vsel %vm745, 1, 0
    %v762 = vsel %vm746, 1, 0
    %v763 = vsel %vm747, 1, 0
    %v764 = vsel %vm748, 1, 0
    %v765 = vcvt.s32.f32 %v749
    %v766 = vcvt.s32.f32 %v750
    %v767 = vcvt.s32.f32 %v751
    %v768 = vcvt.s32.f32 %v752
    %v769 = vcvt.s32.f32 %v753
    %v770 = vcvt.s32.f32 %v754
    %v771 = vcvt.s32.f32 %v755
    %v772 = vcvt.s32.f32 %v756
    %v773 = vcvt.s32.f32 %v757
    %v774 = vcvt.s32.f32 %v758
    %v775 = vcvt.s32.f32 %v759
    %v776 = vcvt.s32.f32 %v760
    %v777 = vcvt.s32.f32 %v761
    %v778 = vcvt.s32.f32 %v762
    %v779 = vcvt.s32.f32 %v763
    %v780 = vcvt.s32.f32 %v764
    %797 = vrot.lane.b32.xlu0 %v765, 1
    %v798 = vpop.permute.xlu0 %797
    %799 = vrot.lane.b32.xlu0 %v766, 1
    %v800 = vpop.permute.xlu0 %799
    %801 = vrot.lane.b32.xlu0 %v767, 1
    %v802 = vpop.permute.xlu0 %801
    %803 = vrot.lane.b32.xlu0 %v768, 1
    %v804 = vpop.permute.xlu0 %803
    %805 = vrot.lane.b32.xlu0 %v769, 1
    %v806 = vpop.permute.xlu0 %805
    %807 = vrot.lane.b32.xlu0 %v770, 1
    %v808 = vpop.permute.xlu0 %807
    %809 = vrot.lane.b32.xlu0 %v771, 1
    %v810 = vpop.permute.xlu0 %809
    %811 = vrot.lane.b32.xlu0 %v772, 1
    %v812 = vpop.permute.xlu0 %811
    %813 = vrot.lane.b32.xlu0 %v773, 1
    %v814 = vpop.permute.xlu0 %813
    %815 = vrot.lane.b32.xlu0 %v774, 1
    %v816 = vpop.permute.xlu0 %815
    %817 = vrot.lane.b32.xlu0 %v775, 1
    %v818 = vpop.permute.xlu0 %817
    %819 = vrot.lane.b32.xlu0 %v776, 1
    %v820 = vpop.permute.xlu0 %819
    %821 = vrot.lane.b32.xlu0 %v777, 1
    %v822 = vpop.permute.xlu0 %821
    %823 = vrot.lane.b32.xlu0 %v778, 1
    %v824 = vpop.permute.xlu0 %823
    %825 = vrot.lane.b32.xlu0 %v779, 1
    %v826 = vpop.permute.xlu0 %825
    %827 = vrot.lane.b32.xlu0 %v780, 1
    %v828 = vpop.permute.xlu0 %827
    %v845 = vmul.f32 %v9, %v798
    %v846 = vmul.f32 %v10, %v800
    %v847 = vmul.f32 %v11, %v802
    %v848 = vmul.f32 %v12, %v804
    %v849 = vmul.f32 %v13, %v806
    %v850 = vmul.f32 %v14, %v808
    %v851 = vmul.f32 %v15, %v810
    %v852 = vmul.f32 %v16, %v812
    %v853 = vmul.f32 %v17, %v814
    %v854 = vmul.f32 %v18, %v816
    %v855 = vmul.f32 %v19, %v818
    %v856 = vmul.f32 %v20, %v820
    %v857 = vmul.f32 %v21, %v822
    %v858 = vmul.f32 %v22, %v824
    %v859 = vmul.f32 %v23, %v826
    %v860 = vmul.f32 %v24, %v828
    %861 = vrot.lane.b32.xlu0 %v9, 127
    %v862 = vpop.permute.xlu0 %861
    %863 = vrot.lane.b32.xlu0 %v10, 127
    %v864 = vpop.permute.xlu0 %863
    %865 = vrot.lane.b32.xlu0 %v11, 127
    %v866 = vpop.permute.xlu0 %865
    %867 = vrot.lane.b32.xlu0 %v12, 127
    %v868 = vpop.permute.xlu0 %867
    %869 = vrot.lane.b32.xlu0 %v13, 127
    %v870 = vpop.permute.xlu0 %869
    %871 = vrot.lane.b32.xlu0 %v14, 127
    %v872 = vpop.permute.xlu0 %871
    %873 = vrot.lane.b32.xlu0 %v15, 127
    %v874 = vpop.permute.xlu0 %873
    %875 = vrot.lane.b32.xlu0 %v16, 127
    %v876 = vpop.permute.xlu0 %875
    %877 = vrot.lane.b32.xlu0 %v17, 127
    %v878 = vpop.permute.xlu0 %877
    %879 = vrot.lane.b32.xlu0 %v18, 127
    %v880 = vpop.permute.xlu0 %879
    %881 = vrot.lane.b32.xlu0 %v19, 127
    %v882 = vpop.permute.xlu0 %881
    %883 = vrot.lane.b32.xlu0 %v20, 127
    %v884 = vpop.permute.xlu0 %883
    %885 = vrot.lane.b32.xlu0 %v21, 127
    %v886 = vpop.permute.xlu0 %885
    %887 = vrot.lane.b32.xlu0 %v22, 127
    %v888 = vpop.permute.xlu0 %887
    %889 = vrot.lane.b32.xlu0 %v23, 127
    %v890 = vpop.permute.xlu0 %889
    %891 = vrot.lane.b32.xlu0 %v24, 127
    %v892 = vpop.permute.xlu0 %891
    %v909 = vsub.f32 %v9, %v862
    %v910 = vsub.f32 %v10, %v864
    %v911 = vsub.f32 %v11, %v866
    %v912 = vsub.f32 %v12, %v868
    %v913 = vsub.f32 %v13, %v870
    %v914 = vsub.f32 %v14, %v872
    %v915 = vsub.f32 %v15, %v874
    %v916 = vsub.f32 %v16, %v876
    %v917 = vsub.f32 %v17, %v878
    %v918 = vsub.f32 %v18, %v880
    %v919 = vsub.f32 %v19, %v882
    %v920 = vsub.f32 %v20, %v884
    %v921 = vsub.f32 %v21, %v886
    %v922 = vsub.f32 %v22, %v888
    %v923 = vsub.f32 %v23, %v890
    %v924 = vsub.f32 %v24, %v892
    %941 = vrot.lane.b32.xlu0 %v909, 2
    %v942 = vpop.permute.xlu0 %941
    %943 = vrot.lane.b32.xlu0 %v910, 2
    %v944 = vpop.permute.xlu0 %943
    %945 = vrot.lane.b32.xlu0 %v911, 2
    %v946 = vpop.permute.xlu0 %945
    %947 = vrot.lane.b32.xlu0 %v912, 2
    %v948 = vpop.permute.xlu0 %947
    %949 = vrot.lane.b32.xlu0 %v913, 2
    %v950 = vpop.permute.xlu0 %949
    %951 = vrot.lane.b32.xlu0 %v914, 2
    %v952 = vpop.permute.xlu0 %951
    %953 = vrot.lane.b32.xlu0 %v915, 2
    %v954 = vpop.permute.xlu0 %953
    %955 = vrot.lane.b32.xlu0 %v916, 2
    %v956 = vpop.permute.xlu0 %955
    %957 = vrot.lane.b32.xlu0 %v917, 2
    %v958 = vpop.permute.xlu0 %957
    %959 = vrot.lane.b32.xlu0 %v918, 2
    %v960 = vpop.permute.xlu0 %959
    %961 = vrot.lane.b32.xlu0 %v919, 2
    %v962 = vpop.permute.xlu0 %961
    %963 = vrot.lane.b32.xlu0 %v920, 2
    %v964 = vpop.permute.xlu0 %963
    %965 = vrot.lane.b32.xlu0 %v921, 2
    %v966 = vpop.permute.xlu0 %965
    %967 = vrot.lane.b32.xlu0 %v922, 2
    %v968 = vpop.permute.xlu0 %967
    %969 = vrot.lane.b32.xlu0 %v923, 2
    %v970 = vpop.permute.xlu0 %969
    %971 = vrot.lane.b32.xlu0 %v924, 2
    %v972 = vpop.permute.xlu0 %971
    %v989 = vmul.f32 %v9, %v942
    %v990 = vmul.f32 %v10, %v944
    %v991 = vmul.f32 %v11, %v946
    %v992 = vmul.f32 %v12, %v948
    %v993 = vmul.f32 %v13, %v950
    %v994 = vmul.f32 %v14, %v952
    %v995 = vmul.f32 %v15, %v954
    %v996 = vmul.f32 %v16, %v956
    %v997 = vmul.f32 %v17, %v958
    %v998 = vmul.f32 %v18, %v960
    %v999 = vmul.f32 %v19, %v962
    %v1000 = vmul.f32 %v20, %v964
    %v1001 = vmul.f32 %v21, %v966
    %v1002 = vmul.f32 %v22, %v968
    %v1003 = vmul.f32 %v23, %v970
    %v1004 = vmul.f32 %v24, %v972
    %v1005 = vmul.f32 %v989, %v942
    %v1006 = vmul.f32 %v990, %v944
    %v1007 = vmul.f32 %v991, %v946
    %v1008 = vmul.f32 %v992, %v948
    %v1009 = vmul.f32 %v993, %v950
    %v1010 = vmul.f32 %v994, %v952
    %v1011 = vmul.f32 %v995, %v954
    %v1012 = vmul.f32 %v996, %v956
    %v1013 = vmul.f32 %v997, %v958
    %v1014 = vmul.f32 %v998, %v960
    %v1015 = vmul.f32 %v999, %v962
    %v1016 = vmul.f32 %v1000, %v964
    %v1017 = vmul.f32 %v1001, %v966
    %v1018 = vmul.f32 %v1002, %v968
    %v1019 = vmul.f32 %v1003, %v970
    %v1020 = vmul.f32 %v1004, %v972
    %vm1021 = vcmp.gt.f32.partialorder %v9, 0.0
    %vm1022 = vcmp.gt.f32.partialorder %v10, 0.0
    %vm1023 = vcmp.gt.f32.partialorder %v11, 0.0
    %vm1024 = vcmp.gt.f32.partialorder %v12, 0.0
    %vm1025 = vcmp.gt.f32.partialorder %v13, 0.0
    %vm1026 = vcmp.gt.f32.partialorder %v14, 0.0
    %vm1027 = vcmp.gt.f32.partialorder %v15, 0.0
    %vm1028 = vcmp.gt.f32.partialorder %v16, 0.0
    %vm1029 = vcmp.gt.f32.partialorder %v17, 0.0
    %vm1030 = vcmp.gt.f32.partialorder %v18, 0.0
    %vm1031 = vcmp.gt.f32.partialorder %v19, 0.0
    %vm1032 = vcmp.gt.f32.partialorder %v20, 0.0
    %vm1033 = vcmp.gt.f32.partialorder %v21, 0.0
    %vm1034 = vcmp.gt.f32.partialorder %v22, 0.0
    %vm1035 = vcmp.gt.f32.partialorder %v23, 0.0
    %vm1036 = vcmp.gt.f32.partialorder %v24, 0.0
    %vm1037 = vcmp.ne.f32.partialorder %v9, 0.0
    %vm1038 = vcmp.ne.f32.partialorder %v10, 0.0
    %vm1039 = vcmp.ne.f32.partialorder %v11, 0.0
    %vm1040 = vcmp.ne.f32.partialorder %v12, 0.0
    %vm1041 = vcmp.ne.f32.partialorder %v13, 0.0
    %vm1042 = vcmp.ne.f32.partialorder %v14, 0.0
    %vm1043 = vcmp.ne.f32.partialorder %v15, 0.0
    %vm1044 = vcmp.ne.f32.partialorder %v16, 0.0
    %vm1045 = vcmp.ne.f32.partialorder %v17, 0.0
    %vm1046 = vcmp.ne.f32.partialorder %v18, 0.0
    %vm1047 = vcmp.ne.f32.partialorder %v19, 0.0
    %vm1048 = vcmp.ne.f32.partialorder %v20, 0.0
    %vm1049 = vcmp.ne.f32.partialorder %v21, 0.0
    %vm1050 = vcmp.ne.f32.partialorder %v22, 0.0
    %vm1051 = vcmp.ne.f32.partialorder %v23, 0.0
    %vm1052 = vcmp.ne.f32.partialorder %v24, 0.0
    %v1053 = vsel %vm1037, 1, 0
    %v1054 = vsel %vm1038, 1, 0
    %v1055 = vsel %vm1039, 1, 0
    %v1056 = vsel %vm1040, 1, 0
    %v1057 = vsel %vm1041, 1, 0
    %v1058 = vsel %vm1042, 1, 0
    %v1059 = vsel %vm1043, 1, 0
    %v1060 = vsel %vm1044, 1, 0
    %v1061 = vsel %vm1045, 1, 0
    %v1062 = vsel %vm1046, 1, 0
    %v1063 = vsel %vm1047, 1, 0
    %v1064 = vsel %vm1048, 1, 0
    %v1065 = vsel %vm1049, 1, 0
    %v1066 = vsel %vm1050, 1, 0
    %v1067 = vsel %vm1051, 1, 0
    %v1068 = vsel %vm1052, 1, 0
    %1069 = vrot.lane.b32.xlu0 %v1053, 1
    %v1070 = vpop.permute.xlu0 %1069
    %1071 = vrot.lane.b32.xlu0 %v1054, 1
    %v1072 = vpop.permute.xlu0 %1071
    %1073 = vrot.lane.b32.xlu0 %v1055, 1
    %v1074 = vpop.permute.xlu0 %1073
    %1075 = vrot.lane.b32.xlu0 %v1056, 1
    %v1076 = vpop.permute.xlu0 %1075
    %1077 = vrot.lane.b32.xlu0 %v1057, 1
    %v1078 = vpop.permute.xlu0 %1077
    %1079 = vrot.lane.b32.xlu0 %v1058, 1
    %v1080 = vpop.permute.xlu0 %1079
    %1081 = vrot.lane.b32.xlu0 %v1059, 1
    %v1082 = vpop.permute.xlu0 %1081
    %1083 = vrot.lane.b32.xlu0 %v1060, 1
    %v1084 = vpop.permute.xlu0 %1083
    %1085 = vrot.lane.b32.xlu0 %v1061, 1
    %v1086 = vpop.permute.xlu0 %1085
    %1087 = vrot.lane.b32.xlu0 %v1062, 1
    %v1088 = vpop.permute.xlu0 %1087
    %1089 = vrot.lane.b32.xlu0 %v1063, 1
    %v1090 = vpop.permute.xlu0 %1089
    %1091 = vrot.lane.b32.xlu0 %v1064, 1
    %v1092 = vpop.permute.xlu0 %1091
    %1093 = vrot.lane.b32.xlu0 %v1065, 1
    %v1094 = vpop.permute.xlu0 %1093
    %1095 = vrot.lane.b32.xlu0 %v1066, 1
    %v1096 = vpop.permute.xlu0 %1095
    %1097 = vrot.lane.b32.xlu0 %v1067, 1
    %v1098 = vpop.permute.xlu0 %1097
    %1099 = vrot.lane.b32.xlu0 %v1068, 1
    %v1100 = vpop.permute.xlu0 %1099
    %vm1101 = vcmp.ne.s32.totalorder %v1070, 0
    %vm1102 = vcmp.ne.s32.totalorder %v1072, 0
    %vm1103 = vcmp.ne.s32.totalorder %v1074, 0
    %vm1104 = vcmp.ne.s32.totalorder %v1076, 0
    %vm1105 = vcmp.ne.s32.totalorder %v1078, 0
    %vm1106 = vcmp.ne.s32.totalorder %v1080, 0
    %vm1107 = vcmp.ne.s32.totalorder %v1082, 0
    %vm1108 = vcmp.ne.s32.totalorder %v1084, 0
    %vm1109 = vcmp.ne.s32.totalorder %v1086, 0
    %vm1110 = vcmp.ne.s32.totalorder %v1088, 0
    %vm1111 = vcmp.ne.s32.totalorder %v1090, 0
    %vm1112 = vcmp.ne.s32.totalorder %v1092, 0
    %vm1113 = vcmp.ne.s32.totalorder %v1094, 0
    %vm1114 = vcmp.ne.s32.totalorder %v1096, 0
    %vm1115 = vcmp.ne.s32.totalorder %v1098, 0
    %vm1116 = vcmp.ne.s32.totalorder %v1100, 0
    %vm1117 = vmand %vm1021, %vm1101
    %vm1118 = vmand %vm1022, %vm1102
    %vm1119 = vmand %vm1023, %vm1103
    %vm1120 = vmand %vm1024, %vm1104
    %vm1121 = vmand %vm1025, %vm1105
    %vm1122 = vmand %vm1026, %vm1106
    %vm1123 = vmand %vm1027, %vm1107
    %vm1124 = vmand %vm1028, %vm1108
    %vm1125 = vmand %vm1029, %vm1109
    %vm1126 = vmand %vm1030, %vm1110
    %vm1127 = vmand %vm1031, %vm1111
    %vm1128 = vmand %vm1032, %vm1112
    %vm1129 = vmand %vm1033, %vm1113
    %vm1130 = vmand %vm1034, %vm1114
    %vm1131 = vmand %vm1035, %vm1115
    %vm1132 = vmand %vm1036, %vm1116
    %1133 = vrot.lane.b32.xlu0 %v9, 1
    %v1134 = vpop.permute.xlu0 %1133
    %1135 = vrot.lane.b32.xlu0 %v10, 1
    %v1136 = vpop.permute.xlu0 %1135
    %1137 = vrot.lane.b32.xlu0 %v11, 1
    %v1138 = vpop.permute.xlu0 %1137
    %1139 = vrot.lane.b32.xlu0 %v12, 1
    %v1140 = vpop.permute.xlu0 %1139
    %1141 = vrot.lane.b32.xlu0 %v13, 1
    %v1142 = vpop.permute.xlu0 %1141
    %1143 = vrot.lane.b32.xlu0 %v14, 1
    %v1144 = vpop.permute.xlu0 %1143
    %1145 = vrot.lane.b32.xlu0 %v15, 1
    %v1146 = vpop.permute.xlu0 %1145
    %1147 = vrot.lane.b32.xlu0 %v16, 1
    %v1148 = vpop.permute.xlu0 %1147
    %1149 = vrot.lane.b32.xlu0 %v17, 1
    %v1150 = vpop.permute.xlu0 %1149
    %1151 = vrot.lane.b32.xlu0 %v18, 1
    %v1152 = vpop.permute.xlu0 %1151
    %1153 = vrot.lane.b32.xlu0 %v19, 1
    %v1154 = vpop.permute.xlu0 %1153
    %1155 = vrot.lane.b32.xlu0 %v20, 1
    %v1156 = vpop.permute.xlu0 %1155
    %1157 = vrot.lane.b32.xlu0 %v21, 1
    %v1158 = vpop.permute.xlu0 %1157
    %1159 = vrot.lane.b32.xlu0 %v22, 1
    %v1160 = vpop.permute.xlu0 %1159
    %1161 = vrot.lane.b32.xlu0 %v23, 1
    %v1162 = vpop.permute.xlu0 %1161
    %1163 = vrot.lane.b32.xlu0 %v24, 1
    %v1164 = vpop.permute.xlu0 %1163
    %v1181 = vsel %vm1117, %v1134, 1.0
    %v1182 = vsel %vm1118, %v1136, 1.0
    %v1183 = vsel %vm1119, %v1138, 1.0
    %v1184 = vsel %vm1120, %v1140, 1.0
    %v1185 = vsel %vm1121, %v1142, 1.0
    %v1186 = vsel %vm1122, %v1144, 1.0
    %v1187 = vsel %vm1123, %v1146, 1.0
    %v1188 = vsel %vm1124, %v1148, 1.0
    %v1189 = vsel %vm1125, %v1150, 1.0
    %v1190 = vsel %vm1126, %v1152, 1.0
    %v1191 = vsel %vm1127, %v1154, 1.0
    %v1192 = vsel %vm1128, %v1156, 1.0
    %v1193 = vsel %vm1129, %v1158, 1.0
    %v1194 = vsel %vm1130, %v1160, 1.0
    %v1195 = vsel %vm1131, %v1162, 1.0
    %v1196 = vsel %vm1132, %v1164, 1.0
    %v1197 = vand.u32 2147483647, %v909
    %v1198 = vand.u32 2147483647, %v910
    %v1199 = vand.u32 2147483647, %v911
    %v1200 = vand.u32 2147483647, %v912
    %v1201 = vand.u32 2147483647, %v913
    %v1202 = vand.u32 2147483647, %v914
    %v1203 = vand.u32 2147483647, %v915
    %v1204 = vand.u32 2147483647, %v916
    %v1205 = vand.u32 2147483647, %v917
    %v1206 = vand.u32 2147483647, %v918
    %v1207 = vand.u32 2147483647, %v919
    %v1208 = vand.u32 2147483647, %v920
    %v1209 = vand.u32 2147483647, %v921
    %v1210 = vand.u32 2147483647, %v922
    %v1211 = vand.u32 2147483647, %v923
    %v1212 = vand.u32 2147483647, %v924
    %v1213 = vrcp.pop %v1181
    %v1214 = vrcp.pop %v1182
    %v1215 = vrcp.pop %v1183
    %v1216 = vrcp.pop %v1184
    %v1217 = vrcp.pop %v1185
    %v1218 = vrcp.pop %v1186
    %v1219 = vrcp.pop %v1187
    %v1220 = vrcp.pop %v1188
    %v1221 = vrcp.pop %v1189
    %v1222 = vrcp.pop %v1190
    %v1223 = vrcp.pop %v1191
    %v1224 = vrcp.pop %v1192
    %v1225 = vrcp.pop %v1193
    %v1226 = vrcp.pop %v1194
    %v1227 = vrcp.pop %v1195
    %v1228 = vrcp.pop %v1196
    %1245 = vrot.lane.b32.xlu0 %v1213, 126
    %v1246 = vpop.permute.xlu0 %1245
    %1247 = vrot.lane.b32.xlu0 %v1214, 126
    %v1248 = vpop.permute.xlu0 %1247
    %1249 = vrot.lane.b32.xlu0 %v1215, 126
    %v1250 = vpop.permute.xlu0 %1249
    %1251 = vrot.lane.b32.xlu0 %v1216, 126
    %v1252 = vpop.permute.xlu0 %1251
    %1253 = vrot.lane.b32.xlu0 %v1217, 126
    %v1254 = vpop.permute.xlu0 %1253
    %1255 = vrot.lane.b32.xlu0 %v1218, 126
    %v1256 = vpop.permute.xlu0 %1255
    %1257 = vrot.lane.b32.xlu0 %v1219, 126
    %v1258 = vpop.permute.xlu0 %1257
    %1259 = vrot.lane.b32.xlu0 %v1220, 126
    %v1260 = vpop.permute.xlu0 %1259
    %1261 = vrot.lane.b32.xlu0 %v1221, 126
    %v1262 = vpop.permute.xlu0 %1261
    %1263 = vrot.lane.b32.xlu0 %v1222, 126
    %v1264 = vpop.permute.xlu0 %1263
    %1265 = vrot.lane.b32.xlu0 %v1223, 126
    %v1266 = vpop.permute.xlu0 %1265
    %1267 = vrot.lane.b32.xlu0 %v1224, 126
    %v1268 = vpop.permute.xlu0 %1267
    %1269 = vrot.lane.b32.xlu0 %v1225, 126
    %v1270 = vpop.permute.xlu0 %1269
    %1271 = vrot.lane.b32.xlu0 %v1226, 126
    %v1272 = vpop.permute.xlu0 %1271
    %1273 = vrot.lane.b32.xlu0 %v1227, 126
    %v1274 = vpop.permute.xlu0 %1273
    %1275 = vrot.lane.b32.xlu0 %v1228, 126
    %v1276 = vpop.permute.xlu0 %1275
    %v1293 = vmul.f32 %v1197, %v1246
    %v1294 = vmul.f32 %v1198, %v1248
    %v1295 = vmul.f32 %v1199, %v1250
    %v1296 = vmul.f32 %v1200, %v1252
    %v1297 = vmul.f32 %v1201, %v1254
    %v1298 = vmul.f32 %v1202, %v1256
    %v1299 = vmul.f32 %v1203, %v1258
    %v1300 = vmul.f32 %v1204, %v1260
    %v1301 = vmul.f32 %v1205, %v1262
    %v1302 = vmul.f32 %v1206, %v1264
    %v1303 = vmul.f32 %v1207, %v1266
    %v1304 = vmul.f32 %v1208, %v1268
    %v1305 = vmul.f32 %v1209, %v1270
    %v1306 = vmul.f32 %v1210, %v1272
    %v1307 = vmul.f32 %v1211, %v1274
    %v1308 = vmul.f32 %v1212, %v1276
    %v1309 = vsub.f32 1.0, %v1293
    %v1310 = vsub.f32 1.0, %v1294
    %v1311 = vsub.f32 1.0, %v1295
    %v1312 = vsub.f32 1.0, %v1296
    %v1313 = vsub.f32 1.0, %v1297
    %v1314 = vsub.f32 1.0, %v1298
    %v1315 = vsub.f32 1.0, %v1299
    %v1316 = vsub.f32 1.0, %v1300
    %v1317 = vsub.f32 1.0, %v1301
    %v1318 = vsub.f32 1.0, %v1302
    %v1319 = vsub.f32 1.0, %v1303
    %v1320 = vsub.f32 1.0, %v1304
    %v1321 = vsub.f32 1.0, %v1305
    %v1322 = vsub.f32 1.0, %v1306
    %v1323 = vsub.f32 1.0, %v1307
    %v1324 = vsub.f32 1.0, %v1308
    %1341 = vrot.lane.b32.xlu0 %v1309, 2
    %v1342 = vpop.permute.xlu0 %1341
    %1343 = vrot.lane.b32.xlu0 %v1310, 2
    %v1344 = vpop.permute.xlu0 %1343
    %1345 = vrot.lane.b32.xlu0 %v1311, 2
    %v1346 = vpop.permute.xlu0 %1345
    %1347 = vrot.lane.b32.xlu0 %v1312, 2
    %v1348 = vpop.permute.xlu0 %1347
    %1349 = vrot.lane.b32.xlu0 %v1313, 2
    %v1350 = vpop.permute.xlu0 %1349
    %1351 = vrot.lane.b32.xlu0 %v1314, 2
    %v1352 = vpop.permute.xlu0 %1351
    %1353 = vrot.lane.b32.xlu0 %v1315, 2
    %v1354 = vpop.permute.xlu0 %1353
    %1355 = vrot.lane.b32.xlu0 %v1316, 2
    %v1356 = vpop.permute.xlu0 %1355
    %1357 = vrot.lane.b32.xlu0 %v1317, 2
    %v1358 = vpop.permute.xlu0 %1357
    %1359 = vrot.lane.b32.xlu0 %v1318, 2
    %v1360 = vpop.permute.xlu0 %1359
    %1361 = vrot.lane.b32.xlu0 %v1319, 2
    %v1362 = vpop.permute.xlu0 %1361
    %1363 = vrot.lane.b32.xlu0 %v1320, 2
    %v1364 = vpop.permute.xlu0 %1363
    %1365 = vrot.lane.b32.xlu0 %v1321, 2
    %v1366 = vpop.permute.xlu0 %1365
    %1367 = vrot.lane.b32.xlu0 %v1322, 2
    %v1368 = vpop.permute.xlu0 %1367
    %1369 = vrot.lane.b32.xlu0 %v1323, 2
    %v1370 = vpop.permute.xlu0 %1369
    %1371 = vrot.lane.b32.xlu0 %v1324, 2
    %v1372 = vpop.permute.xlu0 %1371
    %v1389 = vmul.f32 %v9, %v1342
    %v1390 = vmul.f32 %v10, %v1344
    %v1391 = vmul.f32 %v11, %v1346
    %v1392 = vmul.f32 %v12, %v1348
    %v1393 = vmul.f32 %v13, %v1350
    %v1394 = vmul.f32 %v14, %v1352
    %v1395 = vmul.f32 %v15, %v1354
    %v1396 = vmul.f32 %v16, %v1356
    %v1397 = vmul.f32 %v17, %v1358
    %v1398 = vmul.f32 %v18, %v1360
    %v1399 = vmul.f32 %v19, %v1362
    %v1400 = vmul.f32 %v20, %v1364
    %v1401 = vmul.f32 %v21, %v1366
    %v1402 = vmul.f32 %v22, %v1368
    %v1403 = vmul.f32 %v23, %v1370
    %v1404 = vmul.f32 %v24, %v1372
    %1405 = vset.pattern.permute.xlu0 15
    %1406 = vperm.xlu0 %1405, %v9
    %v1407 = vpop.permute.xlu0 %1406
    %1409 = vset.pattern.permute.xlu0 15
    %1410 = vperm.xlu0 %1409, %v10
    %v1411 = vpop.permute.xlu0 %1410
    %1413 = vset.pattern.permute.xlu0 15
    %1414 = vperm.xlu0 %1413, %v11
    %v1415 = vpop.permute.xlu0 %1414
    %1417 = vset.pattern.permute.xlu0 15
    %1418 = vperm.xlu0 %1417, %v12
    %v1419 = vpop.permute.xlu0 %1418
    %1421 = vset.pattern.permute.xlu0 15
    %1422 = vperm.xlu0 %1421, %v13
    %v1423 = vpop.permute.xlu0 %1422
    %1425 = vset.pattern.permute.xlu0 15
    %1426 = vperm.xlu0 %1425, %v14
    %v1427 = vpop.permute.xlu0 %1426
    %1429 = vset.pattern.permute.xlu0 15
    %1430 = vperm.xlu0 %1429, %v15
    %v1431 = vpop.permute.xlu0 %1430
    %1433 = vset.pattern.permute.xlu0 15
    %1434 = vperm.xlu0 %1433, %v16
    %v1435 = vpop.permute.xlu0 %1434
    %1437 = vset.pattern.permute.xlu0 15
    %1438 = vperm.xlu0 %1437, %v17
    %v1439 = vpop.permute.xlu0 %1438
    %1441 = vset.pattern.permute.xlu0 15
    %1442 = vperm.xlu0 %1441, %v18
    %v1443 = vpop.permute.xlu0 %1442
    %1445 = vset.pattern.permute.xlu0 15
    %1446 = vperm.xlu0 %1445, %v19
    %v1447 = vpop.permute.xlu0 %1446
    %1449 = vset.pattern.permute.xlu0 15
    %1450 = vperm.xlu0 %1449, %v20
    %v1451 = vpop.permute.xlu0 %1450
    %1453 = vset.pattern.permute.xlu0 15
    %1454 = vperm.xlu0 %1453, %v21
    %v1455 = vpop.permute.xlu0 %1454
    %1457 = vset.pattern.permute.xlu0 15
    %1458 = vperm.xlu0 %1457, %v22
    %v1459 = vpop.permute.xlu0 %1458
    %1461 = vset.pattern.permute.xlu0 15
    %1462 = vperm.xlu0 %1461, %v23
    %v1463 = vpop.permute.xlu0 %1462
    %1465 = vset.pattern.permute.xlu0 15
    %1466 = vperm.xlu0 %1465, %v24
    %v1467 = vpop.permute.xlu0 %1466
    %vm1469 = vcmp.eq.f32.partialorder %v27, %v1407
    %vm1470 = vcmp.eq.f32.partialorder %v27, %v1411
    %vm1471 = vcmp.eq.f32.partialorder %v27, %v1415
    %vm1472 = vcmp.eq.f32.partialorder %v27, %v1419
    %vm1473 = vcmp.eq.f32.partialorder %v27, %v1423
    %vm1474 = vcmp.eq.f32.partialorder %v27, %v1427
    %vm1475 = vcmp.eq.f32.partialorder %v27, %v1431
    %vm1476 = vcmp.eq.f32.partialorder %v27, %v1435
    %vm1477 = vcmp.eq.f32.partialorder %v27, %v1439
    %vm1478 = vcmp.eq.f32.partialorder %v27, %v1443
    %vm1479 = vcmp.eq.f32.partialorder %v27, %v1447
    %vm1480 = vcmp.eq.f32.partialorder %v27, %v1451
    %vm1481 = vcmp.eq.f32.partialorder %v27, %v1455
    %vm1482 = vcmp.eq.f32.partialorder %v27, %v1459
    %vm1483 = vcmp.eq.f32.partialorder %v27, %v1463
    %vm1484 = vcmp.eq.f32.partialorder %v27, %v1467
    %v1485 = vsel %vm1469, 1, 0
    %v1486 = vsel %vm1470, 1, 0
    %v1487 = vsel %vm1471, 1, 0
    %v1488 = vsel %vm1472, 1, 0
    %v1489 = vsel %vm1473, 1, 0
    %v1490 = vsel %vm1474, 1, 0
    %v1491 = vsel %vm1475, 1, 0
    %v1492 = vsel %vm1476, 1, 0
    %v1493 = vsel %vm1477, 1, 0
    %v1494 = vsel %vm1478, 1, 0
    %v1495 = vsel %vm1479, 1, 0
    %v1496 = vsel %vm1480, 1, 0
    %v1497 = vsel %vm1481, 1, 0
    %v1498 = vsel %vm1482, 1, 0
    %v1499 = vsel %vm1483, 1, 0
    %v1500 = vsel %vm1484, 1, 0
    %v1501 = vcvt.s32.f32 %v1485
    %v1502 = vcvt.s32.f32 %v1486
    %v1503 = vcvt.s32.f32 %v1487
    %v1504 = vcvt.s32.f32 %v1488
    %v1505 = vcvt.s32.f32 %v1489
    %v1506 = vcvt.s32.f32 %v1490
    %v1507 = vcvt.s32.f32 %v1491
    %v1508 = vcvt.s32.f32 %v1492
    %v1509 = vcvt.s32.f32 %v1493
    %v1510 = vcvt.s32.f32 %v1494
    %v1511 = vcvt.s32.f32 %v1495
    %v1512 = vcvt.s32.f32 %v1496
    %v1513 = vcvt.s32.f32 %v1497
    %v1514 = vcvt.s32.f32 %v1498
    %v1515 = vcvt.s32.f32 %v1499
    %v1516 = vcvt.s32.f32 %v1500
    %vm1517 = vcmask 121960
    %v1518 = vsel %vm1517, %v9, -inf
    %1519 = vmax.xlane.f32.xlu0 %v1518
    %v1520 = vpop.xlane.xlu0 %1519
    %v1521 = vsel %vm1517, %v10, -inf
    %1522 = vmax.xlane.f32.xlu0 %v1521
    %v1523 = vpop.xlane.xlu0 %1522
    %v1524 = vsel %vm1517, %v11, -inf
    %1525 = vmax.xlane.f32.xlu0 %v1524
    %v1526 = vpop.xlane.xlu0 %1525
    %v1527 = vsel %vm1517, %v12, -inf
    %1528 = vmax.xlane.f32.xlu0 %v1527
    %v1529 = vpop.xlane.xlu0 %1528
    %v1530 = vsel %vm1517, %v13, -inf
    %1531 = vmax.xlane.f32.xlu0 %v1530
    %v1532 = vpop.xlane.xlu0 %1531
    %v1533 = vsel %vm1517, %v14, -inf
    %1534 = vmax.xlane.f32.xlu0 %v1533
    %v1535 = vpop.xlane.xlu0 %1534
    %v1536 = vsel %vm1517, %v15, -inf
    %1537 = vmax.xlane.f32.xlu0 %v1536
    %v1538 = vpop.xlane.xlu0 %1537
    %v1539 = vsel %vm1517, %v16, -inf
    %1540 = vmax.xlane.f32.xlu0 %v1539
    %v1541 = vpop.xlane.xlu0 %1540
    %v1542 = vsel %vm1517, %v17, -inf
    %1543 = vmax.xlane.f32.xlu0 %v1542
    %v1544 = vpop.xlane.xlu0 %1543
    %v1545 = vsel %vm1517, %v18, -inf
    %1546 = vmax.xlane.f32.xlu0 %v1545
    %v1547 = vpop.xlane.xlu0 %1546
    %v1548 = vsel %vm1517, %v19, -inf
    %1549 = vmax.xlane.f32.xlu0 %v1548
    %v1550 = vpop.xlane.xlu0 %1549
    %v1551 = vsel %vm1517, %v20, -inf
    %1552 = vmax.xlane.f32.xlu0 %v1551
    %v1553 = vpop.xlane.xlu0 %1552
    %v1554 = vsel %vm1517, %v21, -inf
    %1555 = vmax.xlane.f32.xlu0 %v1554
    %v1556 = vpop.xlane.xlu0 %1555
    %v1557 = vsel %vm1517, %v22, -inf
    %1558 = vmax.xlane.f32.xlu0 %v1557
    %v1559 = vpop.xlane.xlu0 %1558
    %v1560 = vsel %vm1517, %v23, -inf
    %1561 = vmax.xlane.f32.xlu0 %v1560
    %v1562 = vpop.xlane.xlu0 %1561
    %v1563 = vsel %vm1517, %v24, -inf
    %1564 = vmax.xlane.f32.xlu0 %v1563
    %v1565 = vpop.xlane.xlu0 %1564
    %v1566 = vsub.f32 %v9, %v1520
    %v1567 = vsub.f32 %v10, %v1523
    %v1568 = vsub.f32 %v11, %v1526
    %v1569 = vsub.f32 %v12, %v1529
    %v1570 = vsub.f32 %v13, %v1532
    %v1571 = vsub.f32 %v14, %v1535
    %v1572 = vsub.f32 %v15, %v1538
    %v1573 = vsub.f32 %v16, %v1541
    %v1574 = vsub.f32 %v17, %v1544
    %v1575 = vsub.f32 %v18, %v1547
    %v1576 = vsub.f32 %v19, %v1550
    %v1577 = vsub.f32 %v20, %v1553
    %v1578 = vsub.f32 %v21, %v1556
    %v1579 = vsub.f32 %v22, %v1559
    %v1580 = vsub.f32 %v23, %v1562
    %v1581 = vsub.f32 %v24, %v1565
    %v1582 = vmul.f32 %v1566, 1.442695
    %v1583 = vpow.pop %v1582
    %v1584 = vmul.f32 %v1567, 1.442695
    %v1585 = vpow.pop %v1584
    %v1586 = vmul.f32 %v1568, 1.442695
    %v1587 = vpow.pop %v1586
    %v1588 = vmul.f32 %v1569, 1.442695
    %v1589 = vpow.pop %v1588
    %v1590 = vmul.f32 %v1570, 1.442695
    %v1591 = vpow.pop %v1590
    %v1592 = vmul.f32 %v1571, 1.442695
    %v1593 = vpow.pop %v1592
    %v1594 = vmul.f32 %v1572, 1.442695
    %v1595 = vpow.pop %v1594
    %v1596 = vmul.f32 %v1573, 1.442695
    %v1597 = vpow.pop %v1596
    %v1598 = vmul.f32 %v1574, 1.442695
    %v1599 = vpow.pop %v1598
    %v1600 = vmul.f32 %v1575, 1.442695
    %v1601 = vpow.pop %v1600
    %v1602 = vmul.f32 %v1576, 1.442695
    %v1603 = vpow.pop %v1602
    %v1604 = vmul.f32 %v1577, 1.442695
    %v1605 = vpow.pop %v1604
    %v1606 = vmul.f32 %v1578, 1.442695
    %v1607 = vpow.pop %v1606
    %v1608 = vmul.f32 %v1579, 1.442695
    %v1609 = vpow.pop %v1608
    %v1610 = vmul.f32 %v1580, 1.442695
    %v1611 = vpow.pop %v1610
    %v1612 = vmul.f32 %v1581, 1.442695
    %v1613 = vpow.pop %v1612
    %1630 = vrot.lane.b32.xlu0 %v1583, 115
    %v1631 = vpop.permute.xlu0 %1630
    %1632 = vrot.lane.b32.xlu0 %v1585, 115
    %v1633 = vpop.permute.xlu0 %1632
    %1634 = vrot.lane.b32.xlu0 %v1587, 115
    %v1635 = vpop.permute.xlu0 %1634
    %1636 = vrot.lane.b32.xlu0 %v1589, 115
    %v1637 = vpop.permute.xlu0 %1636
    %1638 = vrot.lane.b32.xlu0 %v1591, 115
    %v1639 = vpop.permute.xlu0 %1638
    %1640 = vrot.lane.b32.xlu0 %v1593, 115
    %v1641 = vpop.permute.xlu0 %1640
    %1642 = vrot.lane.b32.xlu0 %v1595, 115
    %v1643 = vpop.permute.xlu0 %1642
    %1644 = vrot.lane.b32.xlu0 %v1597, 115
    %v1645 = vpop.permute.xlu0 %1644
    %1646 = vrot.lane.b32.xlu0 %v1599, 115
    %v1647 = vpop.permute.xlu0 %1646
    %1648 = vrot.lane.b32.xlu0 %v1601, 115
    %v1649 = vpop.permute.xlu0 %1648
    %1650 = vrot.lane.b32.xlu0 %v1603, 115
    %v1651 = vpop.permute.xlu0 %1650
    %1652 = vrot.lane.b32.xlu0 %v1605, 115
    %v1653 = vpop.permute.xlu0 %1652
    %1654 = vrot.lane.b32.xlu0 %v1607, 115
    %v1655 = vpop.permute.xlu0 %1654
    %1656 = vrot.lane.b32.xlu0 %v1609, 115
    %v1657 = vpop.permute.xlu0 %1656
    %1658 = vrot.lane.b32.xlu0 %v1611, 115
    %v1659 = vpop.permute.xlu0 %1658
    %1660 = vrot.lane.b32.xlu0 %v1613, 115
    %v1661 = vpop.permute.xlu0 %1660
    %vm1678 = vcmask 15360
    %v1679 = vsel %vm1678, %v1631, 0.0
    %1680 = vadd.xlane.f32.xlu0 %v1679
    %v1681 = vpop.xlane.xlu0 %1680
    %v1682 = vsel %vm1678, %v1633, 0.0
    %1683 = vadd.xlane.f32.xlu0 %v1682
    %v1684 = vpop.xlane.xlu0 %1683
    %v1685 = vsel %vm1678, %v1635, 0.0
    %1686 = vadd.xlane.f32.xlu0 %v1685
    %v1687 = vpop.xlane.xlu0 %1686
    %v1688 = vsel %vm1678, %v1637, 0.0
    %1689 = vadd.xlane.f32.xlu0 %v1688
    %v1690 = vpop.xlane.xlu0 %1689
    %v1691 = vsel %vm1678, %v1639, 0.0
    %1692 = vadd.xlane.f32.xlu0 %v1691
    %v1693 = vpop.xlane.xlu0 %1692
    %v1694 = vsel %vm1678, %v1641, 0.0
    %1695 = vadd.xlane.f32.xlu0 %v1694
    %v1696 = vpop.xlane.xlu0 %1695
    %v1697 = vsel %vm1678, %v1643, 0.0
    %1698 = vadd.xlane.f32.xlu0 %v1697
    %v1699 = vpop.xlane.xlu0 %1698
    %v1700 = vsel %vm1678, %v1645, 0.0
    %1701 = vadd.xlane.f32.xlu0 %v1700
    %v1702 = vpop.xlane.xlu0 %1701
    %v1703 = vsel %vm1678, %v1647, 0.0
    %1704 = vadd.xlane.f32.xlu0 %v1703
    %v1705 = vpop.xlane.xlu0 %1704
    %v1706 = vsel %vm1678, %v1649, 0.0
    %1707 = vadd.xlane.f32.xlu0 %v1706
    %v1708 = vpop.xlane.xlu0 %1707
    %v1709 = vsel %vm1678, %v1651, 0.0
    %1710 = vadd.xlane.f32.xlu0 %v1709
    %v1711 = vpop.xlane.xlu0 %1710
    %v1712 = vsel %vm1678, %v1653, 0.0
    %1713 = vadd.xlane.f32.xlu0 %v1712
    %v1714 = vpop.xlane.xlu0 %1713
    %v1715 = vsel %vm1678, %v1655, 0.0
    %1716 = vadd.xlane.f32.xlu0 %v1715
    %v1717 = vpop.xlane.xlu0 %1716
    %v1718 = vsel %vm1678, %v1657, 0.0
    %1719 = vadd.xlane.f32.xlu0 %v1718
    %v1720 = vpop.xlane.xlu0 %1719
    %v1721 = vsel %vm1678, %v1659, 0.0
    %1722 = vadd.xlane.f32.xlu0 %v1721
    %v1723 = vpop.xlane.xlu0 %1722
    %v1724 = vsel %vm1678, %v1661, 0.0
    %1725 = vadd.xlane.f32.xlu0 %v1724
    %v1726 = vpop.xlane.xlu0 %1725
    %v1727 = vlog2.pop %v1681
    %v1728 = vmul.f32 %v1727, 0.6931472
    %v1729 = vlog2.pop %v1684
    %v1730 = vmul.f32 %v1729, 0.6931472
    %v1731 = vlog2.pop %v1687
    %v1732 = vmul.f32 %v1731, 0.6931472
    %v1733 = vlog2.pop %v1690
    %v1734 = vmul.f32 %v1733, 0.6931472
    %v1735 = vlog2.pop %v1693
    %v1736 = vmul.f32 %v1735, 0.6931472
    %v1737 = vlog2.pop %v1696
    %v1738 = vmul.f32 %v1737, 0.6931472
    %v1739 = vlog2.pop %v1699
    %v1740 = vmul.f32 %v1739, 0.6931472
    %v1741 = vlog2.pop %v1702
    %v1742 = vmul.f32 %v1741, 0.6931472
    %v1743 = vlog2.pop %v1705
    %v1744 = vmul.f32 %v1743, 0.6931472
    %v1745 = vlog2.pop %v1708
    %v1746 = vmul.f32 %v1745, 0.6931472
    %v1747 = vlog2.pop %v1711
    %v1748 = vmul.f32 %v1747, 0.6931472
    %v1749 = vlog2.pop %v1714
    %v1750 = vmul.f32 %v1749, 0.6931472
    %v1751 = vlog2.pop %v1717
    %v1752 = vmul.f32 %v1751, 0.6931472
    %v1753 = vlog2.pop %v1720
    %v1754 = vmul.f32 %v1753, 0.6931472
    %v1755 = vlog2.pop %v1723
    %v1756 = vmul.f32 %v1755, 0.6931472
    %v1757 = vlog2.pop %v1726
    %v1758 = vmul.f32 %v1757, 0.6931472
    %v1759 = vadd.f32 %v1520, %v1728
    %v1760 = vadd.f32 %v1523, %v1730
    %v1761 = vadd.f32 %v1526, %v1732
    %v1762 = vadd.f32 %v1529, %v1734
    %v1763 = vadd.f32 %v1532, %v1736
    %v1764 = vadd.f32 %v1535, %v1738
    %v1765 = vadd.f32 %v1538, %v1740
    %v1766 = vadd.f32 %v1541, %v1742
    %v1767 = vadd.f32 %v1544, %v1744
    %v1768 = vadd.f32 %v1547, %v1746
    %v1769 = vadd.f32 %v1550, %v1748
    %v1770 = vadd.f32 %v1553, %v1750
    %v1771 = vadd.f32 %v1556, %v1752
    %v1772 = vadd.f32 %v1559, %v1754
    %v1773 = vadd.f32 %v1562, %v1756
    %v1774 = vadd.f32 %v1565, %v1758
    %1775 = vrot.lane.b32.xlu0 %v9, 115
    %v1776 = vpop.permute.xlu0 %1775
    %1777 = vrot.lane.b32.xlu0 %v10, 115
    %v1778 = vpop.permute.xlu0 %1777
    %1779 = vrot.lane.b32.xlu0 %v11, 115
    %v1780 = vpop.permute.xlu0 %1779
    %1781 = vrot.lane.b32.xlu0 %v12, 115
    %v1782 = vpop.permute.xlu0 %1781
    %1783 = vrot.lane.b32.xlu0 %v13, 115
    %v1784 = vpop.permute.xlu0 %1783
    %1785 = vrot.lane.b32.xlu0 %v14, 115
    %v1786 = vpop.permute.xlu0 %1785
    %1787 = vrot.lane.b32.xlu0 %v15, 115
    %v1788 = vpop.permute.xlu0 %1787
    %1789 = vrot.lane.b32.xlu0 %v16, 115
    %v1790 = vpop.permute.xlu0 %1789
    %1791 = vrot.lane.b32.xlu0 %v17, 115
    %v1792 = vpop.permute.xlu0 %1791
    %1793 = vrot.lane.b32.xlu0 %v18, 115
    %v1794 = vpop.permute.xlu0 %1793
    %1795 = vrot.lane.b32.xlu0 %v19, 115
    %v1796 = vpop.permute.xlu0 %1795
    %1797 = vrot.lane.b32.xlu0 %v20, 115
    %v1798 = vpop.permute.xlu0 %1797
    %1799 = vrot.lane.b32.xlu0 %v21, 115
    %v1800 = vpop.permute.xlu0 %1799
    %1801 = vrot.lane.b32.xlu0 %v22, 115
    %v1802 = vpop.permute.xlu0 %1801
    %1803 = vrot.lane.b32.xlu0 %v23, 115
    %v1804 = vpop.permute.xlu0 %1803
    %1805 = vrot.lane.b32.xlu0 %v24, 115
    %v1806 = vpop.permute.xlu0 %1805
    %v1823 = vmul.f32 %v1501, %v1776
    %v1824 = vmul.f32 %v1502, %v1778
    %v1825 = vmul.f32 %v1503, %v1780
    %v1826 = vmul.f32 %v1504, %v1782
    %v1827 = vmul.f32 %v1505, %v1784
    %v1828 = vmul.f32 %v1506, %v1786
    %v1829 = vmul.f32 %v1507, %v1788
    %v1830 = vmul.f32 %v1508, %v1790
    %v1831 = vmul.f32 %v1509, %v1792
    %v1832 = vmul.f32 %v1510, %v1794
    %v1833 = vmul.f32 %v1511, %v1796
    %v1834 = vmul.f32 %v1512, %v1798
    %v1835 = vmul.f32 %v1513, %v1800
    %v1836 = vmul.f32 %v1514, %v1802
    %v1837 = vmul.f32 %v1515, %v1804
    %v1838 = vmul.f32 %v1516, %v1806
    %v1839 = vsel %vm1678, %v1823, 0.0
    %1840 = vadd.xlane.f32.xlu0 %v1839
    %v1841 = vpop.xlane.xlu0 %1840
    %v1842 = vsel %vm1678, %v1824, 0.0
    %1843 = vadd.xlane.f32.xlu0 %v1842
    %v1844 = vpop.xlane.xlu0 %1843
    %v1845 = vsel %vm1678, %v1825, 0.0
    %1846 = vadd.xlane.f32.xlu0 %v1845
    %v1847 = vpop.xlane.xlu0 %1846
    %v1848 = vsel %vm1678, %v1826, 0.0
    %1849 = vadd.xlane.f32.xlu0 %v1848
    %v1850 = vpop.xlane.xlu0 %1849
    %v1851 = vsel %vm1678, %v1827, 0.0
    %1852 = vadd.xlane.f32.xlu0 %v1851
    %v1853 = vpop.xlane.xlu0 %1852
    %v1854 = vsel %vm1678, %v1828, 0.0
    %1855 = vadd.xlane.f32.xlu0 %v1854
    %v1856 = vpop.xlane.xlu0 %1855
    %v1857 = vsel %vm1678, %v1829, 0.0
    %1858 = vadd.xlane.f32.xlu0 %v1857
    %v1859 = vpop.xlane.xlu0 %1858
    %v1860 = vsel %vm1678, %v1830, 0.0
    %1861 = vadd.xlane.f32.xlu0 %v1860
    %v1862 = vpop.xlane.xlu0 %1861
    %v1863 = vsel %vm1678, %v1831, 0.0
    %1864 = vadd.xlane.f32.xlu0 %v1863
    %v1865 = vpop.xlane.xlu0 %1864
    %v1866 = vsel %vm1678, %v1832, 0.0
    %1867 = vadd.xlane.f32.xlu0 %v1866
    %v1868 = vpop.xlane.xlu0 %1867
    %v1869 = vsel %vm1678, %v1833, 0.0
    %1870 = vadd.xlane.f32.xlu0 %v1869
    %v1871 = vpop.xlane.xlu0 %1870
    %v1872 = vsel %vm1678, %v1834, 0.0
    %1873 = vadd.xlane.f32.xlu0 %v1872
    %v1874 = vpop.xlane.xlu0 %1873
    %v1875 = vsel %vm1678, %v1835, 0.0
    %1876 = vadd.xlane.f32.xlu0 %v1875
    %v1877 = vpop.xlane.xlu0 %1876
    %v1878 = vsel %vm1678, %v1836, 0.0
    %1879 = vadd.xlane.f32.xlu0 %v1878
    %v1880 = vpop.xlane.xlu0 %1879
    %v1881 = vsel %vm1678, %v1837, 0.0
    %1882 = vadd.xlane.f32.xlu0 %v1881
    %v1883 = vpop.xlane.xlu0 %1882
    %v1884 = vsel %vm1678, %v1838, 0.0
    %1885 = vadd.xlane.f32.xlu0 %v1884
    %v1886 = vpop.xlane.xlu0 %1885
    %v1887 = vsub.f32 %v1759, %v1841
    %v1888 = vsub.f32 %v1760, %v1844
    %v1889 = vsub.f32 %v1761, %v1847
    %v1890 = vsub.f32 %v1762, %v1850
    %v1891 = vsub.f32 %v1763, %v1853
    %v1892 = vsub.f32 %v1764, %v1856
    %v1893 = vsub.f32 %v1765, %v1859
    %v1894 = vsub.f32 %v1766, %v1862
    %v1895 = vsub.f32 %v1767, %v1865
    %v1896 = vsub.f32 %v1768, %v1868
    %v1897 = vsub.f32 %v1769, %v1871
    %v1898 = vsub.f32 %v1770, %v1874
    %v1899 = vsub.f32 %v1771, %v1877
    %v1900 = vsub.f32 %v1772, %v1880
    %v1901 = vsub.f32 %v1773, %v1883
    %v1902 = vsub.f32 %v1774, %v1886
    %v1903 = vmul.f32 %v9, %v1887
    %v1904 = vmul.f32 %v10, %v1888
    %v1905 = vmul.f32 %v11, %v1889
    %v1906 = vmul.f32 %v12, %v1890
    %v1907 = vmul.f32 %v13, %v1891
    %v1908 = vmul.f32 %v14, %v1892
    %v1909 = vmul.f32 %v15, %v1893
    %v1910 = vmul.f32 %v16, %v1894
    %v1911 = vmul.f32 %v17, %v1895
    %v1912 = vmul.f32 %v18, %v1896
    %v1913 = vmul.f32 %v19, %v1897
    %v1914 = vmul.f32 %v20, %v1898
    %v1915 = vmul.f32 %v21, %v1899
    %v1916 = vmul.f32 %v22, %v1900
    %v1917 = vmul.f32 %v23, %v1901
    %v1918 = vmul.f32 %v24, %v1902
    %vm1919 = vcmp.eq.f32.partialorder %v9, %v1520
    %vm1920 = vcmp.eq.f32.partialorder %v10, %v1523
    %vm1921 = vcmp.eq.f32.partialorder %v11, %v1526
    %vm1922 = vcmp.eq.f32.partialorder %v12, %v1529
    %vm1923 = vcmp.eq.f32.partialorder %v13, %v1532
    %vm1924 = vcmp.eq.f32.partialorder %v14, %v1535
    %vm1925 = vcmp.eq.f32.partialorder %v15, %v1538
    %vm1926 = vcmp.eq.f32.partialorder %v16, %v1541
    %vm1927 = vcmp.eq.f32.partialorder %v17, %v1544
    %vm1928 = vcmp.eq.f32.partialorder %v18, %v1547
    %vm1929 = vcmp.eq.f32.partialorder %v19, %v1550
    %vm1930 = vcmp.eq.f32.partialorder %v20, %v1553
    %vm1931 = vcmp.eq.f32.partialorder %v21, %v1556
    %vm1932 = vcmp.eq.f32.partialorder %v22, %v1559
    %vm1933 = vcmp.eq.f32.partialorder %v23, %v1562
    %vm1934 = vcmp.eq.f32.partialorder %v24, %v1565
    %1935 = vrot.lane.b32.xlu0 %v26, 13
    %v1936 = vpop.permute.xlu0 %1935
    %v1937 = vsel %vm1919, %v1936, 2
    %v1938 = vsel %vm1920, %v1936, 2
    %v1939 = vsel %vm1921, %v1936, 2
    %v1940 = vsel %vm1922, %v1936, 2
    %v1941 = vsel %vm1923, %v1936, 2
    %v1942 = vsel %vm1924, %v1936, 2
    %v1943 = vsel %vm1925, %v1936, 2
    %v1944 = vsel %vm1926, %v1936, 2
    %v1945 = vsel %vm1927, %v1936, 2
    %v1946 = vsel %vm1928, %v1936, 2
    %v1947 = vsel %vm1929, %v1936, 2
    %v1948 = vsel %vm1930, %v1936, 2
    %v1949 = vsel %vm1931, %v1936, 2
    %v1950 = vsel %vm1932, %v1936, 2
    %v1951 = vsel %vm1933, %v1936, 2
    %v1952 = vsel %vm1934, %v1936, 2
    %v1953 = vsel %vm1517, %v1937, 2147483647
    %v1954 = vand.u32 %v1953, 65535
    %v1955 = vshra.s32 %v1953, 16
    %v1956 = vcvt.s32.f32 %v1954
    %v1957 = vcvt.s32.f32 %v1955
    %1958 = vmin.xlane.f32.xlu0 %v1957
    %v1959 = vpop.xlane.xlu0 %1958
    %vm1960 = vcmp.eq.f32.partialorder %v1957, %v1959
    %v1961 = vsel %vm1960, %v1956, inf
    %1962 = vmin.xlane.f32.xlu0 %v1961
    %v1963 = vpop.xlane.xlu0 %1962
    %v1964 = vcvt.f32.s32 %v1963
    %v1965 = vcvt.f32.s32 %v1959
    %v1966 = vshll.u32 %v1965, 16
    %v1967 = vadd.s32 %v1966, %v1964
    %v1968 = vsel %vm1517, %v1938, 2147483647
    %v1969 = vand.u32 %v1968, 65535
    %v1970 = vshra.s32 %v1968, 16
    %v1971 = vcvt.s32.f32 %v1969
    %v1972 = vcvt.s32.f32 %v1970
    %1973 = vmin.xlane.f32.xlu0 %v1972
    %v1974 = vpop.xlane.xlu0 %1973
    %vm1975 = vcmp.eq.f32.partialorder %v1972, %v1974
    %v1976 = vsel %vm1975, %v1971, inf
    %1977 = vmin.xlane.f32.xlu0 %v1976
    %v1978 = vpop.xlane.xlu0 %1977
    %v1979 = vcvt.f32.s32 %v1978
    %v1980 = vcvt.f32.s32 %v1974
    %v1981 = vshll.u32 %v1980, 16
    %v1982 = vadd.s32 %v1981, %v1979
    %v1983 = vsel %vm1517, %v1939, 2147483647
    %v1984 = vand.u32 %v1983, 65535
    %v1985 = vshra.s32 %v1983, 16
    %v1986 = vcvt.s32.f32 %v1984
    %v1987 = vcvt.s32.f32 %v1985
    %1988 = vmin.xlane.f32.xlu0 %v1987
    %v1989 = vpop.xlane.xlu0 %1988
    %vm1990 = vcmp.eq.f32.partialorder %v1987, %v1989
    %v1991 = vsel %vm1990, %v1986, inf
    %1992 = vmin.xlane.f32.xlu0 %v1991
    %v1993 = vpop.xlane.xlu0 %1992
    %v1994 = vcvt.f32.s32 %v1993
    %v1995 = vcvt.f32.s32 %v1989
    %v1996 = vshll.u32 %v1995, 16
    %v1997 = vadd.s32 %v1996, %v1994
    %v1998 = vsel %vm1517, %v1940, 2147483647
    %v1999 = vand.u32 %v1998, 65535
    %v2000 = vshra.s32 %v1998, 16
    %v2001 = vcvt.s32.f32 %v1999
    %v2002 = vcvt.s32.f32 %v2000
    %2003 = vmin.xlane.f32.xlu0 %v2002
    %v2004 = vpop.xlane.xlu0 %2003
    %vm2005 = vcmp.eq.f32.partialorder %v2002, %v2004
    %v2006 = vsel %vm2005, %v2001, inf
    %2007 = vmin.xlane.f32.xlu0 %v2006
    %v2008 = vpop.xlane.xlu0 %2007
    %v2009 = vcvt.f32.s32 %v2008
    %v2010 = vcvt.f32.s32 %v2004
    %v2011 = vshll.u32 %v2010, 16
    %v2012 = vadd.s32 %v2011, %v2009
    %v2013 = vsel %vm1517, %v1941, 2147483647
    %v2014 = vand.u32 %v2013, 65535
    %v2015 = vshra.s32 %v2013, 16
    %v2016 = vcvt.s32.f32 %v2014
    %v2017 = vcvt.s32.f32 %v2015
    %2018 = vmin.xlane.f32.xlu0 %v2017
    %v2019 = vpop.xlane.xlu0 %2018
    %vm2020 = vcmp.eq.f32.partialorder %v2017, %v2019
    %v2021 = vsel %vm2020, %v2016, inf
    %2022 = vmin.xlane.f32.xlu0 %v2021
    %v2023 = vpop.xlane.xlu0 %2022
    %v2024 = vcvt.f32.s32 %v2023
    %v2025 = vcvt.f32.s32 %v2019
    %v2026 = vshll.u32 %v2025, 16
    %v2027 = vadd.s32 %v2026, %v2024
    %v2028 = vsel %vm1517, %v1942, 2147483647
    %v2029 = vand.u32 %v2028, 65535
    %v2030 = vshra.s32 %v2028, 16
    %v2031 = vcvt.s32.f32 %v2029
    %v2032 = vcvt.s32.f32 %v2030
    %2033 = vmin.xlane.f32.xlu0 %v2032
    %v2034 = vpop.xlane.xlu0 %2033
    %vm2035 = vcmp.eq.f32.partialorder %v2032, %v2034
    %v2036 = vsel %vm2035, %v2031, inf
    %2037 = vmin.xlane.f32.xlu0 %v2036
    %v2038 = vpop.xlane.xlu0 %2037
    %v2039 = vcvt.f32.s32 %v2038
    %v2040 = vcvt.f32.s32 %v2034
    %v2041 = vshll.u32 %v2040, 16
    %v2042 = vadd.s32 %v2041, %v2039
    %v2043 = vsel %vm1517, %v1943, 2147483647
    %v2044 = vand.u32 %v2043, 65535
    %v2045 = vshra.s32 %v2043, 16
    %v2046 = vcvt.s32.f32 %v2044
    %v2047 = vcvt.s32.f32 %v2045
    %2048 = vmin.xlane.f32.xlu0 %v2047
    %v2049 = vpop.xlane.xlu0 %2048
    %vm2050 = vcmp.eq.f32.partialorder %v2047, %v2049
    %v2051 = vsel %vm2050, %v2046, inf
    %2052 = vmin.xlane.f32.xlu0 %v2051
    %v2053 = vpop.xlane.xlu0 %2052
    %v2054 = vcvt.f32.s32 %v2053
    %v2055 = vcvt.f32.s32 %v2049
    %v2056 = vshll.u32 %v2055, 16
    %v2057 = vadd.s32 %v2056, %v2054
    %v2058 = vsel %vm1517, %v1944, 2147483647
    %v2059 = vand.u32 %v2058, 65535
    %v2060 = vshra.s32 %v2058, 16
    %v2061 = vcvt.s32.f32 %v2059
    %v2062 = vcvt.s32.f32 %v2060
    %2063 = vmin.xlane.f32.xlu0 %v2062
    %v2064 = vpop.xlane.xlu0 %2063
    %vm2065 = vcmp.eq.f32.partialorder %v2062, %v2064
    %v2066 = vsel %vm2065, %v2061, inf
    %2067 = vmin.xlane.f32.xlu0 %v2066
    %v2068 = vpop.xlane.xlu0 %2067
    %v2069 = vcvt.f32.s32 %v2068
    %v2070 = vcvt.f32.s32 %v2064
    %v2071 = vshll.u32 %v2070, 16
    %v2072 = vadd.s32 %v2071, %v2069
    %v2073 = vsel %vm1517, %v1945, 2147483647
    %v2074 = vand.u32 %v2073, 65535
    %v2075 = vshra.s32 %v2073, 16
    %v2076 = vcvt.s32.f32 %v2074
    %v2077 = vcvt.s32.f32 %v2075
    %2078 = vmin.xlane.f32.xlu0 %v2077
    %v2079 = vpop.xlane.xlu0 %2078
    %vm2080 = vcmp.eq.f32.partialorder %v2077, %v2079
    %v2081 = vsel %vm2080, %v2076, inf
    %2082 = vmin.xlane.f32.xlu0 %v2081
    %v2083 = vpop.xlane.xlu0 %2082
    %v2084 = vcvt.f32.s32 %v2083
    %v2085 = vcvt.f32.s32 %v2079
    %v2086 = vshll.u32 %v2085, 16
    %v2087 = vadd.s32 %v2086, %v2084
    %v2088 = vsel %vm1517, %v1946, 2147483647
    %v2089 = vand.u32 %v2088, 65535
    %v2090 = vshra.s32 %v2088, 16
    %v2091 = vcvt.s32.f32 %v2089
    %v2092 = vcvt.s32.f32 %v2090
    %2093 = vmin.xlane.f32.xlu0 %v2092
    %v2094 = vpop.xlane.xlu0 %2093
    %vm2095 = vcmp.eq.f32.partialorder %v2092, %v2094
    %v2096 = vsel %vm2095, %v2091, inf
    %2097 = vmin.xlane.f32.xlu0 %v2096
    %v2098 = vpop.xlane.xlu0 %2097
    %v2099 = vcvt.f32.s32 %v2098
    %v2100 = vcvt.f32.s32 %v2094
    %v2101 = vshll.u32 %v2100, 16
    %v2102 = vadd.s32 %v2101, %v2099
    %v2103 = vsel %vm1517, %v1947, 2147483647
    %v2104 = vand.u32 %v2103, 65535
    %v2105 = vshra.s32 %v2103, 16
    %v2106 = vcvt.s32.f32 %v2104
    %v2107 = vcvt.s32.f32 %v2105
    %2108 = vmin.xlane.f32.xlu0 %v2107
    %v2109 = vpop.xlane.xlu0 %2108
    %vm2110 = vcmp.eq.f32.partialorder %v2107, %v2109
    %v2111 = vsel %vm2110, %v2106, inf
    %2112 = vmin.xlane.f32.xlu0 %v2111
    %v2113 = vpop.xlane.xlu0 %2112
    %v2114 = vcvt.f32.s32 %v2113
    %v2115 = vcvt.f32.s32 %v2109
    %v2116 = vshll.u32 %v2115, 16
    %v2117 = vadd.s32 %v2116, %v2114
    %v2118 = vsel %vm1517, %v1948, 2147483647
    %v2119 = vand.u32 %v2118, 65535
    %v2120 = vshra.s32 %v2118, 16
    %v2121 = vcvt.s32.f32 %v2119
    %v2122 = vcvt.s32.f32 %v2120
    %2123 = vmin.xlane.f32.xlu0 %v2122
    %v2124 = vpop.xlane.xlu0 %2123
    %vm2125 = vcmp.eq.f32.partialorder %v2122, %v2124
    %v2126 = vsel %vm2125, %v2121, inf
    %2127 = vmin.xlane.f32.xlu0 %v2126
    %v2128 = vpop.xlane.xlu0 %2127
    %v2129 = vcvt.f32.s32 %v2128
    %v2130 = vcvt.f32.s32 %v2124
    %v2131 = vshll.u32 %v2130, 16
    %v2132 = vadd.s32 %v2131, %v2129
    %v2133 = vsel %vm1517, %v1949, 2147483647
    %v2134 = vand.u32 %v2133, 65535
    %v2135 = vshra.s32 %v2133, 16
    %v2136 = vcvt.s32.f32 %v2134
    %v2137 = vcvt.s32.f32 %v2135
    %2138 = vmin.xlane.f32.xlu0 %v2137
    %v2139 = vpop.xlane.xlu0 %2138
    %vm2140 = vcmp.eq.f32.partialorder %v2137, %v2139
    %v2141 = vsel %vm2140, %v2136, inf
    %2142 = vmin.xlane.f32.xlu0 %v2141
    %v2143 = vpop.xlane.xlu0 %2142
    %v2144 = vcvt.f32.s32 %v2143
    %v2145 = vcvt.f32.s32 %v2139
    %v2146 = vshll.u32 %v2145, 16
    %v2147 = vadd.s32 %v2146, %v2144
    %v2148 = vsel %vm1517, %v1950, 2147483647
    %v2149 = vand.u32 %v2148, 65535
    %v2150 = vshra.s32 %v2148, 16
    %v2151 = vcvt.s32.f32 %v2149
    %v2152 = vcvt.s32.f32 %v2150
    %2153 = vmin.xlane.f32.xlu0 %v2152
    %v2154 = vpop.xlane.xlu0 %2153
    %vm2155 = vcmp.eq.f32.partialorder %v2152, %v2154
    %v2156 = vsel %vm2155, %v2151, inf
    %2157 = vmin.xlane.f32.xlu0 %v2156
    %v2158 = vpop.xlane.xlu0 %2157
    %v2159 = vcvt.f32.s32 %v2158
    %v2160 = vcvt.f32.s32 %v2154
    %v2161 = vshll.u32 %v2160, 16
    %v2162 = vadd.s32 %v2161, %v2159
    %v2163 = vsel %vm1517, %v1951, 2147483647
    %v2164 = vand.u32 %v2163, 65535
    %v2165 = vshra.s32 %v2163, 16
    %v2166 = vcvt.s32.f32 %v2164
    %v2167 = vcvt.s32.f32 %v2165
    %2168 = vmin.xlane.f32.xlu0 %v2167
    %v2169 = vpop.xlane.xlu0 %2168
    %vm2170 = vcmp.eq.f32.partialorder %v2167, %v2169
    %v2171 = vsel %vm2170, %v2166, inf
    %2172 = vmin.xlane.f32.xlu0 %v2171
    %v2173 = vpop.xlane.xlu0 %2172
    %v2174 = vcvt.f32.s32 %v2173
    %v2175 = vcvt.f32.s32 %v2169
    %v2176 = vshll.u32 %v2175, 16
    %v2177 = vadd.s32 %v2176, %v2174
    %v2178 = vsel %vm1517, %v1952, 2147483647
    %v2179 = vand.u32 %v2178, 65535
    %v2180 = vshra.s32 %v2178, 16
    %v2181 = vcvt.s32.f32 %v2179
    %v2182 = vcvt.s32.f32 %v2180
    %2183 = vmin.xlane.f32.xlu0 %v2182
    %v2184 = vpop.xlane.xlu0 %2183
    %vm2185 = vcmp.eq.f32.partialorder %v2182, %v2184
    %v2186 = vsel %vm2185, %v2181, inf
    %2187 = vmin.xlane.f32.xlu0 %v2186
    %v2188 = vpop.xlane.xlu0 %2187
    %v2189 = vcvt.f32.s32 %v2188
    %v2190 = vcvt.f32.s32 %v2184
    %v2191 = vshll.u32 %v2190, 16
    %v2192 = vadd.s32 %v2191, %v2189
    %v2193 = vcvt.s32.f32 %v1967
    %v2194 = vcvt.s32.f32 %v1982
    %v2195 = vcvt.s32.f32 %v1997
    %v2196 = vcvt.s32.f32 %v2012
    %v2197 = vcvt.s32.f32 %v2027
    %v2198 = vcvt.s32.f32 %v2042
    %v2199 = vcvt.s32.f32 %v2057
    %v2200 = vcvt.s32.f32 %v2072
    %v2201 = vcvt.s32.f32 %v2087
    %v2202 = vcvt.s32.f32 %v2102
    %v2203 = vcvt.s32.f32 %v2117
    %v2204 = vcvt.s32.f32 %v2132
    %v2205 = vcvt.s32.f32 %v2147
    %v2206 = vcvt.s32.f32 %v2162
    %v2207 = vcvt.s32.f32 %v2177
    %v2208 = vcvt.s32.f32 %v2192
    %vm2209 = vcmp.eq.f32.partialorder %v2193, %v9
    %vm2210 = vcmp.eq.f32.partialorder %v2194, %v10
    %vm2211 = vcmp.eq.f32.partialorder %v2195, %v11
    %vm2212 = vcmp.eq.f32.partialorder %v2196, %v12
    %vm2213 = vcmp.eq.f32.partialorder %v2197, %v13
    %vm2214 = vcmp.eq.f32.partialorder %v2198, %v14
    %vm2215 = vcmp.eq.f32.partialorder %v2199, %v15
    %vm2216 = vcmp.eq.f32.partialorder %v2200, %v16
    %vm2217 = vcmp.eq.f32.partialorder %v2201, %v17
    %vm2218 = vcmp.eq.f32.partialorder %v2202, %v18
    %vm2219 = vcmp.eq.f32.partialorder %v2203, %v19
    %vm2220 = vcmp.eq.f32.partialorder %v2204, %v20
    %vm2221 = vcmp.eq.f32.partialorder %v2205, %v21
    %vm2222 = vcmp.eq.f32.partialorder %v2206, %v22
    %vm2223 = vcmp.eq.f32.partialorder %v2207, %v23
    %vm2224 = vcmp.eq.f32.partialorder %v2208, %v24
    %v2225 = vsel %vm2209, 1, 0
    %v2226 = vsel %vm2210, 1, 0
    %v2227 = vsel %vm2211, 1, 0
    %v2228 = vsel %vm2212, 1, 0
    %v2229 = vsel %vm2213, 1, 0
    %v2230 = vsel %vm2214, 1, 0
    %v2231 = vsel %vm2215, 1, 0
    %v2232 = vsel %vm2216, 1, 0
    %v2233 = vsel %vm2217, 1, 0
    %v2234 = vsel %vm2218, 1, 0
    %v2235 = vsel %vm2219, 1, 0
    %v2236 = vsel %vm2220, 1, 0
    %v2237 = vsel %vm2221, 1, 0
    %v2238 = vsel %vm2222, 1, 0
    %v2239 = vsel %vm2223, 1, 0
    %v2240 = vsel %vm2224, 1, 0
    %v2241 = vcvt.s32.f32 %v2225
    %v2242 = vcvt.s32.f32 %v2226
    %v2243 = vcvt.s32.f32 %v2227
    %v2244 = vcvt.s32.f32 %v2228
    %v2245 = vcvt.s32.f32 %v2229
    %v2246 = vcvt.s32.f32 %v2230
    %v2247 = vcvt.s32.f32 %v2231
    %v2248 = vcvt.s32.f32 %v2232
    %v2249 = vcvt.s32.f32 %v2233
    %v2250 = vcvt.s32.f32 %v2234
    %v2251 = vcvt.s32.f32 %v2235
    %v2252 = vcvt.s32.f32 %v2236
    %v2253 = vcvt.s32.f32 %v2237
    %v2254 = vcvt.s32.f32 %v2238
    %v2255 = vcvt.s32.f32 %v2239
    %v2256 = vcvt.s32.f32 %v2240
    %2273 = vrot.lane.b32.xlu0 %v2241, 1
    %v2274 = vpop.permute.xlu0 %2273
    %2275 = vrot.lane.b32.xlu0 %v2242, 1
    %v2276 = vpop.permute.xlu0 %2275
    %2277 = vrot.lane.b32.xlu0 %v2243, 1
    %v2278 = vpop.permute.xlu0 %2277
    %2279 = vrot.lane.b32.xlu0 %v2244, 1
    %v2280 = vpop.permute.xlu0 %2279
    %2281 = vrot.lane.b32.xlu0 %v2245, 1
    %v2282 = vpop.permute.xlu0 %2281
    %2283 = vrot.lane.b32.xlu0 %v2246, 1
    %v2284 = vpop.permute.xlu0 %2283
    %2285 = vrot.lane.b32.xlu0 %v2247, 1
    %v2286 = vpop.permute.xlu0 %2285
    %2287 = vrot.lane.b32.xlu0 %v2248, 1
    %v2288 = vpop.permute.xlu0 %2287
    %2289 = vrot.lane.b32.xlu0 %v2249, 1
    %v2290 = vpop.permute.xlu0 %2289
    %2291 = vrot.lane.b32.xlu0 %v2250, 1
    %v2292 = vpop.permute.xlu0 %2291
    %2293 = vrot.lane.b32.xlu0 %v2251, 1
    %v2294 = vpop.permute.xlu0 %2293
    %2295 = vrot.lane.b32.xlu0 %v2252, 1
    %v2296 = vpop.permute.xlu0 %2295
    %2297 = vrot.lane.b32.xlu0 %v2253, 1
    %v2298 = vpop.permute.xlu0 %2297
    %2299 = vrot.lane.b32.xlu0 %v2254, 1
    %v2300 = vpop.permute.xlu0 %2299
    %2301 = vrot.lane.b32.xlu0 %v2255, 1
    %v2302 = vpop.permute.xlu0 %2301
    %2303 = vrot.lane.b32.xlu0 %v2256, 1
    %v2304 = vpop.permute.xlu0 %2303
    %v2321 = vmul.f32 %v9, %v2274
    %v2322 = vmul.f32 %v10, %v2276
    %v2323 = vmul.f32 %v11, %v2278
    %v2324 = vmul.f32 %v12, %v2280
    %v2325 = vmul.f32 %v13, %v2282
    %v2326 = vmul.f32 %v14, %v2284
    %v2327 = vmul.f32 %v15, %v2286
    %v2328 = vmul.f32 %v16, %v2288
    %v2329 = vmul.f32 %v17, %v2290
    %v2330 = vmul.f32 %v18, %v2292
    %v2331 = vmul.f32 %v19, %v2294
    %v2332 = vmul.f32 %v20, %v2296
    %v2333 = vmul.f32 %v21, %v2298
    %v2334 = vmul.f32 %v22, %v2300
    %v2335 = vmul.f32 %v23, %v2302
    %v2336 = vmul.f32 %v24, %v2304
    %2337 = vrot.lane.b32.xlu0 %v9, 120
    %v2338 = vpop.permute.xlu0 %2337
    %2339 = vrot.lane.b32.xlu0 %v10, 120
    %v2340 = vpop.permute.xlu0 %2339
    %2341 = vrot.lane.b32.xlu0 %v11, 120
    %v2342 = vpop.permute.xlu0 %2341
    %2343 = vrot.lane.b32.xlu0 %v12, 120
    %v2344 = vpop.permute.xlu0 %2343
    %2345 = vrot.lane.b32.xlu0 %v13, 120
    %v2346 = vpop.permute.xlu0 %2345
    %2347 = vrot.lane.b32.xlu0 %v14, 120
    %v2348 = vpop.permute.xlu0 %2347
    %2349 = vrot.lane.b32.xlu0 %v15, 120
    %v2350 = vpop.permute.xlu0 %2349
    %2351 = vrot.lane.b32.xlu0 %v16, 120
    %v2352 = vpop.permute.xlu0 %2351
    %2353 = vrot.lane.b32.xlu0 %v17, 120
    %v2354 = vpop.permute.xlu0 %2353
    %2355 = vrot.lane.b32.xlu0 %v18, 120
    %v2356 = vpop.permute.xlu0 %2355
    %2357 = vrot.lane.b32.xlu0 %v19, 120
    %v2358 = vpop.permute.xlu0 %2357
    %2359 = vrot.lane.b32.xlu0 %v20, 120
    %v2360 = vpop.permute.xlu0 %2359
    %2361 = vrot.lane.b32.xlu0 %v21, 120
    %v2362 = vpop.permute.xlu0 %2361
    %2363 = vrot.lane.b32.xlu0 %v22, 120
    %v2364 = vpop.permute.xlu0 %2363
    %2365 = vrot.lane.b32.xlu0 %v23, 120
    %v2366 = vpop.permute.xlu0 %2365
    %2367 = vrot.lane.b32.xlu0 %v24, 120
    %v2368 = vpop.permute.xlu0 %2367
    %v2385 = vsub.f32 %v9, %v2338
    %v2386 = vsub.f32 %v10, %v2340
    %v2387 = vsub.f32 %v11, %v2342
    %v2388 = vsub.f32 %v12, %v2344
    %v2389 = vsub.f32 %v13, %v2346
    %v2390 = vsub.f32 %v14, %v2348
    %v2391 = vsub.f32 %v15, %v2350
    %v2392 = vsub.f32 %v16, %v2352
    %v2393 = vsub.f32 %v17, %v2354
    %v2394 = vsub.f32 %v18, %v2356
    %v2395 = vsub.f32 %v19, %v2358
    %v2396 = vsub.f32 %v20, %v2360
    %v2397 = vsub.f32 %v21, %v2362
    %v2398 = vsub.f32 %v22, %v2364
    %v2399 = vsub.f32 %v23, %v2366
    %v2400 = vsub.f32 %v24, %v2368
    %v2401 = vand.u32 2147483647, %v2385
    %v2402 = vand.u32 2147483647, %v2386
    %v2403 = vand.u32 2147483647, %v2387
    %v2404 = vand.u32 2147483647, %v2388
    %v2405 = vand.u32 2147483647, %v2389
    %v2406 = vand.u32 2147483647, %v2390
    %v2407 = vand.u32 2147483647, %v2391
    %v2408 = vand.u32 2147483647, %v2392
    %v2409 = vand.u32 2147483647, %v2393
    %v2410 = vand.u32 2147483647, %v2394
    %v2411 = vand.u32 2147483647, %v2395
    %v2412 = vand.u32 2147483647, %v2396
    %v2413 = vand.u32 2147483647, %v2397
    %v2414 = vand.u32 2147483647, %v2398
    %v2415 = vand.u32 2147483647, %v2399
    %v2416 = vand.u32 2147483647, %v2400
    %2433 = vrot.lane.b32.xlu0 %v2401, 118
    %v2434 = vpop.permute.xlu0 %2433
    %2435 = vrot.lane.b32.xlu0 %v2402, 118
    %v2436 = vpop.permute.xlu0 %2435
    %2437 = vrot.lane.b32.xlu0 %v2403, 118
    %v2438 = vpop.permute.xlu0 %2437
    %2439 = vrot.lane.b32.xlu0 %v2404, 118
    %v2440 = vpop.permute.xlu0 %2439
    %2441 = vrot.lane.b32.xlu0 %v2405, 118
    %v2442 = vpop.permute.xlu0 %2441
    %2443 = vrot.lane.b32.xlu0 %v2406, 118
    %v2444 = vpop.permute.xlu0 %2443
    %2445 = vrot.lane.b32.xlu0 %v2407, 118
    %v2446 = vpop.permute.xlu0 %2445
    %2447 = vrot.lane.b32.xlu0 %v2408, 118
    %v2448 = vpop.permute.xlu0 %2447
    %2449 = vrot.lane.b32.xlu0 %v2409, 118
    %v2450 = vpop.permute.xlu0 %2449
    %2451 = vrot.lane.b32.xlu0 %v2410, 118
    %v2452 = vpop.permute.xlu0 %2451
    %2453 = vrot.lane.b32.xlu0 %v2411, 118
    %v2454 = vpop.permute.xlu0 %2453
    %2455 = vrot.lane.b32.xlu0 %v2412, 118
    %v2456 = vpop.permute.xlu0 %2455
    %2457 = vrot.lane.b32.xlu0 %v2413, 118
    %v2458 = vpop.permute.xlu0 %2457
    %2459 = vrot.lane.b32.xlu0 %v2414, 118
    %v2460 = vpop.permute.xlu0 %2459
    %2461 = vrot.lane.b32.xlu0 %v2415, 118
    %v2462 = vpop.permute.xlu0 %2461
    %2463 = vrot.lane.b32.xlu0 %v2416, 118
    %v2464 = vpop.permute.xlu0 %2463
    %vm2481 = vcmask 23552
    %v2482 = vsel %vm2481, %v2434, 0.0
    %2483 = vadd.xlane.f32.xlu0 %v2482
    %v2484 = vpop.xlane.xlu0 %2483
    %v2485 = vsel %vm2481, %v2436, 0.0
    %2486 = vadd.xlane.f32.xlu0 %v2485
    %v2487 = vpop.xlane.xlu0 %2486
    %v2488 = vsel %vm2481, %v2438, 0.0
    %2489 = vadd.xlane.f32.xlu0 %v2488
    %v2490 = vpop.xlane.xlu0 %2489
    %v2491 = vsel %vm2481, %v2440, 0.0
    %2492 = vadd.xlane.f32.xlu0 %v2491
    %v2493 = vpop.xlane.xlu0 %2492
    %v2494 = vsel %vm2481, %v2442, 0.0
    %2495 = vadd.xlane.f32.xlu0 %v2494
    %v2496 = vpop.xlane.xlu0 %2495
    %v2497 = vsel %vm2481, %v2444, 0.0
    %2498 = vadd.xlane.f32.xlu0 %v2497
    %v2499 = vpop.xlane.xlu0 %2498
    %v2500 = vsel %vm2481, %v2446, 0.0
    %2501 = vadd.xlane.f32.xlu0 %v2500
    %v2502 = vpop.xlane.xlu0 %2501
    %v2503 = vsel %vm2481, %v2448, 0.0
    %2504 = vadd.xlane.f32.xlu0 %v2503
    %v2505 = vpop.xlane.xlu0 %2504
    %v2506 = vsel %vm2481, %v2450, 0.0
    %2507 = vadd.xlane.f32.xlu0 %v2506
    %v2508 = vpop.xlane.xlu0 %2507
    %v2509 = vsel %vm2481, %v2452, 0.0
    %2510 = vadd.xlane.f32.xlu0 %v2509
    %v2511 = vpop.xlane.xlu0 %2510
    %v2512 = vsel %vm2481, %v2454, 0.0
    %2513 = vadd.xlane.f32.xlu0 %v2512
    %v2514 = vpop.xlane.xlu0 %2513
    %v2515 = vsel %vm2481, %v2456, 0.0
    %2516 = vadd.xlane.f32.xlu0 %v2515
    %v2517 = vpop.xlane.xlu0 %2516
    %v2518 = vsel %vm2481, %v2458, 0.0
    %2519 = vadd.xlane.f32.xlu0 %v2518
    %v2520 = vpop.xlane.xlu0 %2519
    %v2521 = vsel %vm2481, %v2460, 0.0
    %2522 = vadd.xlane.f32.xlu0 %v2521
    %v2523 = vpop.xlane.xlu0 %2522
    %v2524 = vsel %vm2481, %v2462, 0.0
    %2525 = vadd.xlane.f32.xlu0 %v2524
    %v2526 = vpop.xlane.xlu0 %2525
    %v2527 = vsel %vm2481, %v2464, 0.0
    %2528 = vadd.xlane.f32.xlu0 %v2527
    %v2529 = vpop.xlane.xlu0 %2528
    %v2530 = vmin.f32 %v2484, 2500.0
    %v2531 = vmin.f32 %v2487, 2500.0
    %v2532 = vmin.f32 %v2490, 2500.0
    %v2533 = vmin.f32 %v2493, 2500.0
    %v2534 = vmin.f32 %v2496, 2500.0
    %v2535 = vmin.f32 %v2499, 2500.0
    %v2536 = vmin.f32 %v2502, 2500.0
    %v2537 = vmin.f32 %v2505, 2500.0
    %v2538 = vmin.f32 %v2508, 2500.0
    %v2539 = vmin.f32 %v2511, 2500.0
    %v2540 = vmin.f32 %v2514, 2500.0
    %v2541 = vmin.f32 %v2517, 2500.0
    %v2542 = vmin.f32 %v2520, 2500.0
    %v2543 = vmin.f32 %v2523, 2500.0
    %v2544 = vmin.f32 %v2526, 2500.0
    %v2545 = vmin.f32 %v2529, 2500.0
    %v2546 = vmul.f32 %v9, %v2530
    %v2547 = vmul.f32 %v10, %v2531
    %v2548 = vmul.f32 %v11, %v2532
    %v2549 = vmul.f32 %v12, %v2533
    %v2550 = vmul.f32 %v13, %v2534
    %v2551 = vmul.f32 %v14, %v2535
    %v2552 = vmul.f32 %v15, %v2536
    %v2553 = vmul.f32 %v16, %v2537
    %v2554 = vmul.f32 %v17, %v2538
    %v2555 = vmul.f32 %v18, %v2539
    %v2556 = vmul.f32 %v19, %v2540
    %v2557 = vmul.f32 %v20, %v2541
    %v2558 = vmul.f32 %v21, %v2542
    %v2559 = vmul.f32 %v22, %v2543
    %v2560 = vmul.f32 %v23, %v2544
    %v2561 = vmul.f32 %v24, %v2545
    %v2562 = vand.u32 2147483647, %v9
    %v2563 = vand.u32 2147483647, %v10
    %v2564 = vand.u32 2147483647, %v11
    %v2565 = vand.u32 2147483647, %v12
    %v2566 = vand.u32 2147483647, %v13
    %v2567 = vand.u32 2147483647, %v14
    %v2568 = vand.u32 2147483647, %v15
    %v2569 = vand.u32 2147483647, %v16
    %v2570 = vand.u32 2147483647, %v17
    %v2571 = vand.u32 2147483647, %v18
    %v2572 = vand.u32 2147483647, %v19
    %v2573 = vand.u32 2147483647, %v20
    %v2574 = vand.u32 2147483647, %v21
    %v2575 = vand.u32 2147483647, %v22
    %v2576 = vand.u32 2147483647, %v23
    %v2577 = vand.u32 2147483647, %v24
    %2594 = vrot.lane.b32.xlu0 %v2562, 120
    %v2595 = vpop.permute.xlu0 %2594
    %2596 = vrot.lane.b32.xlu0 %v2563, 120
    %v2597 = vpop.permute.xlu0 %2596
    %2598 = vrot.lane.b32.xlu0 %v2564, 120
    %v2599 = vpop.permute.xlu0 %2598
    %2600 = vrot.lane.b32.xlu0 %v2565, 120
    %v2601 = vpop.permute.xlu0 %2600
    %2602 = vrot.lane.b32.xlu0 %v2566, 120
    %v2603 = vpop.permute.xlu0 %2602
    %2604 = vrot.lane.b32.xlu0 %v2567, 120
    %v2605 = vpop.permute.xlu0 %2604
    %2606 = vrot.lane.b32.xlu0 %v2568, 120
    %v2607 = vpop.permute.xlu0 %2606
    %2608 = vrot.lane.b32.xlu0 %v2569, 120
    %v2609 = vpop.permute.xlu0 %2608
    %2610 = vrot.lane.b32.xlu0 %v2570, 120
    %v2611 = vpop.permute.xlu0 %2610
    %2612 = vrot.lane.b32.xlu0 %v2571, 120
    %v2613 = vpop.permute.xlu0 %2612
    %2614 = vrot.lane.b32.xlu0 %v2572, 120
    %v2615 = vpop.permute.xlu0 %2614
    %2616 = vrot.lane.b32.xlu0 %v2573, 120
    %v2617 = vpop.permute.xlu0 %2616
    %2618 = vrot.lane.b32.xlu0 %v2574, 120
    %v2619 = vpop.permute.xlu0 %2618
    %2620 = vrot.lane.b32.xlu0 %v2575, 120
    %v2621 = vpop.permute.xlu0 %2620
    %2622 = vrot.lane.b32.xlu0 %v2576, 120
    %v2623 = vpop.permute.xlu0 %2622
    %2624 = vrot.lane.b32.xlu0 %v2577, 120
    %v2625 = vpop.permute.xlu0 %2624
    %v2642 = vadd.f32 %v2562, %v2595
    %v2643 = vadd.f32 %v2563, %v2597
    %v2644 = vadd.f32 %v2564, %v2599
    %v2645 = vadd.f32 %v2565, %v2601
    %v2646 = vadd.f32 %v2566, %v2603
    %v2647 = vadd.f32 %v2567, %v2605
    %v2648 = vadd.f32 %v2568, %v2607
    %v2649 = vadd.f32 %v2569, %v2609
    %v2650 = vadd.f32 %v2570, %v2611
    %v2651 = vadd.f32 %v2571, %v2613
    %v2652 = vadd.f32 %v2572, %v2615
    %v2653 = vadd.f32 %v2573, %v2617
    %v2654 = vadd.f32 %v2574, %v2619
    %v2655 = vadd.f32 %v2575, %v2621
    %v2656 = vadd.f32 %v2576, %v2623
    %v2657 = vadd.f32 %v2577, %v2625
    %vm2658 = vcmp.gt.f32.partialorder %v2642, 0.0
    %vm2659 = vcmp.gt.f32.partialorder %v2643, 0.0
    %vm2660 = vcmp.gt.f32.partialorder %v2644, 0.0
    %vm2661 = vcmp.gt.f32.partialorder %v2645, 0.0
    %vm2662 = vcmp.gt.f32.partialorder %v2646, 0.0
    %vm2663 = vcmp.gt.f32.partialorder %v2647, 0.0
    %vm2664 = vcmp.gt.f32.partialorder %v2648, 0.0
    %vm2665 = vcmp.gt.f32.partialorder %v2649, 0.0
    %vm2666 = vcmp.gt.f32.partialorder %v2650, 0.0
    %vm2667 = vcmp.gt.f32.partialorder %v2651, 0.0
    %vm2668 = vcmp.gt.f32.partialorder %v2652, 0.0
    %vm2669 = vcmp.gt.f32.partialorder %v2653, 0.0
    %vm2670 = vcmp.gt.f32.partialorder %v2654, 0.0
    %vm2671 = vcmp.gt.f32.partialorder %v2655, 0.0
    %vm2672 = vcmp.gt.f32.partialorder %v2656, 0.0
    %vm2673 = vcmp.gt.f32.partialorder %v2657, 0.0
    %v2674 = vsel %vm2658, %v2642, 1.0
    %v2675 = vsel %vm2659, %v2643, 1.0
    %v2676 = vsel %vm2660, %v2644, 1.0
    %v2677 = vsel %vm2661, %v2645, 1.0
    %v2678 = vsel %vm2662, %v2646, 1.0
    %v2679 = vsel %vm2663, %v2647, 1.0
    %v2680 = vsel %vm2664, %v2648, 1.0
    %v2681 = vsel %vm2665, %v2649, 1.0
    %v2682 = vsel %vm2666, %v2650, 1.0
    %v2683 = vsel %vm2667, %v2651, 1.0
    %v2684 = vsel %vm2668, %v2652, 1.0
    %v2685 = vsel %vm2669, %v2653, 1.0
    %v2686 = vsel %vm2670, %v2654, 1.0
    %v2687 = vsel %vm2671, %v2655, 1.0
    %v2688 = vsel %vm2672, %v2656, 1.0
    %v2689 = vsel %vm2673, %v2657, 1.0
    %v2690 = vrcp.pop %v2674
    %v2691 = vrcp.pop %v2675
    %v2692 = vrcp.pop %v2676
    %v2693 = vrcp.pop %v2677
    %v2694 = vrcp.pop %v2678
    %v2695 = vrcp.pop %v2679
    %v2696 = vrcp.pop %v2680
    %v2697 = vrcp.pop %v2681
    %v2698 = vrcp.pop %v2682
    %v2699 = vrcp.pop %v2683
    %v2700 = vrcp.pop %v2684
    %v2701 = vrcp.pop %v2685
    %v2702 = vrcp.pop %v2686
    %v2703 = vrcp.pop %v2687
    %v2704 = vrcp.pop %v2688
    %v2705 = vrcp.pop %v2689
    %v2706 = vmul.f32 %v2401, %v2690
    %v2707 = vmul.f32 %v2402, %v2691
    %v2708 = vmul.f32 %v2403, %v2692
    %v2709 = vmul.f32 %v2404, %v2693
    %v2710 = vmul.f32 %v2405, %v2694
    %v2711 = vmul.f32 %v2406, %v2695
    %v2712 = vmul.f32 %v2407, %v2696
    %v2713 = vmul.f32 %v2408, %v2697
    %v2714 = vmul.f32 %v2409, %v2698
    %v2715 = vmul.f32 %v2410, %v2699
    %v2716 = vmul.f32 %v2411, %v2700
    %v2717 = vmul.f32 %v2412, %v2701
    %v2718 = vmul.f32 %v2413, %v2702
    %v2719 = vmul.f32 %v2414, %v2703
    %v2720 = vmul.f32 %v2415, %v2704
    %v2721 = vmul.f32 %v2416, %v2705
    %v2722 = vsub.f32 1.0, %v2706
    %v2723 = vsub.f32 1.0, %v2707
    %v2724 = vsub.f32 1.0, %v2708
    %v2725 = vsub.f32 1.0, %v2709
    %v2726 = vsub.f32 1.0, %v2710
    %v2727 = vsub.f32 1.0, %v2711
    %v2728 = vsub.f32 1.0, %v2712
    %v2729 = vsub.f32 1.0, %v2713
    %v2730 = vsub.f32 1.0, %v2714
    %v2731 = vsub.f32 1.0, %v2715
    %v2732 = vsub.f32 1.0, %v2716
    %v2733 = vsub.f32 1.0, %v2717
    %v2734 = vsub.f32 1.0, %v2718
    %v2735 = vsub.f32 1.0, %v2719
    %v2736 = vsub.f32 1.0, %v2720
    %v2737 = vsub.f32 1.0, %v2721
    %2754 = vrot.lane.b32.xlu0 %v2722, 118
    %v2755 = vpop.permute.xlu0 %2754
    %2756 = vrot.lane.b32.xlu0 %v2723, 118
    %v2757 = vpop.permute.xlu0 %2756
    %2758 = vrot.lane.b32.xlu0 %v2724, 118
    %v2759 = vpop.permute.xlu0 %2758
    %2760 = vrot.lane.b32.xlu0 %v2725, 118
    %v2761 = vpop.permute.xlu0 %2760
    %2762 = vrot.lane.b32.xlu0 %v2726, 118
    %v2763 = vpop.permute.xlu0 %2762
    %2764 = vrot.lane.b32.xlu0 %v2727, 118
    %v2765 = vpop.permute.xlu0 %2764
    %2766 = vrot.lane.b32.xlu0 %v2728, 118
    %v2767 = vpop.permute.xlu0 %2766
    %2768 = vrot.lane.b32.xlu0 %v2729, 118
    %v2769 = vpop.permute.xlu0 %2768
    %2770 = vrot.lane.b32.xlu0 %v2730, 118
    %v2771 = vpop.permute.xlu0 %2770
    %2772 = vrot.lane.b32.xlu0 %v2731, 118
    %v2773 = vpop.permute.xlu0 %2772
    %2774 = vrot.lane.b32.xlu0 %v2732, 118
    %v2775 = vpop.permute.xlu0 %2774
    %2776 = vrot.lane.b32.xlu0 %v2733, 118
    %v2777 = vpop.permute.xlu0 %2776
    %2778 = vrot.lane.b32.xlu0 %v2734, 118
    %v2779 = vpop.permute.xlu0 %2778
    %2780 = vrot.lane.b32.xlu0 %v2735, 118
    %v2781 = vpop.permute.xlu0 %2780
    %2782 = vrot.lane.b32.xlu0 %v2736, 118
    %v2783 = vpop.permute.xlu0 %2782
    %2784 = vrot.lane.b32.xlu0 %v2737, 118
    %v2785 = vpop.permute.xlu0 %2784
    %v2802 = vsel %vm2481, %v2755, 0.0
    %2803 = vadd.xlane.f32.xlu0 %v2802
    %v2804 = vpop.xlane.xlu0 %2803
    %v2805 = vsel %vm2481, %v2757, 0.0
    %2806 = vadd.xlane.f32.xlu0 %v2805
    %v2807 = vpop.xlane.xlu0 %2806
    %v2808 = vsel %vm2481, %v2759, 0.0
    %2809 = vadd.xlane.f32.xlu0 %v2808
    %v2810 = vpop.xlane.xlu0 %2809
    %v2811 = vsel %vm2481, %v2761, 0.0
    %2812 = vadd.xlane.f32.xlu0 %v2811
    %v2813 = vpop.xlane.xlu0 %2812
    %v2814 = vsel %vm2481, %v2763, 0.0
    %2815 = vadd.xlane.f32.xlu0 %v2814
    %v2816 = vpop.xlane.xlu0 %2815
    %v2817 = vsel %vm2481, %v2765, 0.0
    %2818 = vadd.xlane.f32.xlu0 %v2817
    %v2819 = vpop.xlane.xlu0 %2818
    %v2820 = vsel %vm2481, %v2767, 0.0
    %2821 = vadd.xlane.f32.xlu0 %v2820
    %v2822 = vpop.xlane.xlu0 %2821
    %v2823 = vsel %vm2481, %v2769, 0.0
    %2824 = vadd.xlane.f32.xlu0 %v2823
    %v2825 = vpop.xlane.xlu0 %2824
    %v2826 = vsel %vm2481, %v2771, 0.0
    %2827 = vadd.xlane.f32.xlu0 %v2826
    %v2828 = vpop.xlane.xlu0 %2827
    %v2829 = vsel %vm2481, %v2773, 0.0
    %2830 = vadd.xlane.f32.xlu0 %v2829
    %v2831 = vpop.xlane.xlu0 %2830
    %v2832 = vsel %vm2481, %v2775, 0.0
    %2833 = vadd.xlane.f32.xlu0 %v2832
    %v2834 = vpop.xlane.xlu0 %2833
    %v2835 = vsel %vm2481, %v2777, 0.0
    %2836 = vadd.xlane.f32.xlu0 %v2835
    %v2837 = vpop.xlane.xlu0 %2836
    %v2838 = vsel %vm2481, %v2779, 0.0
    %2839 = vadd.xlane.f32.xlu0 %v2838
    %v2840 = vpop.xlane.xlu0 %2839
    %v2841 = vsel %vm2481, %v2781, 0.0
    %2842 = vadd.xlane.f32.xlu0 %v2841
    %v2843 = vpop.xlane.xlu0 %2842
    %v2844 = vsel %vm2481, %v2783, 0.0
    %2845 = vadd.xlane.f32.xlu0 %v2844
    %v2846 = vpop.xlane.xlu0 %2845
    %v2847 = vsel %vm2481, %v2785, 0.0
    %2848 = vadd.xlane.f32.xlu0 %v2847
    %v2849 = vpop.xlane.xlu0 %2848
    %v2850 = vmul.f32 %v9, %v2804
    %v2851 = vmul.f32 %v10, %v2807
    %v2852 = vmul.f32 %v11, %v2810
    %v2853 = vmul.f32 %v12, %v2813
    %v2854 = vmul.f32 %v13, %v2816
    %v2855 = vmul.f32 %v14, %v2819
    %v2856 = vmul.f32 %v15, %v2822
    %v2857 = vmul.f32 %v16, %v2825
    %v2858 = vmul.f32 %v17, %v2828
    %v2859 = vmul.f32 %v18, %v2831
    %v2860 = vmul.f32 %v19, %v2834
    %v2861 = vmul.f32 %v20, %v2837
    %v2862 = vmul.f32 %v21, %v2840
    %v2863 = vmul.f32 %v22, %v2843
    %v2864 = vmul.f32 %v23, %v2846
    %v2865 = vmul.f32 %v24, %v2849
    %v2866 = vmul.f32 %v2850, 0.33333334
    %v2867 = vmul.f32 %v2851, 0.33333334
    %v2868 = vmul.f32 %v2852, 0.33333334
    %v2869 = vmul.f32 %v2853, 0.33333334
    %v2870 = vmul.f32 %v2854, 0.33333334
    %v2871 = vmul.f32 %v2855, 0.33333334
    %v2872 = vmul.f32 %v2856, 0.33333334
    %v2873 = vmul.f32 %v2857, 0.33333334
    %v2874 = vmul.f32 %v2858, 0.33333334
    %v2875 = vmul.f32 %v2859, 0.33333334
    %v2876 = vmul.f32 %v2860, 0.33333334
    %v2877 = vmul.f32 %v2861, 0.33333334
    %v2878 = vmul.f32 %v2862, 0.33333334
    %v2879 = vmul.f32 %v2863, 0.33333334
    %v2880 = vmul.f32 %v2864, 0.33333334
    %v2881 = vmul.f32 %v2865, 0.33333334
    %vm2882 = vcmask 56368
    %v2883 = vsel %vm2882, %v429, 0.0
    %v2884 = vsel %vm2882, %v430, 0.0
    %v2885 = vadd.f32 %v2883, %v2884
    %v2886 = vrot.slane %v2885, 4
    %v2887 = vadd.f32 %v2885, %v2886
    %v2888 = vrot.slane %v2887, 2
    %v2889 = vadd.f32 %v2887, %v2888
    %v2890 = vrot.slane %v2889, 1
    %v2891 = vadd.f32 %v2889, %v2890
    %v2892 = vsel %vm2882, %v431, 0.0
    %v2893 = vsel %vm2882, %v432, 0.0
    %v2894 = vadd.f32 %v2892, %v2893
    %v2895 = vrot.slane %v2894, 4
    %v2896 = vadd.f32 %v2894, %v2895
    %v2897 = vrot.slane %v2896, 2
    %v2898 = vadd.f32 %v2896, %v2897
    %v2899 = vrot.slane %v2898, 1
    %v2900 = vadd.f32 %v2898, %v2899
    %v2901 = vsel %vm2882, %v433, 0.0
    %v2902 = vsel %vm2882, %v434, 0.0
    %v2903 = vadd.f32 %v2901, %v2902
    %v2904 = vrot.slane %v2903, 4
    %v2905 = vadd.f32 %v2903, %v2904
    %v2906 = vrot.slane %v2905, 2
    %v2907 = vadd.f32 %v2905, %v2906
    %v2908 = vrot.slane %v2907, 1
    %v2909 = vadd.f32 %v2907, %v2908
    %v2910 = vsel %vm2882, %v435, 0.0
    %v2911 = vsel %vm2882, %v436, 0.0
    %v2912 = vadd.f32 %v2910, %v2911
    %v2913 = vrot.slane %v2912, 4
    %v2914 = vadd.f32 %v2912, %v2913
    %v2915 = vrot.slane %v2914, 2
    %v2916 = vadd.f32 %v2914, %v2915
    %v2917 = vrot.slane %v2916, 1
    %v2918 = vadd.f32 %v2916, %v2917
    %v2919 = vsel %vm2882, %v437, 0.0
    %v2920 = vsel %vm2882, %v438, 0.0
    %v2921 = vadd.f32 %v2919, %v2920
    %v2922 = vrot.slane %v2921, 4
    %v2923 = vadd.f32 %v2921, %v2922
    %v2924 = vrot.slane %v2923, 2
    %v2925 = vadd.f32 %v2923, %v2924
    %v2926 = vrot.slane %v2925, 1
    %v2927 = vadd.f32 %v2925, %v2926
    %v2928 = vsel %vm2882, %v439, 0.0
    %v2929 = vsel %vm2882, %v440, 0.0
    %v2930 = vadd.f32 %v2928, %v2929
    %v2931 = vrot.slane %v2930, 4
    %v2932 = vadd.f32 %v2930, %v2931
    %v2933 = vrot.slane %v2932, 2
    %v2934 = vadd.f32 %v2932, %v2933
    %v2935 = vrot.slane %v2934, 1
    %v2936 = vadd.f32 %v2934, %v2935
    %v2937 = vsel %vm2882, %v441, 0.0
    %v2938 = vsel %vm2882, %v442, 0.0
    %v2939 = vadd.f32 %v2937, %v2938
    %v2940 = vrot.slane %v2939, 4
    %v2941 = vadd.f32 %v2939, %v2940
    %v2942 = vrot.slane %v2941, 2
    %v2943 = vadd.f32 %v2941, %v2942
    %v2944 = vrot.slane %v2943, 1
    %v2945 = vadd.f32 %v2943, %v2944
    %v2946 = vsel %vm2882, %v443, 0.0
    %v2947 = vsel %vm2882, %v444, 0.0
    %v2948 = vadd.f32 %v2946, %v2947
    %v2949 = vrot.slane %v2948, 4
    %v2950 = vadd.f32 %v2948, %v2949
    %v2951 = vrot.slane %v2950, 2
    %v2952 = vadd.f32 %v2950, %v2951
    %v2953 = vrot.slane %v2952, 1
    %v2954 = vadd.f32 %v2952, %v2953
    %v2955 = vsel %vm2882, %v845, 0.0
    %v2956 = vsel %vm2882, %v846, 0.0
    %v2957 = vadd.f32 %v2955, %v2956
    %v2958 = vrot.slane %v2957, 4
    %v2959 = vadd.f32 %v2957, %v2958
    %v2960 = vrot.slane %v2959, 2
    %v2961 = vadd.f32 %v2959, %v2960
    %v2962 = vrot.slane %v2961, 1
    %v2963 = vadd.f32 %v2961, %v2962
    %v2964 = vsel %vm2882, %v847, 0.0
    %v2965 = vsel %vm2882, %v848, 0.0
    %v2966 = vadd.f32 %v2964, %v2965
    %v2967 = vrot.slane %v2966, 4
    %v2968 = vadd.f32 %v2966, %v2967
    %v2969 = vrot.slane %v2968, 2
    %v2970 = vadd.f32 %v2968, %v2969
    %v2971 = vrot.slane %v2970, 1
    %v2972 = vadd.f32 %v2970, %v2971
    %v2973 = vsel %vm2882, %v849, 0.0
    %v2974 = vsel %vm2882, %v850, 0.0
    %v2975 = vadd.f32 %v2973, %v2974
    %v2976 = vrot.slane %v2975, 4
    %v2977 = vadd.f32 %v2975, %v2976
    %v2978 = vrot.slane %v2977, 2
    %v2979 = vadd.f32 %v2977, %v2978
    %v2980 = vrot.slane %v2979, 1
    %v2981 = vadd.f32 %v2979, %v2980
    %v2982 = vsel %vm2882, %v851, 0.0
    %v2983 = vsel %vm2882, %v852, 0.0
    %v2984 = vadd.f32 %v2982, %v2983
    %v2985 = vrot.slane %v2984, 4
    %v2986 = vadd.f32 %v2984, %v2985
    %v2987 = vrot.slane %v2986, 2
    %v2988 = vadd.f32 %v2986, %v2987
    %v2989 = vrot.slane %v2988, 1
    %v2990 = vadd.f32 %v2988, %v2989
    %v2991 = vsel %vm2882, %v853, 0.0
    %v2992 = vsel %vm2882, %v854, 0.0
    %v2993 = vadd.f32 %v2991, %v2992
    %v2994 = vrot.slane %v2993, 4
    %v2995 = vadd.f32 %v2993, %v2994
    %v2996 = vrot.slane %v2995, 2
    %v2997 = vadd.f32 %v2995, %v2996
    %v2998 = vrot.slane %v2997, 1
    %v2999 = vadd.f32 %v2997, %v2998
    %v3000 = vsel %vm2882, %v855, 0.0
    %v3001 = vsel %vm2882, %v856, 0.0
    %v3002 = vadd.f32 %v3000, %v3001
    %v3003 = vrot.slane %v3002, 4
    %v3004 = vadd.f32 %v3002, %v3003
    %v3005 = vrot.slane %v3004, 2
    %v3006 = vadd.f32 %v3004, %v3005
    %v3007 = vrot.slane %v3006, 1
    %v3008 = vadd.f32 %v3006, %v3007
    %v3009 = vsel %vm2882, %v857, 0.0
    %v3010 = vsel %vm2882, %v858, 0.0
    %v3011 = vadd.f32 %v3009, %v3010
    %v3012 = vrot.slane %v3011, 4
    %v3013 = vadd.f32 %v3011, %v3012
    %v3014 = vrot.slane %v3013, 2
    %v3015 = vadd.f32 %v3013, %v3014
    %v3016 = vrot.slane %v3015, 1
    %v3017 = vadd.f32 %v3015, %v3016
    %v3018 = vsel %vm2882, %v859, 0.0
    %v3019 = vsel %vm2882, %v860, 0.0
    %v3020 = vadd.f32 %v3018, %v3019
    %v3021 = vrot.slane %v3020, 4
    %v3022 = vadd.f32 %v3020, %v3021
    %v3023 = vrot.slane %v3022, 2
    %v3024 = vadd.f32 %v3022, %v3023
    %v3025 = vrot.slane %v3024, 1
    %v3026 = vadd.f32 %v3024, %v3025
    %v3027 = vsel %vm2882, %v9, 0.0
    %v3028 = vsel %vm2882, %v10, 0.0
    %v3029 = vadd.f32 %v3027, %v3028
    %v3030 = vrot.slane %v3029, 4
    %v3031 = vadd.f32 %v3029, %v3030
    %v3032 = vrot.slane %v3031, 2
    %v3033 = vadd.f32 %v3031, %v3032
    %v3034 = vrot.slane %v3033, 1
    %v3035 = vadd.f32 %v3033, %v3034
    %v3036 = vsel %vm2882, %v11, 0.0
    %v3037 = vsel %vm2882, %v12, 0.0
    %v3038 = vadd.f32 %v3036, %v3037
    %v3039 = vrot.slane %v3038, 4
    %v3040 = vadd.f32 %v3038, %v3039
    %v3041 = vrot.slane %v3040, 2
    %v3042 = vadd.f32 %v3040, %v3041
    %v3043 = vrot.slane %v3042, 1
    %v3044 = vadd.f32 %v3042, %v3043
    %v3045 = vsel %vm2882, %v13, 0.0
    %v3046 = vsel %vm2882, %v14, 0.0
    %v3047 = vadd.f32 %v3045, %v3046
    %v3048 = vrot.slane %v3047, 4
    %v3049 = vadd.f32 %v3047, %v3048
    %v3050 = vrot.slane %v3049, 2
    %v3051 = vadd.f32 %v3049, %v3050
    %v3052 = vrot.slane %v3051, 1
    %v3053 = vadd.f32 %v3051, %v3052
    %v3054 = vsel %vm2882, %v15, 0.0
    %v3055 = vsel %vm2882, %v16, 0.0
    %v3056 = vadd.f32 %v3054, %v3055
    %v3057 = vrot.slane %v3056, 4
    %v3058 = vadd.f32 %v3056, %v3057
    %v3059 = vrot.slane %v3058, 2
    %v3060 = vadd.f32 %v3058, %v3059
    %v3061 = vrot.slane %v3060, 1
    %v3062 = vadd.f32 %v3060, %v3061
    %v3063 = vsel %vm2882, %v17, 0.0
    %v3064 = vsel %vm2882, %v18, 0.0
    %v3065 = vadd.f32 %v3063, %v3064
    %v3066 = vrot.slane %v3065, 4
    %v3067 = vadd.f32 %v3065, %v3066
    %v3068 = vrot.slane %v3067, 2
    %v3069 = vadd.f32 %v3067, %v3068
    %v3070 = vrot.slane %v3069, 1
    %v3071 = vadd.f32 %v3069, %v3070
    %v3072 = vsel %vm2882, %v19, 0.0
    %v3073 = vsel %vm2882, %v20, 0.0
    %v3074 = vadd.f32 %v3072, %v3073
    %v3075 = vrot.slane %v3074, 4
    %v3076 = vadd.f32 %v3074, %v3075
    %v3077 = vrot.slane %v3076, 2
    %v3078 = vadd.f32 %v3076, %v3077
    %v3079 = vrot.slane %v3078, 1
    %v3080 = vadd.f32 %v3078, %v3079
    %v3081 = vsel %vm2882, %v21, 0.0
    %v3082 = vsel %vm2882, %v22, 0.0
    %v3083 = vadd.f32 %v3081, %v3082
    %v3084 = vrot.slane %v3083, 4
    %v3085 = vadd.f32 %v3083, %v3084
    %v3086 = vrot.slane %v3085, 2
    %v3087 = vadd.f32 %v3085, %v3086
    %v3088 = vrot.slane %v3087, 1
    %v3089 = vadd.f32 %v3087, %v3088
    %v3090 = vsel %vm2882, %v23, 0.0
    %v3091 = vsel %vm2882, %v24, 0.0
    %v3092 = vadd.f32 %v3090, %v3091
    %v3093 = vrot.slane %v3092, 4
    %v3094 = vadd.f32 %v3092, %v3093
    %v3095 = vrot.slane %v3094, 2
    %v3096 = vadd.f32 %v3094, %v3095
    %v3097 = vrot.slane %v3096, 1
    %v3098 = vadd.f32 %v3096, %v3097
    %vm3099 = vcmask 80968
    %v3100 = vsel %vm3099, %v1005, 0.0
    %v3101 = vsel %vm3099, %v1006, 0.0
    %v3102 = vadd.f32 %v3100, %v3101
    %v3103 = vrot.slane %v3102, 4
    %v3104 = vadd.f32 %v3102, %v3103
    %v3105 = vrot.slane %v3104, 2
    %v3106 = vadd.f32 %v3104, %v3105
    %v3107 = vrot.slane %v3106, 1
    %v3108 = vadd.f32 %v3106, %v3107
    %v3109 = vsel %vm3099, %v1007, 0.0
    %v3110 = vsel %vm3099, %v1008, 0.0
    %v3111 = vadd.f32 %v3109, %v3110
    %v3112 = vrot.slane %v3111, 4
    %v3113 = vadd.f32 %v3111, %v3112
    %v3114 = vrot.slane %v3113, 2
    %v3115 = vadd.f32 %v3113, %v3114
    %v3116 = vrot.slane %v3115, 1
    %v3117 = vadd.f32 %v3115, %v3116
    %v3118 = vsel %vm3099, %v1009, 0.0
    %v3119 = vsel %vm3099, %v1010, 0.0
    %v3120 = vadd.f32 %v3118, %v3119
    %v3121 = vrot.slane %v3120, 4
    %v3122 = vadd.f32 %v3120, %v3121
    %v3123 = vrot.slane %v3122, 2
    %v3124 = vadd.f32 %v3122, %v3123
    %v3125 = vrot.slane %v3124, 1
    %v3126 = vadd.f32 %v3124, %v3125
    %v3127 = vsel %vm3099, %v1011, 0.0
    %v3128 = vsel %vm3099, %v1012, 0.0
    %v3129 = vadd.f32 %v3127, %v3128
    %v3130 = vrot.slane %v3129, 4
    %v3131 = vadd.f32 %v3129, %v3130
    %v3132 = vrot.slane %v3131, 2
    %v3133 = vadd.f32 %v3131, %v3132
    %v3134 = vrot.slane %v3133, 1
    %v3135 = vadd.f32 %v3133, %v3134
    %v3136 = vsel %vm3099, %v1013, 0.0
    %v3137 = vsel %vm3099, %v1014, 0.0
    %v3138 = vadd.f32 %v3136, %v3137
    %v3139 = vrot.slane %v3138, 4
    %v3140 = vadd.f32 %v3138, %v3139
    %v3141 = vrot.slane %v3140, 2
    %v3142 = vadd.f32 %v3140, %v3141
    %v3143 = vrot.slane %v3142, 1
    %v3144 = vadd.f32 %v3142, %v3143
    %v3145 = vsel %vm3099, %v1015, 0.0
    %v3146 = vsel %vm3099, %v1016, 0.0
    %v3147 = vadd.f32 %v3145, %v3146
    %v3148 = vrot.slane %v3147, 4
    %v3149 = vadd.f32 %v3147, %v3148
    %v3150 = vrot.slane %v3149, 2
    %v3151 = vadd.f32 %v3149, %v3150
    %v3152 = vrot.slane %v3151, 1
    %v3153 = vadd.f32 %v3151, %v3152
    %v3154 = vsel %vm3099, %v1017, 0.0
    %v3155 = vsel %vm3099, %v1018, 0.0
    %v3156 = vadd.f32 %v3154, %v3155
    %v3157 = vrot.slane %v3156, 4
    %v3158 = vadd.f32 %v3156, %v3157
    %v3159 = vrot.slane %v3158, 2
    %v3160 = vadd.f32 %v3158, %v3159
    %v3161 = vrot.slane %v3160, 1
    %v3162 = vadd.f32 %v3160, %v3161
    %v3163 = vsel %vm3099, %v1019, 0.0
    %v3164 = vsel %vm3099, %v1020, 0.0
    %v3165 = vadd.f32 %v3163, %v3164
    %v3166 = vrot.slane %v3165, 4
    %v3167 = vadd.f32 %v3165, %v3166
    %v3168 = vrot.slane %v3167, 2
    %v3169 = vadd.f32 %v3167, %v3168
    %v3170 = vrot.slane %v3169, 1
    %v3171 = vadd.f32 %v3169, %v3170
    %v3172 = vsel %vm3099, %v1389, 0.0
    %v3173 = vsel %vm3099, %v1390, 0.0
    %v3174 = vadd.f32 %v3172, %v3173
    %v3175 = vrot.slane %v3174, 4
    %v3176 = vadd.f32 %v3174, %v3175
    %v3177 = vrot.slane %v3176, 2
    %v3178 = vadd.f32 %v3176, %v3177
    %v3179 = vrot.slane %v3178, 1
    %v3180 = vadd.f32 %v3178, %v3179
    %v3181 = vsel %vm3099, %v1391, 0.0
    %v3182 = vsel %vm3099, %v1392, 0.0
    %v3183 = vadd.f32 %v3181, %v3182
    %v3184 = vrot.slane %v3183, 4
    %v3185 = vadd.f32 %v3183, %v3184
    %v3186 = vrot.slane %v3185, 2
    %v3187 = vadd.f32 %v3185, %v3186
    %v3188 = vrot.slane %v3187, 1
    %v3189 = vadd.f32 %v3187, %v3188
    %v3190 = vsel %vm3099, %v1393, 0.0
    %v3191 = vsel %vm3099, %v1394, 0.0
    %v3192 = vadd.f32 %v3190, %v3191
    %v3193 = vrot.slane %v3192, 4
    %v3194 = vadd.f32 %v3192, %v3193
    %v3195 = vrot.slane %v3194, 2
    %v3196 = vadd.f32 %v3194, %v3195
    %v3197 = vrot.slane %v3196, 1
    %v3198 = vadd.f32 %v3196, %v3197
    %v3199 = vsel %vm3099, %v1395, 0.0
    %v3200 = vsel %vm3099, %v1396, 0.0
    %v3201 = vadd.f32 %v3199, %v3200
    %v3202 = vrot.slane %v3201, 4
    %v3203 = vadd.f32 %v3201, %v3202
    %v3204 = vrot.slane %v3203, 2
    %v3205 = vadd.f32 %v3203, %v3204
    %v3206 = vrot.slane %v3205, 1
    %v3207 = vadd.f32 %v3205, %v3206
    %v3208 = vsel %vm3099, %v1397, 0.0
    %v3209 = vsel %vm3099, %v1398, 0.0
    %v3210 = vadd.f32 %v3208, %v3209
    %v3211 = vrot.slane %v3210, 4
    %v3212 = vadd.f32 %v3210, %v3211
    %v3213 = vrot.slane %v3212, 2
    %v3214 = vadd.f32 %v3212, %v3213
    %v3215 = vrot.slane %v3214, 1
    %v3216 = vadd.f32 %v3214, %v3215
    %v3217 = vsel %vm3099, %v1399, 0.0
    %v3218 = vsel %vm3099, %v1400, 0.0
    %v3219 = vadd.f32 %v3217, %v3218
    %v3220 = vrot.slane %v3219, 4
    %v3221 = vadd.f32 %v3219, %v3220
    %v3222 = vrot.slane %v3221, 2
    %v3223 = vadd.f32 %v3221, %v3222
    %v3224 = vrot.slane %v3223, 1
    %v3225 = vadd.f32 %v3223, %v3224
    %v3226 = vsel %vm3099, %v1401, 0.0
    %v3227 = vsel %vm3099, %v1402, 0.0
    %v3228 = vadd.f32 %v3226, %v3227
    %v3229 = vrot.slane %v3228, 4
    %v3230 = vadd.f32 %v3228, %v3229
    %v3231 = vrot.slane %v3230, 2
    %v3232 = vadd.f32 %v3230, %v3231
    %v3233 = vrot.slane %v3232, 1
    %v3234 = vadd.f32 %v3232, %v3233
    %v3235 = vsel %vm3099, %v1403, 0.0
    %v3236 = vsel %vm3099, %v1404, 0.0
    %v3237 = vadd.f32 %v3235, %v3236
    %v3238 = vrot.slane %v3237, 4
    %v3239 = vadd.f32 %v3237, %v3238
    %v3240 = vrot.slane %v3239, 2
    %v3241 = vadd.f32 %v3239, %v3240
    %v3242 = vrot.slane %v3241, 1
    %v3243 = vadd.f32 %v3241, %v3242
    %vm3244 = vcmask 138368
    %v3245 = vsel %vm3244, %v1903, 0.0
    %v3246 = vsel %vm3244, %v1904, 0.0
    %v3247 = vadd.f32 %v3245, %v3246
    %v3248 = vrot.slane %v3247, 4
    %v3249 = vadd.f32 %v3247, %v3248
    %v3250 = vrot.slane %v3249, 2
    %v3251 = vadd.f32 %v3249, %v3250
    %v3252 = vrot.slane %v3251, 1
    %v3253 = vadd.f32 %v3251, %v3252
    %v3254 = vsel %vm3244, %v1905, 0.0
    %v3255 = vsel %vm3244, %v1906, 0.0
    %v3256 = vadd.f32 %v3254, %v3255
    %v3257 = vrot.slane %v3256, 4
    %v3258 = vadd.f32 %v3256, %v3257
    %v3259 = vrot.slane %v3258, 2
    %v3260 = vadd.f32 %v3258, %v3259
    %v3261 = vrot.slane %v3260, 1
    %v3262 = vadd.f32 %v3260, %v3261
    %v3263 = vsel %vm3244, %v1907, 0.0
    %v3264 = vsel %vm3244, %v1908, 0.0
    %v3265 = vadd.f32 %v3263, %v3264
    %v3266 = vrot.slane %v3265, 4
    %v3267 = vadd.f32 %v3265, %v3266
    %v3268 = vrot.slane %v3267, 2
    %v3269 = vadd.f32 %v3267, %v3268
    %v3270 = vrot.slane %v3269, 1
    %v3271 = vadd.f32 %v3269, %v3270
    %v3272 = vsel %vm3244, %v1909, 0.0
    %v3273 = vsel %vm3244, %v1910, 0.0
    %v3274 = vadd.f32 %v3272, %v3273
    %v3275 = vrot.slane %v3274, 4
    %v3276 = vadd.f32 %v3274, %v3275
    %v3277 = vrot.slane %v3276, 2
    %v3278 = vadd.f32 %v3276, %v3277
    %v3279 = vrot.slane %v3278, 1
    %v3280 = vadd.f32 %v3278, %v3279
    %v3281 = vsel %vm3244, %v1911, 0.0
    %v3282 = vsel %vm3244, %v1912, 0.0
    %v3283 = vadd.f32 %v3281, %v3282
    %v3284 = vrot.slane %v3283, 4
    %v3285 = vadd.f32 %v3283, %v3284
    %v3286 = vrot.slane %v3285, 2
    %v3287 = vadd.f32 %v3285, %v3286
    %v3288 = vrot.slane %v3287, 1
    %v3289 = vadd.f32 %v3287, %v3288
    %v3290 = vsel %vm3244, %v1913, 0.0
    %v3291 = vsel %vm3244, %v1914, 0.0
    %v3292 = vadd.f32 %v3290, %v3291
    %v3293 = vrot.slane %v3292, 4
    %v3294 = vadd.f32 %v3292, %v3293
    %v3295 = vrot.slane %v3294, 2
    %v3296 = vadd.f32 %v3294, %v3295
    %v3297 = vrot.slane %v3296, 1
    %v3298 = vadd.f32 %v3296, %v3297
    %v3299 = vsel %vm3244, %v1915, 0.0
    %v3300 = vsel %vm3244, %v1916, 0.0
    %v3301 = vadd.f32 %v3299, %v3300
    %v3302 = vrot.slane %v3301, 4
    %v3303 = vadd.f32 %v3301, %v3302
    %v3304 = vrot.slane %v3303, 2
    %v3305 = vadd.f32 %v3303, %v3304
    %v3306 = vrot.slane %v3305, 1
    %v3307 = vadd.f32 %v3305, %v3306
    %v3308 = vsel %vm3244, %v1917, 0.0
    %v3309 = vsel %vm3244, %v1918, 0.0
    %v3310 = vadd.f32 %v3308, %v3309
    %v3311 = vrot.slane %v3310, 4
    %v3312 = vadd.f32 %v3310, %v3311
    %v3313 = vrot.slane %v3312, 2
    %v3314 = vadd.f32 %v3312, %v3313
    %v3315 = vrot.slane %v3314, 1
    %v3316 = vadd.f32 %v3314, %v3315
    %v3317 = vsel %vm3244, %v2321, 0.0
    %v3318 = vsel %vm3244, %v2322, 0.0
    %v3319 = vadd.f32 %v3317, %v3318
    %v3320 = vrot.slane %v3319, 4
    %v3321 = vadd.f32 %v3319, %v3320
    %v3322 = vrot.slane %v3321, 2
    %v3323 = vadd.f32 %v3321, %v3322
    %v3324 = vrot.slane %v3323, 1
    %v3325 = vadd.f32 %v3323, %v3324
    %v3326 = vsel %vm3244, %v2323, 0.0
    %v3327 = vsel %vm3244, %v2324, 0.0
    %v3328 = vadd.f32 %v3326, %v3327
    %v3329 = vrot.slane %v3328, 4
    %v3330 = vadd.f32 %v3328, %v3329
    %v3331 = vrot.slane %v3330, 2
    %v3332 = vadd.f32 %v3330, %v3331
    %v3333 = vrot.slane %v3332, 1
    %v3334 = vadd.f32 %v3332, %v3333
    %v3335 = vsel %vm3244, %v2325, 0.0
    %v3336 = vsel %vm3244, %v2326, 0.0
    %v3337 = vadd.f32 %v3335, %v3336
    %v3338 = vrot.slane %v3337, 4
    %v3339 = vadd.f32 %v3337, %v3338
    %v3340 = vrot.slane %v3339, 2
    %v3341 = vadd.f32 %v3339, %v3340
    %v3342 = vrot.slane %v3341, 1
    %v3343 = vadd.f32 %v3341, %v3342
    %v3344 = vsel %vm3244, %v2327, 0.0
    %v3345 = vsel %vm3244, %v2328, 0.0
    %v3346 = vadd.f32 %v3344, %v3345
    %v3347 = vrot.slane %v3346, 4
    %v3348 = vadd.f32 %v3346, %v3347
    %v3349 = vrot.slane %v3348, 2
    %v3350 = vadd.f32 %v3348, %v3349
    %v3351 = vrot.slane %v3350, 1
    %v3352 = vadd.f32 %v3350, %v3351
    %v3353 = vsel %vm3244, %v2329, 0.0
    %v3354 = vsel %vm3244, %v2330, 0.0
    %v3355 = vadd.f32 %v3353, %v3354
    %v3356 = vrot.slane %v3355, 4
    %v3357 = vadd.f32 %v3355, %v3356
    %v3358 = vrot.slane %v3357, 2
    %v3359 = vadd.f32 %v3357, %v3358
    %v3360 = vrot.slane %v3359, 1
    %v3361 = vadd.f32 %v3359, %v3360
    %v3362 = vsel %vm3244, %v2331, 0.0
    %v3363 = vsel %vm3244, %v2332, 0.0
    %v3364 = vadd.f32 %v3362, %v3363
    %v3365 = vrot.slane %v3364, 4
    %v3366 = vadd.f32 %v3364, %v3365
    %v3367 = vrot.slane %v3366, 2
    %v3368 = vadd.f32 %v3366, %v3367
    %v3369 = vrot.slane %v3368, 1
    %v3370 = vadd.f32 %v3368, %v3369
    %v3371 = vsel %vm3244, %v2333, 0.0
    %v3372 = vsel %vm3244, %v2334, 0.0
    %v3373 = vadd.f32 %v3371, %v3372
    %v3374 = vrot.slane %v3373, 4
    %v3375 = vadd.f32 %v3373, %v3374
    %v3376 = vrot.slane %v3375, 2
    %v3377 = vadd.f32 %v3375, %v3376
    %v3378 = vrot.slane %v3377, 1
    %v3379 = vadd.f32 %v3377, %v3378
    %v3380 = vsel %vm3244, %v2335, 0.0
    %v3381 = vsel %vm3244, %v2336, 0.0
    %v3382 = vadd.f32 %v3380, %v3381
    %v3383 = vrot.slane %v3382, 4
    %v3384 = vadd.f32 %v3382, %v3383
    %v3385 = vrot.slane %v3384, 2
    %v3386 = vadd.f32 %v3384, %v3385
    %v3387 = vrot.slane %v3386, 1
    %v3388 = vadd.f32 %v3386, %v3387
    %vm3389 = vcmask 146568
    %v3390 = vsel %vm3389, %v2546, 0.0
    %v3391 = vsel %vm3389, %v2547, 0.0
    %v3392 = vadd.f32 %v3390, %v3391
    %v3393 = vrot.slane %v3392, 4
    %v3394 = vadd.f32 %v3392, %v3393
    %v3395 = vrot.slane %v3394, 2
    %v3396 = vadd.f32 %v3394, %v3395
    %v3397 = vrot.slane %v3396, 1
    %v3398 = vadd.f32 %v3396, %v3397
    %v3399 = vsel %vm3389, %v2548, 0.0
    %v3400 = vsel %vm3389, %v2549, 0.0
    %v3401 = vadd.f32 %v3399, %v3400
    %v3402 = vrot.slane %v3401, 4
    %v3403 = vadd.f32 %v3401, %v3402
    %v3404 = vrot.slane %v3403, 2
    %v3405 = vadd.f32 %v3403, %v3404
    %v3406 = vrot.slane %v3405, 1
    %v3407 = vadd.f32 %v3405, %v3406
    %v3408 = vsel %vm3389, %v2550, 0.0
    %v3409 = vsel %vm3389, %v2551, 0.0
    %v3410 = vadd.f32 %v3408, %v3409
    %v3411 = vrot.slane %v3410, 4
    %v3412 = vadd.f32 %v3410, %v3411
    %v3413 = vrot.slane %v3412, 2
    %v3414 = vadd.f32 %v3412, %v3413
    %v3415 = vrot.slane %v3414, 1
    %v3416 = vadd.f32 %v3414, %v3415
    %v3417 = vsel %vm3389, %v2552, 0.0
    %v3418 = vsel %vm3389, %v2553, 0.0
    %v3419 = vadd.f32 %v3417, %v3418
    %v3420 = vrot.slane %v3419, 4
    %v3421 = vadd.f32 %v3419, %v3420
    %v3422 = vrot.slane %v3421, 2
    %v3423 = vadd.f32 %v3421, %v3422
    %v3424 = vrot.slane %v3423, 1
    %v3425 = vadd.f32 %v3423, %v3424
    %v3426 = vsel %vm3389, %v2554, 0.0
    %v3427 = vsel %vm3389, %v2555, 0.0
    %v3428 = vadd.f32 %v3426, %v3427
    %v3429 = vrot.slane %v3428, 4
    %v3430 = vadd.f32 %v3428, %v3429
    %v3431 = vrot.slane %v3430, 2
    %v3432 = vadd.f32 %v3430, %v3431
    %v3433 = vrot.slane %v3432, 1
    %v3434 = vadd.f32 %v3432, %v3433
    %v3435 = vsel %vm3389, %v2556, 0.0
    %v3436 = vsel %vm3389, %v2557, 0.0
    %v3437 = vadd.f32 %v3435, %v3436
    %v3438 = vrot.slane %v3437, 4
    %v3439 = vadd.f32 %v3437, %v3438
    %v3440 = vrot.slane %v3439, 2
    %v3441 = vadd.f32 %v3439, %v3440
    %v3442 = vrot.slane %v3441, 1
    %v3443 = vadd.f32 %v3441, %v3442
    %v3444 = vsel %vm3389, %v2558, 0.0
    %v3445 = vsel %vm3389, %v2559, 0.0
    %v3446 = vadd.f32 %v3444, %v3445
    %v3447 = vrot.slane %v3446, 4
    %v3448 = vadd.f32 %v3446, %v3447
    %v3449 = vrot.slane %v3448, 2
    %v3450 = vadd.f32 %v3448, %v3449
    %v3451 = vrot.slane %v3450, 1
    %v3452 = vadd.f32 %v3450, %v3451
    %v3453 = vsel %vm3389, %v2560, 0.0
    %v3454 = vsel %vm3389, %v2561, 0.0
    %v3455 = vadd.f32 %v3453, %v3454
    %v3456 = vrot.slane %v3455, 4
    %v3457 = vadd.f32 %v3455, %v3456
    %v3458 = vrot.slane %v3457, 2
    %v3459 = vadd.f32 %v3457, %v3458
    %v3460 = vrot.slane %v3459, 1
    %v3461 = vadd.f32 %v3459, %v3460
    %v3462 = vsel %vm3389, %v2866, 0.0
    %v3463 = vsel %vm3389, %v2867, 0.0
    %v3464 = vadd.f32 %v3462, %v3463
    %v3465 = vrot.slane %v3464, 4
    %v3466 = vadd.f32 %v3464, %v3465
    %v3467 = vrot.slane %v3466, 2
    %v3468 = vadd.f32 %v3466, %v3467
    %v3469 = vrot.slane %v3468, 1
    %v3470 = vadd.f32 %v3468, %v3469
    %v3471 = vsel %vm3389, %v2868, 0.0
    %v3472 = vsel %vm3389, %v2869, 0.0
    %v3473 = vadd.f32 %v3471, %v3472
    %v3474 = vrot.slane %v3473, 4
    %v3475 = vadd.f32 %v3473, %v3474
    %v3476 = vrot.slane %v3475, 2
    %v3477 = vadd.f32 %v3475, %v3476
    %v3478 = vrot.slane %v3477, 1
    %v3479 = vadd.f32 %v3477, %v3478
    %v3480 = vsel %vm3389, %v2870, 0.0
    %v3481 = vsel %vm3389, %v2871, 0.0
    %v3482 = vadd.f32 %v3480, %v3481
    %v3483 = vrot.slane %v3482, 4
    %v3484 = vadd.f32 %v3482, %v3483
    %v3485 = vrot.slane %v3484, 2
    %v3486 = vadd.f32 %v3484, %v3485
    %v3487 = vrot.slane %v3486, 1
    %v3488 = vadd.f32 %v3486, %v3487
    %v3489 = vsel %vm3389, %v2872, 0.0
    %v3490 = vsel %vm3389, %v2873, 0.0
    %v3491 = vadd.f32 %v3489, %v3490
    %v3492 = vrot.slane %v3491, 4
    %v3493 = vadd.f32 %v3491, %v3492
    %v3494 = vrot.slane %v3493, 2
    %v3495 = vadd.f32 %v3493, %v3494
    %v3496 = vrot.slane %v3495, 1
    %v3497 = vadd.f32 %v3495, %v3496
    %v3498 = vsel %vm3389, %v2874, 0.0
    %v3499 = vsel %vm3389, %v2875, 0.0
    %v3500 = vadd.f32 %v3498, %v3499
    %v3501 = vrot.slane %v3500, 4
    %v3502 = vadd.f32 %v3500, %v3501
    %v3503 = vrot.slane %v3502, 2
    %v3504 = vadd.f32 %v3502, %v3503
    %v3505 = vrot.slane %v3504, 1
    %v3506 = vadd.f32 %v3504, %v3505
    %v3507 = vsel %vm3389, %v2876, 0.0
    %v3508 = vsel %vm3389, %v2877, 0.0
    %v3509 = vadd.f32 %v3507, %v3508
    %v3510 = vrot.slane %v3509, 4
    %v3511 = vadd.f32 %v3509, %v3510
    %v3512 = vrot.slane %v3511, 2
    %v3513 = vadd.f32 %v3511, %v3512
    %v3514 = vrot.slane %v3513, 1
    %v3515 = vadd.f32 %v3513, %v3514
    %v3516 = vsel %vm3389, %v2878, 0.0
    %v3517 = vsel %vm3389, %v2879, 0.0
    %v3518 = vadd.f32 %v3516, %v3517
    %v3519 = vrot.slane %v3518, 4
    %v3520 = vadd.f32 %v3518, %v3519
    %v3521 = vrot.slane %v3520, 2
    %v3522 = vadd.f32 %v3520, %v3521
    %v3523 = vrot.slane %v3522, 1
    %v3524 = vadd.f32 %v3522, %v3523
    %v3525 = vsel %vm3389, %v2880, 0.0
    %v3526 = vsel %vm3389, %v2881, 0.0
    %v3527 = vadd.f32 %v3525, %v3526
    %v3528 = vrot.slane %v3527, 4
    %v3529 = vadd.f32 %v3527, %v3528
    %v3530 = vrot.slane %v3529, 2
    %v3531 = vadd.f32 %v3529, %v3530
    %v3532 = vrot.slane %v3531, 1
    %v3533 = vadd.f32 %v3531, %v3532
    %v3534 = vsel %vm3099, %v9, 0.0
    %v3535 = vsel %vm3099, %v10, 0.0
    %v3536 = vadd.f32 %v3534, %v3535
    %v3537 = vrot.slane %v3536, 4
    %v3538 = vadd.f32 %v3536, %v3537
    %v3539 = vrot.slane %v3538, 2
    %v3540 = vadd.f32 %v3538, %v3539
    %v3541 = vrot.slane %v3540, 1
    %v3542 = vadd.f32 %v3540, %v3541
    %v3543 = vsel %vm3099, %v11, 0.0
    %v3544 = vsel %vm3099, %v12, 0.0
    %v3545 = vadd.f32 %v3543, %v3544
    %v3546 = vrot.slane %v3545, 4
    %v3547 = vadd.f32 %v3545, %v3546
    %v3548 = vrot.slane %v3547, 2
    %v3549 = vadd.f32 %v3547, %v3548
    %v3550 = vrot.slane %v3549, 1
    %v3551 = vadd.f32 %v3549, %v3550
    %v3552 = vsel %vm3099, %v13, 0.0
    %v3553 = vsel %vm3099, %v14, 0.0
    %v3554 = vadd.f32 %v3552, %v3553
    %v3555 = vrot.slane %v3554, 4
    %v3556 = vadd.f32 %v3554, %v3555
    %v3557 = vrot.slane %v3556, 2
    %v3558 = vadd.f32 %v3556, %v3557
    %v3559 = vrot.slane %v3558, 1
    %v3560 = vadd.f32 %v3558, %v3559
    %v3561 = vsel %vm3099, %v15, 0.0
    %v3562 = vsel %vm3099, %v16, 0.0
    %v3563 = vadd.f32 %v3561, %v3562
    %v3564 = vrot.slane %v3563, 4
    %v3565 = vadd.f32 %v3563, %v3564
    %v3566 = vrot.slane %v3565, 2
    %v3567 = vadd.f32 %v3565, %v3566
    %v3568 = vrot.slane %v3567, 1
    %v3569 = vadd.f32 %v3567, %v3568
    %v3570 = vsel %vm3099, %v17, 0.0
    %v3571 = vsel %vm3099, %v18, 0.0
    %v3572 = vadd.f32 %v3570, %v3571
    %v3573 = vrot.slane %v3572, 4
    %v3574 = vadd.f32 %v3572, %v3573
    %v3575 = vrot.slane %v3574, 2
    %v3576 = vadd.f32 %v3574, %v3575
    %v3577 = vrot.slane %v3576, 1
    %v3578 = vadd.f32 %v3576, %v3577
    %v3579 = vsel %vm3099, %v19, 0.0
    %v3580 = vsel %vm3099, %v20, 0.0
    %v3581 = vadd.f32 %v3579, %v3580
    %v3582 = vrot.slane %v3581, 4
    %v3583 = vadd.f32 %v3581, %v3582
    %v3584 = vrot.slane %v3583, 2
    %v3585 = vadd.f32 %v3583, %v3584
    %v3586 = vrot.slane %v3585, 1
    %v3587 = vadd.f32 %v3585, %v3586
    %v3588 = vsel %vm3099, %v21, 0.0
    %v3589 = vsel %vm3099, %v22, 0.0
    %v3590 = vadd.f32 %v3588, %v3589
    %v3591 = vrot.slane %v3590, 4
    %v3592 = vadd.f32 %v3590, %v3591
    %v3593 = vrot.slane %v3592, 2
    %v3594 = vadd.f32 %v3592, %v3593
    %v3595 = vrot.slane %v3594, 1
    %v3596 = vadd.f32 %v3594, %v3595
    %v3597 = vsel %vm3099, %v23, 0.0
    %v3598 = vsel %vm3099, %v24, 0.0
    %v3599 = vadd.f32 %v3597, %v3598
    %v3600 = vrot.slane %v3599, 4
    %v3601 = vadd.f32 %v3599, %v3600
    %v3602 = vrot.slane %v3601, 2
    %v3603 = vadd.f32 %v3601, %v3602
    %v3604 = vrot.slane %v3603, 1
    %v3605 = vadd.f32 %v3603, %v3604
    %v3606 = vsel %vm3244, %v9, 0.0
    %v3607 = vsel %vm3244, %v10, 0.0
    %v3608 = vadd.f32 %v3606, %v3607
    %v3609 = vrot.slane %v3608, 4
    %v3610 = vadd.f32 %v3608, %v3609
    %v3611 = vrot.slane %v3610, 2
    %v3612 = vadd.f32 %v3610, %v3611
    %v3613 = vrot.slane %v3612, 1
    %v3614 = vadd.f32 %v3612, %v3613
    %v3615 = vsel %vm3244, %v11, 0.0
    %v3616 = vsel %vm3244, %v12, 0.0
    %v3617 = vadd.f32 %v3615, %v3616
    %v3618 = vrot.slane %v3617, 4
    %v3619 = vadd.f32 %v3617, %v3618
    %v3620 = vrot.slane %v3619, 2
    %v3621 = vadd.f32 %v3619, %v3620
    %v3622 = vrot.slane %v3621, 1
    %v3623 = vadd.f32 %v3621, %v3622
    %v3624 = vsel %vm3244, %v13, 0.0
    %v3625 = vsel %vm3244, %v14, 0.0
    %v3626 = vadd.f32 %v3624, %v3625
    %v3627 = vrot.slane %v3626, 4
    %v3628 = vadd.f32 %v3626, %v3627
    %v3629 = vrot.slane %v3628, 2
    %v3630 = vadd.f32 %v3628, %v3629
    %v3631 = vrot.slane %v3630, 1
    %v3632 = vadd.f32 %v3630, %v3631
    %v3633 = vsel %vm3244, %v15, 0.0
    %v3634 = vsel %vm3244, %v16, 0.0
    %v3635 = vadd.f32 %v3633, %v3634
    %v3636 = vrot.slane %v3635, 4
    %v3637 = vadd.f32 %v3635, %v3636
    %v3638 = vrot.slane %v3637, 2
    %v3639 = vadd.f32 %v3637, %v3638
    %v3640 = vrot.slane %v3639, 1
    %v3641 = vadd.f32 %v3639, %v3640
    %v3642 = vsel %vm3244, %v17, 0.0
    %v3643 = vsel %vm3244, %v18, 0.0
    %v3644 = vadd.f32 %v3642, %v3643
    %v3645 = vrot.slane %v3644, 4
    %v3646 = vadd.f32 %v3644, %v3645
    %v3647 = vrot.slane %v3646, 2
    %v3648 = vadd.f32 %v3646, %v3647
    %v3649 = vrot.slane %v3648, 1
    %v3650 = vadd.f32 %v3648, %v3649
    %v3651 = vsel %vm3244, %v19, 0.0
    %v3652 = vsel %vm3244, %v20, 0.0
    %v3653 = vadd.f32 %v3651, %v3652
    %v3654 = vrot.slane %v3653, 4
    %v3655 = vadd.f32 %v3653, %v3654
    %v3656 = vrot.slane %v3655, 2
    %v3657 = vadd.f32 %v3655, %v3656
    %v3658 = vrot.slane %v3657, 1
    %v3659 = vadd.f32 %v3657, %v3658
    %v3660 = vsel %vm3244, %v21, 0.0
    %v3661 = vsel %vm3244, %v22, 0.0
    %v3662 = vadd.f32 %v3660, %v3661
    %v3663 = vrot.slane %v3662, 4
    %v3664 = vadd.f32 %v3662, %v3663
    %v3665 = vrot.slane %v3664, 2
    %v3666 = vadd.f32 %v3664, %v3665
    %v3667 = vrot.slane %v3666, 1
    %v3668 = vadd.f32 %v3666, %v3667
    %v3669 = vsel %vm3244, %v23, 0.0
    %v3670 = vsel %vm3244, %v24, 0.0
    %v3671 = vadd.f32 %v3669, %v3670
    %v3672 = vrot.slane %v3671, 4
    %v3673 = vadd.f32 %v3671, %v3672
    %v3674 = vrot.slane %v3673, 2
    %v3675 = vadd.f32 %v3673, %v3674
    %v3676 = vrot.slane %v3675, 1
    %v3677 = vadd.f32 %v3675, %v3676
    %v3678 = vsel %vm3389, %v9, 0.0
    %v3679 = vsel %vm3389, %v10, 0.0
    %v3680 = vadd.f32 %v3678, %v3679
    %v3681 = vrot.slane %v3680, 4
    %v3682 = vadd.f32 %v3680, %v3681
    %v3683 = vrot.slane %v3682, 2
    %v3684 = vadd.f32 %v3682, %v3683
    %v3685 = vrot.slane %v3684, 1
    %v3686 = vadd.f32 %v3684, %v3685
    %v3687 = vsel %vm3389, %v11, 0.0
    %v3688 = vsel %vm3389, %v12, 0.0
    %v3689 = vadd.f32 %v3687, %v3688
    %v3690 = vrot.slane %v3689, 4
    %v3691 = vadd.f32 %v3689, %v3690
    %v3692 = vrot.slane %v3691, 2
    %v3693 = vadd.f32 %v3691, %v3692
    %v3694 = vrot.slane %v3693, 1
    %v3695 = vadd.f32 %v3693, %v3694
    %v3696 = vsel %vm3389, %v13, 0.0
    %v3697 = vsel %vm3389, %v14, 0.0
    %v3698 = vadd.f32 %v3696, %v3697
    %v3699 = vrot.slane %v3698, 4
    %v3700 = vadd.f32 %v3698, %v3699
    %v3701 = vrot.slane %v3700, 2
    %v3702 = vadd.f32 %v3700, %v3701
    %v3703 = vrot.slane %v3702, 1
    %v3704 = vadd.f32 %v3702, %v3703
    %v3705 = vsel %vm3389, %v15, 0.0
    %v3706 = vsel %vm3389, %v16, 0.0
    %v3707 = vadd.f32 %v3705, %v3706
    %v3708 = vrot.slane %v3707, 4
    %v3709 = vadd.f32 %v3707, %v3708
    %v3710 = vrot.slane %v3709, 2
    %v3711 = vadd.f32 %v3709, %v3710
    %v3712 = vrot.slane %v3711, 1
    %v3713 = vadd.f32 %v3711, %v3712
    %v3714 = vsel %vm3389, %v17, 0.0
    %v3715 = vsel %vm3389, %v18, 0.0
    %v3716 = vadd.f32 %v3714, %v3715
    %v3717 = vrot.slane %v3716, 4
    %v3718 = vadd.f32 %v3716, %v3717
    %v3719 = vrot.slane %v3718, 2
    %v3720 = vadd.f32 %v3718, %v3719
    %v3721 = vrot.slane %v3720, 1
    %v3722 = vadd.f32 %v3720, %v3721
    %v3723 = vsel %vm3389, %v19, 0.0
    %v3724 = vsel %vm3389, %v20, 0.0
    %v3725 = vadd.f32 %v3723, %v3724
    %v3726 = vrot.slane %v3725, 4
    %v3727 = vadd.f32 %v3725, %v3726
    %v3728 = vrot.slane %v3727, 2
    %v3729 = vadd.f32 %v3727, %v3728
    %v3730 = vrot.slane %v3729, 1
    %v3731 = vadd.f32 %v3729, %v3730
    %v3732 = vsel %vm3389, %v21, 0.0
    %v3733 = vsel %vm3389, %v22, 0.0
    %v3734 = vadd.f32 %v3732, %v3733
    %v3735 = vrot.slane %v3734, 4
    %v3736 = vadd.f32 %v3734, %v3735
    %v3737 = vrot.slane %v3736, 2
    %v3738 = vadd.f32 %v3736, %v3737
    %v3739 = vrot.slane %v3738, 1
    %v3740 = vadd.f32 %v3738, %v3739
    %v3741 = vsel %vm3389, %v23, 0.0
    %v3742 = vsel %vm3389, %v24, 0.0
    %v3743 = vadd.f32 %v3741, %v3742
    %v3744 = vrot.slane %v3743, 4
    %v3745 = vadd.f32 %v3743, %v3744
    %v3746 = vrot.slane %v3745, 2
    %v3747 = vadd.f32 %v3745, %v3746
    %v3748 = vrot.slane %v3747, 1
    %v3749 = vadd.f32 %v3747, %v3748
    %vm3758 = vcmask 1041409
    %v3759 = vsel %vm3758, %v2900, %v2891
    %vm3760 = vcmask 1042434
    %v3761 = vsel %vm3760, %v2909, %v3759
    %vm3762 = vcmask 1043459
    %v3763 = vsel %vm3762, %v2918, %v3761
    %vm3764 = vcmask 1044484
    %v3765 = vsel %vm3764, %v2927, %v3763
    %vm3766 = vcmask 1045509
    %v3767 = vsel %vm3766, %v2936, %v3765
    %vm3768 = vcmask 1046534
    %v3769 = vsel %vm3768, %v2945, %v3767
    %vm3770 = vcmask 1047559
    %v3771 = vsel %vm3770, %v2954, %v3769
    %3772 = vrot.lane.b32.xlu0 %v3771, 122
    %v3773 = vpop.permute.xlu0 %3772
    %v3783 = vsel %vm3758, %v2972, %v2963
    %v3784 = vsel %vm3760, %v2981, %v3783
    %v3785 = vsel %vm3762, %v2990, %v3784
    %v3786 = vsel %vm3764, %v2999, %v3785
    %v3787 = vsel %vm3766, %v3008, %v3786
    %v3788 = vsel %vm3768, %v3017, %v3787
    %v3789 = vsel %vm3770, %v3026, %v3788
    %3790 = vrot.lane.b32.xlu0 %v3789, 123
    %v3791 = vpop.permute.xlu0 %3790
    %v3801 = vsel %vm3758, %v3044, %v3035
    %v3802 = vsel %vm3760, %v3053, %v3801
    %v3803 = vsel %vm3762, %v3062, %v3802
    %v3804 = vsel %vm3764, %v3071, %v3803
    %v3805 = vsel %vm3766, %v3080, %v3804
    %v3806 = vsel %vm3768, %v3089, %v3805
    %v3807 = vsel %vm3770, %v3098, %v3806
    %3808 = vrot.lane.b32.xlu0 %v3807, 124
    %v3809 = vpop.permute.xlu0 %3808
    %v3819 = vsel %vm3758, %v3117, %v3108
    %v3820 = vsel %vm3760, %v3126, %v3819
    %v3821 = vsel %vm3762, %v3135, %v3820
    %v3822 = vsel %vm3764, %v3144, %v3821
    %v3823 = vsel %vm3766, %v3153, %v3822
    %v3824 = vsel %vm3768, %v3162, %v3823
    %v3825 = vsel %vm3770, %v3171, %v3824
    %3826 = vrot.lane.b32.xlu0 %v3825, 122
    %v3827 = vpop.permute.xlu0 %3826
    %v3837 = vsel %vm3758, %v3189, %v3180
    %v3838 = vsel %vm3760, %v3198, %v3837
    %v3839 = vsel %vm3762, %v3207, %v3838
    %v3840 = vsel %vm3764, %v3216, %v3839
    %v3841 = vsel %vm3766, %v3225, %v3840
    %v3842 = vsel %vm3768, %v3234, %v3841
    %v3843 = vsel %vm3770, %v3243, %v3842
    %3844 = vrot.lane.b32.xlu0 %v3843, 123
    %v3845 = vpop.permute.xlu0 %3844
    %v3855 = vsel %vm3758, %v3262, %v3253
    %v3856 = vsel %vm3760, %v3271, %v3855
    %v3857 = vsel %vm3762, %v3280, %v3856
    %v3858 = vsel %vm3764, %v3289, %v3857
    %v3859 = vsel %vm3766, %v3298, %v3858
    %v3860 = vsel %vm3768, %v3307, %v3859
    %v3861 = vsel %vm3770, %v3316, %v3860
    %3862 = vrot.lane.b32.xlu0 %v3861, 117
    %v3863 = vpop.permute.xlu0 %3862
    %v3873 = vsel %vm3758, %v3334, %v3325
    %v3874 = vsel %vm3760, %v3343, %v3873
    %v3875 = vsel %vm3762, %v3352, %v3874
    %v3876 = vsel %vm3764, %v3361, %v3875
    %v3877 = vsel %vm3766, %v3370, %v3876
    %v3878 = vsel %vm3768, %v3379, %v3877
    %v3879 = vsel %vm3770, %v3388, %v3878
    %3880 = vrot.lane.b32.xlu0 %v3879, 118
    %v3881 = vpop.permute.xlu0 %3880
    %v3891 = vsel %vm3758, %v3407, %v3398
    %v3892 = vsel %vm3760, %v3416, %v3891
    %v3893 = vsel %vm3762, %v3425, %v3892
    %v3894 = vsel %vm3764, %v3434, %v3893
    %v3895 = vsel %vm3766, %v3443, %v3894
    %v3896 = vsel %vm3768, %v3452, %v3895
    %v3897 = vsel %vm3770, %v3461, %v3896
    %3898 = vrot.lane.b32.xlu0 %v3897, 118
    %v3899 = vpop.permute.xlu0 %3898
    %v3909 = vsel %vm3758, %v3479, %v3470
    %v3910 = vsel %vm3760, %v3488, %v3909
    %v3911 = vsel %vm3762, %v3497, %v3910
    %v3912 = vsel %vm3764, %v3506, %v3911
    %v3913 = vsel %vm3766, %v3515, %v3912
    %v3914 = vsel %vm3768, %v3524, %v3913
    %v3915 = vsel %vm3770, %v3533, %v3914
    %3916 = vrot.lane.b32.xlu0 %v3915, 119
    %v3917 = vpop.permute.xlu0 %3916
    %v3927 = vsel %vm3758, %v3551, %v3542
    %v3928 = vsel %vm3760, %v3560, %v3927
    %v3929 = vsel %vm3762, %v3569, %v3928
    %v3930 = vsel %vm3764, %v3578, %v3929
    %v3931 = vsel %vm3766, %v3587, %v3930
    %v3932 = vsel %vm3768, %v3596, %v3931
    %v3933 = vsel %vm3770, %v3605, %v3932
    %v3943 = vsel %vm3758, %v3623, %v3614
    %v3944 = vsel %vm3760, %v3632, %v3943
    %v3945 = vsel %vm3762, %v3641, %v3944
    %v3946 = vsel %vm3764, %v3650, %v3945
    %v3947 = vsel %vm3766, %v3659, %v3946
    %v3948 = vsel %vm3768, %v3668, %v3947
    %v3949 = vsel %vm3770, %v3677, %v3948
    %3950 = vrot.lane.b32.xlu0 %v3949, 122
    %v3951 = vpop.permute.xlu0 %3950
    %v3961 = vsel %vm3758, %v3695, %v3686
    %v3962 = vsel %vm3760, %v3704, %v3961
    %v3963 = vsel %vm3762, %v3713, %v3962
    %v3964 = vsel %vm3764, %v3722, %v3963
    %v3965 = vsel %vm3766, %v3731, %v3964
    %v3966 = vsel %vm3768, %v3740, %v3965
    %v3967 = vsel %vm3770, %v3749, %v3966
    %3968 = vrot.lane.b32.xlu0 %v3967, 122
    %v3969 = vpop.permute.xlu0 %3968
    %vm3971 = vcmask 7168
    %v3972 = vsel %vm3971, %v3773, %v3791
    %v3973 = vsel %vm1678, %v3972, %v3809
    %v3974 = vsel %vm2481, %v3973, %v3827
    %vm3975 = vcmask 31744
    %v3976 = vsel %vm3975, %v3974, %v3845
    %v3977 = vsel %vm156, %v3976, %v3863
    %vm3978 = vcmask 48128
    %v3979 = vsel %vm3978, %v3977, %v3881
    %vm3980 = vcmask 56320
    %v3981 = vsel %vm3980, %v3979, %v3899
    %vm3982 = vcmask 64512
    %v3983 = vsel %vm3982, %v3981, %v3917
    %vm3984 = vcmask 72704
    %v3985 = vsel %vm3984, %v3983, %v3933
    %vm3986 = vcmask 80896
    %v3987 = vsel %vm3986, %v3985, %v3951
    %vm3988 = vcmask 89088
    %v3989 = vsel %vm3988, %v3987, %v3969
    %vm3990 = vcmask 97280
    %v3991 = vsel %vm3990, %v3989, 0.0
    %3992 = vst [vmem:[#allocation2] sm:$0xff] %v3991
    // Predicated region
    $region6: #{_pack_and_reduce.1} parent=1 // pred_check
      _
    $region7: #{_pack_and_reduce.1} parent=1 // pred_check_branch
      %3994 = sbr.rel (0) target = $region9
    $region8: #{_pack_and_reduce.1} parent=1 // pred_region
      %s3996 = ssub.s32 128, 128
      %3997 = vsyncadd [#allocation3], %s3996
      %s3999 = sshll.u32 [#allocation2], 4
      %s4000 = int_to_ptr.vmem [resolvable:$true] %s3999
      %4002 = dma.vmem_to_hbm [thread:$0]  %s4000, 128, %s1, [#allocation3]
    $region9: #{_pack_and_reduce.1} parent=1 // pred_fallthru
      _
    // Predicated region
    $region10: #{_pack_and_reduce.1} parent=1 // pred_check
      _
    $region11: #{_pack_and_reduce.1} parent=1 // pred_check_branch
      %4004 = sbr.rel (0) target = $region13
    $region12: #{_pack_and_reduce.1} parent=1 // pred_region
      %4005 = dma.done [#allocation3], 128
    $region13: #{_pack_and_reduce.1} parent=1 // pred_fallthru
      _
    %4006 = vsyncpa [#allocation3], 1

</llo_original>
